<compile_context>
chip_gen: v6e
topology: v6e:2x2x1
jax: 0.10.0
libtpu: 0.0.40
codegen_flags: <defaults>
</compile_context>

<pallas_src>
import functools

import jax
import jax.numpy as jnp
from jax.experimental import pallas as pl
from jax.experimental.pallas import tpu as pltpu


def _round_up(x, m):
    return ((x + m - 1) // m) * m


def _vae_kernel(x_ref, eps_ref,
                w1_ref, b1_ref,
                w2_ref, b2_ref,      # fused heads: w2 = [w21 | w22 | pad]
                w3_ref, b3_ref,
                w4_ref, b4_ref,      # w4/b4 lane-padded to a multiple of 128
                recon_ref, ml_ref,
                *, z_size):
    x = x_ref[...]                                  # (TB, D)  f32
    eps = eps_ref[...][:, :z_size]                  # (TB, Z)  f32 (padded lanes unused)

    # encode: h1 = relu(x @ W1 + b1)   (bf16 operands, f32 MXU accumulation)
    h1 = jnp.dot(x.astype(jnp.bfloat16), w1_ref[...],
                 preferred_element_type=jnp.float32) + b1_ref[...]
    h1 = jnp.maximum(h1, 0.0)

    # fused mu/logvar head: one lane-dense (TB, 2Z) matmul + one unmasked store
    ml = jnp.dot(h1.astype(jnp.bfloat16), w2_ref[...],
                 preferred_element_type=jnp.float32) + b2_ref[...]
    mu = ml[:, :z_size]
    logvar = ml[:, z_size:2 * z_size]

    # reparameterize (training semantics): z = mu + eps * exp(0.5 * logvar)
    z = mu + eps * jnp.exp(0.5 * logvar)

    # decode: sigmoid(relu(z @ W3 + b3) @ W4 + b4)
    h3 = jnp.dot(z.astype(jnp.bfloat16), w3_ref[...],
                 preferred_element_type=jnp.float32) + b3_ref[...]
    h3 = jnp.maximum(h3, 0.0)
    logits = jnp.dot(h3.astype(jnp.bfloat16), w4_ref[...],
                     preferred_element_type=jnp.float32) + b4_ref[...]
    # exact sigmoid: exp on EUP + exact reciprocal (still EUP path, keeps VALU free)
    recon = pl.reciprocal(1.0 + jnp.exp(-logits), approx=False)

    recon_ref[...] = recon            # (TB, Dp)  Dp multiple of 128 -> unmasked vst
    ml_ref[...] = ml                  # (TB, 2Z)  128 lanes -> unmasked vst


def init_vae_params(key, input_size, z_size, hidden=400):
    """Deterministic synthetic parameters (PyTorch-Linear-like uniform init).

    Matmul weights are stored (in, out) in bfloat16 (halves weight DMA), biases
    in float32.  fc21/fc22 are fused into one lane-padded (hidden, >=128) head;
    fc4 columns / bias are lane-padded to a multiple of 128 (zeros), so the
    padded recon lanes are sliced off in the wrapper.
    """
    def linear(k, fan_in, fan_out):
        kw, kb = jax.random.split(k)
        bound = 1.0 / jnp.sqrt(fan_in)
        w = jax.random.uniform(kw, (fan_in, fan_out), jnp.float32, -bound, bound)
        b = jax.random.uniform(kb, (1, fan_out), jnp.float32, -bound, bound)
        return w, b

    keys = jax.random.split(key, 5)
    w1, b1 = linear(keys[0], input_size, hidden)
    w21, b21 = linear(keys[1], hidden, z_size)
    w22, b22 = linear(keys[2], hidden, z_size)
    w3, b3 = linear(keys[3], z_size, hidden)
    w4, b4 = linear(keys[4], hidden, input_size)

    # fused, lane-padded mu/logvar head
    head = 2 * z_size
    head_p = max(128, _round_up(head, 128))
    w2 = jnp.zeros((hidden, head_p), jnp.float32)
    w2 = w2.at[:, :z_size].set(w21).at[:, z_size:head].set(w22)
    b2 = jnp.zeros((1, head_p), jnp.float32)
    b2 = b2.at[:, :z_size].set(b21).at[:, z_size:head].set(b22)

    # lane-padded decoder output (e.g. 784 -> 896): unmasked recon stores
    d_p = _round_up(input_size, 128)
    w4p = jnp.zeros((hidden, d_p), jnp.float32).at[:, :input_size].set(w4)
    b4p = jnp.zeros((1, d_p), jnp.float32).at[:, :input_size].set(b4)

    return dict(w1=w1.astype(jnp.bfloat16), b1=b1,
                w2=w2.astype(jnp.bfloat16), b2=b2,
                w3=w3.astype(jnp.bfloat16), b3=b3,
                w4=w4p.astype(jnp.bfloat16), b4=b4p)


def _pick_tile_b(batch):
    # largest tile with >= 4 grid steps (>= 2 steps per core on v7x megacore);
    # floor of 128 keeps every MXU pass full on v5e and acceptable on v6e/v7x.
    for tb in (512, 256, 128):
        if pl.cdiv(batch, tb) >= 4:
            return tb
    return 128


def vae_forward(params, x, eps, input_size, *, tile_b=None):
    """Mirrors VAE.forward (training mode): returns (recon_x, mu, logvar)."""
    x2d = x.reshape(-1, input_size).astype(jnp.float32)        # x.view(-1, input_size)
    B = x2d.shape[0]
    D = input_size
    Dp = params["w4"].shape[1]          # lane-padded recon width (multiple of 128)
    Z = params["w3"].shape[0]
    Z2 = params["w2"].shape[1]          # lane-padded fused-head width (>= 2*Z, mult of 128)

    if tile_b is None:
        tile_b = _pick_tile_b(B)

    n_tiles = pl.cdiv(B, tile_b)
    Bp = n_tiles * tile_b

    # lane-dense eps block: pad Z -> Z2 lanes (zeros); pad batch to tile multiple
    eps_p = jnp.pad(eps.astype(jnp.float32), ((0, Bp - B), (0, Z2 - Z)))
    if Bp != B:
        x2d = jnp.pad(x2d, ((0, Bp - B), (0, 0)))

    def act_spec(n):                        # batch-tiled activations / outputs
        return pl.BlockSpec((tile_b, n), lambda i: (i, 0))

    def w_spec(p):                          # weights: single block, VMEM-resident
        return pl.BlockSpec(p.shape, lambda i: (0, 0))

    kernel = functools.partial(_vae_kernel, z_size=Z)

    recon_p, ml = pl.pallas_call(
        kernel,
        out_shape=(
            jax.ShapeDtypeStruct((Bp, Dp), jnp.float32),   # padded recon
            jax.ShapeDtypeStruct((Bp, Z2), jnp.float32),   # fused [mu | logvar]
        ),
        grid_spec=pltpu.PrefetchScalarGridSpec(
            num_scalar_prefetch=0,
            grid=(n_tiles,),
            in_specs=[
                act_spec(D), act_spec(Z2),
                w_spec(params["w1"]), w_spec(params["b1"]),
                w_spec(params["w2"]), w_spec(params["b2"]),
                w_spec(params["w3"]), w_spec(params["b3"]),
                w_spec(params["w4"]), w_spec(params["b4"]),
            ],
            out_specs=[act_spec(Dp), act_spec(Z2)],
        ),
        compiler_params=pltpu.CompilerParams(
            dimension_semantics=("parallel",),      # v7x: shard batch tiles over 2 TCs
            vmem_limit_bytes=32 << 20,              # ~5-11 MB working set + headroom
        ),
    )(x2d, eps_p,
      params["w1"], params["b1"],
      params["w2"], params["b2"],
      params["w3"], params["b3"],
      params["w4"], params["b4"])

    recon = recon_p[:B, :D]
    mu = ml[:B, :Z]
    logvar = ml[:B, Z:2 * Z]
    return recon, mu, logvar


def vae_forward_reference(params, x, eps, input_size):
    """Pure-JAX reference using the same bf16-operand / f32-accumulate recipe."""
    x2d = x.reshape(-1, input_size).astype(jnp.float32)
    Z = params["w3"].shape[0]

    def mm(a, w):
        return jnp.dot(a.astype(jnp.bfloat16), w, preferred_element_type=jnp.float32)

    h1 = jax.nn.relu(mm(x2d, params["w1"]) + params["b1"])
    ml = mm(h1, params["w2"]) + params["b2"]
    mu, logvar = ml[:, :Z], ml[:, Z:2 * Z]
    z = mu + eps * jnp.exp(0.5 * logvar)
    h3 = jax.nn.relu(mm(z, params["w3"]) + params["b3"])
    recon = jax.nn.sigmoid(mm(h3, params["w4"]) + params["b4"])
    return recon[:, :input_size], mu, logvar


if __name__ == "__main__":
    INPUT_SIZE = 28 * 28   # 784: MNIST-style 1x28x28 images (as in the module docstring)
    Z_SIZE = 64            # lane-friendly latent width (fused head = 128 lanes)
    B = 512                # tile_b=128 -> grid of 4: >= 2 pipelined steps per v7x core

    key = jax.random.PRNGKey(0)
    k_params, k_x, k_eps = jax.random.split(key, 3)

    params = init_vae_params(k_params, INPUT_SIZE, Z_SIZE)
    # NCHW image input, flattened inside the forward (like x.view(-1, input_size))
    x = jax.random.uniform(k_x, (B, 1, 28, 28), jnp.float32)
    eps = jax.random.normal(k_eps, (B, Z_SIZE), jnp.float32)   # reparam noise

    recon, mu, logvar = jax.block_until_ready(
        vae_forward(params, x, eps, INPUT_SIZE))

    # sanity check vs pure-JAX reference (same precision recipe; sigmoid is exact)
    r_ref, m_ref, lv_ref = vae_forward_reference(params, x, eps, INPUT_SIZE)
    assert recon.shape == (B, INPUT_SIZE)
    assert mu.shape == (B, Z_SIZE) and logvar.shape == (B, Z_SIZE)
    assert jnp.allclose(mu, m_ref, atol=2e-3, rtol=2e-3), float(jnp.abs(mu - m_ref).max())
    assert jnp.allclose(logvar, lv_ref, atol=2e-3, rtol=2e-3), float(jnp.abs(logvar - lv_ref).max())
    assert jnp.allclose(recon, r_ref, atol=2e-3, rtol=2e-3), float(jnp.abs(recon - r_ref).max())

    print("KERNEL_OK")
</pallas_src>

<mosaic_0001>
module attributes {stable_mosaic.version = 11 : i64} {
  func.func @_vae_kernel(%arg0: i32, %arg1: memref<128x784xf32, #tpu.memory_space<vmem>>, %arg2: memref<128x128xf32, #tpu.memory_space<vmem>>, %arg3: memref<784x400xbf16, #tpu.memory_space<vmem>>, %arg4: memref<1x400xf32, #tpu.memory_space<vmem>>, %arg5: memref<400x128xbf16, #tpu.memory_space<vmem>>, %arg6: memref<1x128xf32, #tpu.memory_space<vmem>>, %arg7: memref<64x400xbf16, #tpu.memory_space<vmem>>, %arg8: memref<1x400xf32, #tpu.memory_space<vmem>>, %arg9: memref<400x896xbf16, #tpu.memory_space<vmem>>, %arg10: memref<1x896xf32, #tpu.memory_space<vmem>>, %arg11: memref<128x896xf32, #tpu.memory_space<vmem>>, %arg12: memref<128x128xf32, #tpu.memory_space<vmem>>) attributes {dimension_semantics = [#tpu.dimension_semantics<parallel>], iteration_bounds = array<i64: 4>, scalar_prefetch = 0 : i64, scratch_operands = 0 : i64, tpu.core_type = #tpu.core_type<tc>, window_params = [{transform_indices = @transform_0, window_bounds = array<i64: 128, 784>}, {transform_indices = @transform_1, window_bounds = array<i64: 128, 128>}, {pipeline_mode = #tpu.pipeline_mode<synchronous>, transform_indices = @transform_2, window_bounds = array<i64: 784, 400>}, {pipeline_mode = #tpu.pipeline_mode<synchronous>, transform_indices = @transform_3, window_bounds = array<i64: 1, 400>}, {pipeline_mode = #tpu.pipeline_mode<synchronous>, transform_indices = @transform_4, window_bounds = array<i64: 400, 128>}, {pipeline_mode = #tpu.pipeline_mode<synchronous>, transform_indices = @transform_5, window_bounds = array<i64: 1, 128>}, {pipeline_mode = #tpu.pipeline_mode<synchronous>, transform_indices = @transform_6, window_bounds = array<i64: 64, 400>}, {pipeline_mode = #tpu.pipeline_mode<synchronous>, transform_indices = @transform_7, window_bounds = array<i64: 1, 400>}, {pipeline_mode = #tpu.pipeline_mode<synchronous>, transform_indices = @transform_8, window_bounds = array<i64: 400, 896>}, {pipeline_mode = #tpu.pipeline_mode<synchronous>, transform_indices = @transform_9, window_bounds = array<i64: 1, 896>}, {transform_indices = @transform_10, window_bounds = array<i64: 128, 896>}, {transform_indices = @transform_11, window_bounds = array<i64: 128, 128>}]} {
    %c0 = arith.constant 0 : index
    %c0_0 = arith.constant 0 : index
    %0 = vector.load %arg1[%c0, %c0_0] : memref<128x784xf32, #tpu.memory_space<vmem>>, vector<128x784xf32>
    %c0_1 = arith.constant 0 : index
    %c0_2 = arith.constant 0 : index
    %1 = vector.load %arg2[%c0_1, %c0_2] : memref<128x128xf32, #tpu.memory_space<vmem>>, vector<128x128xf32>
    %2 = vector.extract_strided_slice %1 {offsets = [0, 0], sizes = [128, 64], strides = [1, 1]} : vector<128x128xf32> to vector<128x64xf32>
    %3 = arith.truncf %0 : vector<128x784xf32> to vector<128x784xbf16>
    %c0_3 = arith.constant 0 : index
    %c0_4 = arith.constant 0 : index
    %4 = vector.load %arg3[%c0_3, %c0_4] : memref<784x400xbf16, #tpu.memory_space<vmem>>, vector<784x400xbf16>
    %cst = arith.constant dense<0.000000e+00> : vector<128x400xf32>
    %5 = tpu.matmul %3, %4, %cst {dimension_numbers = #tpu.dot_dimension_numbers<[1], [0], [0], [1], [0, 0, 1, 1], [], []>} : vector<128x784xbf16>, vector<784x400xbf16>, vector<128x400xf32> -> vector<128x400xf32>
    %c0_5 = arith.constant 0 : index
    %c0_6 = arith.constant 0 : index
    %6 = vector.load %arg4[%c0_5, %c0_6] : memref<1x400xf32, #tpu.memory_space<vmem>>, vector<1x400xf32>
    %7 = vector.broadcast %6 : vector<1x400xf32> to vector<128x400xf32>
    %8 = arith.addf %5, %7 : vector<128x400xf32>
    %cst_7 = arith.constant 0.000000e+00 : f32
    %9 = vector.broadcast %cst_7 : f32 to vector<128x400xf32>
    %10 = arith.maximumf %8, %9 : vector<128x400xf32>
    %11 = arith.truncf %10 : vector<128x400xf32> to vector<128x400xbf16>
    %c0_8 = arith.constant 0 : index
    %c0_9 = arith.constant 0 : index
    %12 = vector.load %arg5[%c0_8, %c0_9] : memref<400x128xbf16, #tpu.memory_space<vmem>>, vector<400x128xbf16>
    %cst_10 = arith.constant dense<0.000000e+00> : vector<128x128xf32>
    %13 = tpu.matmul %11, %12, %cst_10 {dimension_numbers = #tpu.dot_dimension_numbers<[1], [0], [0], [1], [0, 0, 1, 1], [], []>} : vector<128x400xbf16>, vector<400x128xbf16>, vector<128x128xf32> -> vector<128x128xf32>
    %c0_11 = arith.constant 0 : index
    %c0_12 = arith.constant 0 : index
    %14 = vector.load %arg6[%c0_11, %c0_12] : memref<1x128xf32, #tpu.memory_space<vmem>>, vector<1x128xf32>
    %15 = vector.broadcast %14 : vector<1x128xf32> to vector<128x128xf32>
    %16 = arith.addf %13, %15 : vector<128x128xf32>
    %17 = vector.extract_strided_slice %16 {offsets = [0, 0], sizes = [128, 64], strides = [1, 1]} : vector<128x128xf32> to vector<128x64xf32>
    %18 = vector.extract_strided_slice %16 {offsets = [0, 64], sizes = [128, 64], strides = [1, 1]} : vector<128x128xf32> to vector<128x64xf32>
    %cst_13 = arith.constant 5.000000e-01 : f32
    %19 = vector.broadcast %cst_13 : f32 to vector<128x64xf32>
    %20 = arith.mulf %19, %18 : vector<128x64xf32>
    %21 = math.exp %20 : vector<128x64xf32>
    %22 = arith.mulf %2, %21 : vector<128x64xf32>
    %23 = arith.addf %17, %22 : vector<128x64xf32>
    %24 = arith.truncf %23 : vector<128x64xf32> to vector<128x64xbf16>
    %c0_14 = arith.constant 0 : index
    %c0_15 = arith.constant 0 : index
    %25 = vector.load %arg7[%c0_14, %c0_15] : memref<64x400xbf16, #tpu.memory_space<vmem>>, vector<64x400xbf16>
    %cst_16 = arith.constant dense<0.000000e+00> : vector<128x400xf32>
    %26 = tpu.matmul %24, %25, %cst_16 {dimension_numbers = #tpu.dot_dimension_numbers<[1], [0], [0], [1], [0, 0, 1, 1], [], []>} : vector<128x64xbf16>, vector<64x400xbf16>, vector<128x400xf32> -> vector<128x400xf32>
    %c0_17 = arith.constant 0 : index
    %c0_18 = arith.constant 0 : index
    %27 = vector.load %arg8[%c0_17, %c0_18] : memref<1x400xf32, #tpu.memory_space<vmem>>, vector<1x400xf32>
    %28 = vector.broadcast %27 : vector<1x400xf32> to vector<128x400xf32>
    %29 = arith.addf %26, %28 : vector<128x400xf32>
    %cst_19 = arith.constant 0.000000e+00 : f32
    %30 = vector.broadcast %cst_19 : f32 to vector<128x400xf32>
    %31 = arith.maximumf %29, %30 : vector<128x400xf32>
    %32 = arith.truncf %31 : vector<128x400xf32> to vector<128x400xbf16>
    %c0_20 = arith.constant 0 : index
    %c0_21 = arith.constant 0 : index
    %33 = vector.load %arg9[%c0_20, %c0_21] : memref<400x896xbf16, #tpu.memory_space<vmem>>, vector<400x896xbf16>
    %cst_22 = arith.constant dense<0.000000e+00> : vector<128x896xf32>
    %34 = tpu.matmul %32, %33, %cst_22 {dimension_numbers = #tpu.dot_dimension_numbers<[1], [0], [0], [1], [0, 0, 1, 1], [], []>} : vector<128x400xbf16>, vector<400x896xbf16>, vector<128x896xf32> -> vector<128x896xf32>
    %c0_23 = arith.constant 0 : index
    %c0_24 = arith.constant 0 : index
    %35 = vector.load %arg10[%c0_23, %c0_24] : memref<1x896xf32, #tpu.memory_space<vmem>>, vector<1x896xf32>
    %36 = vector.broadcast %35 : vector<1x896xf32> to vector<128x896xf32>
    %37 = arith.addf %34, %36 : vector<128x896xf32>
    %cst_25 = arith.constant 0.000000e+00 : f32
    %38 = vector.broadcast %cst_25 : f32 to vector<128x896xf32>
    %39 = arith.subf %38, %37 : vector<128x896xf32>
    %40 = math.exp %39 : vector<128x896xf32>
    %cst_26 = arith.constant 1.000000e+00 : f32
    %41 = vector.broadcast %cst_26 : f32 to vector<128x896xf32>
    %42 = arith.addf %41, %40 : vector<128x896xf32>
    %43 = tpu.reciprocal %42 : vector<128x896xf32> -> vector<128x896xf32>
    %c0_27 = arith.constant 0 : index
    %c0_28 = arith.constant 0 : index
    %44 = vector.load %arg11[%c0_27, %c0_28] : memref<128x896xf32, #tpu.memory_space<vmem>>, vector<128x896xf32>
    tpu.vector_store %arg11[%c0_27, %c0_28], %43 {strides = array<i32>} : memref<128x896xf32, #tpu.memory_space<vmem>>, vector<128x896xf32>,
    %c0_29 = arith.constant 0 : index
    %c0_30 = arith.constant 0 : index
    %45 = vector.load %arg12[%c0_29, %c0_30] : memref<128x128xf32, #tpu.memory_space<vmem>>, vector<128x128xf32>
    tpu.vector_store %arg12[%c0_29, %c0_30], %16 {strides = array<i32>} : memref<128x128xf32, #tpu.memory_space<vmem>>, vector<128x128xf32>,
    return
  }
  func.func @transform_0(%arg0: i32) -> (i32, i32) {
    %c0_i32 = arith.constant 0 : i32
    %c0_i32_0 = arith.constant 0 : i32
    return %arg0, %c0_i32 : i32, i32
  }
  func.func @transform_1(%arg0: i32) -> (i32, i32) {
    %c0_i32 = arith.constant 0 : i32
    %c0_i32_0 = arith.constant 0 : i32
    return %arg0, %c0_i32 : i32, i32
  }
  func.func @transform_2(%arg0: i32) -> (i32, i32) {
    %c0_i32 = arith.constant 0 : i32
    %c0_i32_0 = arith.constant 0 : i32
    %c0_i32_1 = arith.constant 0 : i32
    return %c0_i32, %c0_i32_0 : i32, i32
  }
  func.func @transform_3(%arg0: i32) -> (i32, i32) {
    %c0_i32 = arith.constant 0 : i32
    %c0_i32_0 = arith.constant 0 : i32
    %c0_i32_1 = arith.constant 0 : i32
    return %c0_i32, %c0_i32_0 : i32, i32
  }
  func.func @transform_4(%arg0: i32) -> (i32, i32) {
    %c0_i32 = arith.constant 0 : i32
    %c0_i32_0 = arith.constant 0 : i32
    %c0_i32_1 = arith.constant 0 : i32
    return %c0_i32, %c0_i32_0 : i32, i32
  }
  func.func @transform_5(%arg0: i32) -> (i32, i32) {
    %c0_i32 = arith.constant 0 : i32
    %c0_i32_0 = arith.constant 0 : i32
    %c0_i32_1 = arith.constant 0 : i32
    return %c0_i32, %c0_i32_0 : i32, i32
  }
  func.func @transform_6(%arg0: i32) -> (i32, i32) {
    %c0_i32 = arith.constant 0 : i32
    %c0_i32_0 = arith.constant 0 : i32
    %c0_i32_1 = arith.constant 0 : i32
    return %c0_i32, %c0_i32_0 : i32, i32
  }
  func.func @transform_7(%arg0: i32) -> (i32, i32) {
    %c0_i32 = arith.constant 0 : i32
    %c0_i32_0 = arith.constant 0 : i32
    %c0_i32_1 = arith.constant 0 : i32
    return %c0_i32, %c0_i32_0 : i32, i32
  }
  func.func @transform_8(%arg0: i32) -> (i32, i32) {
    %c0_i32 = arith.constant 0 : i32
    %c0_i32_0 = arith.constant 0 : i32
    %c0_i32_1 = arith.constant 0 : i32
    return %c0_i32, %c0_i32_0 : i32, i32
  }
  func.func @transform_9(%arg0: i32) -> (i32, i32) {
    %c0_i32 = arith.constant 0 : i32
    %c0_i32_0 = arith.constant 0 : i32
    %c0_i32_1 = arith.constant 0 : i32
    return %c0_i32, %c0_i32_0 : i32, i32
  }
  func.func @transform_10(%arg0: i32) -> (i32, i32) {
    %c0_i32 = arith.constant 0 : i32
    %c0_i32_0 = arith.constant 0 : i32
    return %arg0, %c0_i32 : i32, i32
  }
  func.func @transform_11(%arg0: i32) -> (i32, i32) {
    %c0_i32 = arith.constant 0 : i32
    %c0_i32_0 = arith.constant 0 : i32
    return %arg0, %c0_i32 : i32, i32
  }
}

</mosaic_0001>

<llo_original>
// kernel: tpu_custom_call.1
$region0: #{tpu_custom_call.1}
  #allocation0 [shape = 'u32[]', space=smem, size = 0x4, offset = 0x4, fixed_abs, tag = 'smem constant byte address 0x4 - core index']
  #allocation1 [shape = 'u32[144,128]{1,0:T(1,128)}', space=vmem, size = 0x12000, scoped, tag = 'internal scratch']
  %s0 = inlined_call_operand.vmem [shape: f32[512,784], index: 0, kind: input, shape index: {}]
  %s1 = inlined_call_operand.vmem [shape: f32[512,128], index: 1, kind: input, shape index: {}]
  %s2 = inlined_call_operand.vmem [shape: bf16[784,400], index: 2, kind: input, shape index: {}]
  %s3 = inlined_call_operand.vmem [shape: f32[1,400], index: 3, kind: input, shape index: {}]
  %s4 = inlined_call_operand.vmem [shape: bf16[400,128], index: 4, kind: input, shape index: {}]
  %s5 = inlined_call_operand.vmem [shape: f32[1,128], index: 5, kind: input, shape index: {}]
  %s6 = inlined_call_operand.vmem [shape: bf16[64,400], index: 6, kind: input, shape index: {}]
  %s7 = inlined_call_operand.vmem [shape: f32[1,400], index: 7, kind: input, shape index: {}]
  %s8 = inlined_call_operand.vmem [shape: bf16[400,896], index: 8, kind: input, shape index: {}]
  %s9 = inlined_call_operand.vmem [shape: f32[1,896], index: 9, kind: input, shape index: {}]
  %s10 = inlined_call_operand.hbm [shape: f32[512,896], index: 10, kind: output, shape index: {0}]
  %s11 = inlined_call_operand.hbm [shape: f32[512,128], index: 11, kind: output, shape index: {1}]
  %12 = xla_tuple %s10, %s11
  %s13 = sld [smem:[#allocation0]]
  $region81: #{tpu_custom_call.1} parent=0
    _
  %s15 = ssub.s32 1, %s13
  %s16 = scalar_select 0, %s15, %s13
  $region1: #{tpu_custom_call.1} parent=0
    #allocation2 [shape = 'u8[917504]{0}', space=vmem, size = 0xe0000, scoped, tag = 'output window, operand 0']
    #allocation3 [shape = 's32[2]{0}', space=sflag, size = 0x8, scoped, tag = 'scoped memory for tpu_custom_call.1']
    #allocation4 [shape = 'u8[131072]{0}', space=vmem, size = 0x20000, scoped, tag = 'output window, operand 1']
    #allocation5 [shape = 's32[2]{0}', space=sflag, size = 0x8, scoped, tag = 'scoped memory for tpu_custom_call.1']
    %17 = vsyncpa [#allocation3], 0
    %s18 = scalar_lea.sflag [#allocation3], 1
    %19 = vsyncpa %s18, 0
    %20 = vsyncpa [#allocation5], 0
    %s21 = scalar_lea.sflag [#allocation5], 1
    %22 = vsyncpa %s21, 0
    loop: start=0, step=1, limit=6
    $region2: #{tpu_custom_call.1} parent=1 // loop_pre_header
      _
    $region3: #{tpu_custom_call.1} parent=1 // loop_header
      %s24 = sphi 0, %s28
      %p25 = scmp.ge.s32.totalorder %s24, 6
      %s34 = sphi 0, %s36
      %s37 = sphi 0, %s34
      %s38 = sphi 0, %s37
      %s54 = sphi 0, %s38
      %s60 = sphi 0, %s62
      %s63 = sphi 0, %s60
      %s64 = sphi 0, %s63
      %s80 = sphi 0, %s64
      %s84 = sphi 0, %s84
      %s86 = sphi 0, %s84
      %s87 = sphi 0, %s86
      %s101 = sphi 0, %s87
      %s105 = sphi 0, %s105
      %s107 = sphi 0, %s105
      %s108 = sphi 0, %s107
      %s122 = sphi 0, %s108
      %s126 = sphi 0, %s126
      %s128 = sphi 0, %s126
      %s129 = sphi 0, %s128
      %s143 = sphi 0, %s129
      %s147 = sphi 0, %s147
      %s149 = sphi 0, %s147
      %s150 = sphi 0, %s149
      %s164 = sphi 0, %s150
      %s168 = sphi 0, %s168
      %s170 = sphi 0, %s168
      %s171 = sphi 0, %s170
      %s185 = sphi 0, %s171
      %s189 = sphi 0, %s189
      %s191 = sphi 0, %s189
      %s192 = sphi 0, %s191
      %s206 = sphi 0, %s192
      %s210 = sphi 0, %s210
      %s212 = sphi 0, %s210
      %s213 = sphi 0, %s212
      %s227 = sphi 0, %s213
      %s231 = sphi 0, %s231
      %s233 = sphi 0, %s231
      %s234 = sphi 0, %s233
      %s248 = sphi 0, %s234
      %s254 = sphi 0, %s256
      %s257 = sphi 0, %s254
      %s258 = sphi 0, %s257
      %s274 = sphi 0, %s258
      %s280 = sphi 0, %s282
      %s283 = sphi 0, %s280
      %s284 = sphi 0, %s283
      %s300 = sphi 0, %s284
    $region4: #{tpu_custom_call.1} parent=1 // loop_header_branch
      %27 = sbr.rel (%p25) target = $region8
    $region5: #{tpu_custom_call.1} parent=1 // loop_body
      %s29 = ssub.s32 %s24, 1
      %s30 = ssub.s32 %s24, 2
      %s31 = sadd.s32 %s24, 1
      %s32 = ssub.s32 %s24, %s31
      %p33 = scmp.eq.s32.totalorder %s32, 0
      %s35 = sadd.s32 %s34, 1
      %s36 = scalar_select %p33, %s34, %s35
      %p39 = pneg %p33
      %p40 = scmp.eq.s32.totalorder %s24, 3
      %p41 = por %p39, %p40
      %p42 = scmp.ne.s32.totalorder %s34, %s37
      %p43 = scmp.eq.s32.totalorder %s24, 0
      %p44 = por %p42, %p43
      %p45 = scmp.ne.s32.totalorder %s34, %s37
      %p46 = scmp.eq.s32.totalorder %s29, 3
      %p47 = por %p45, %p46
      %p48 = scmp.ne.s32.totalorder %s37, %s38
      %p49 = scmp.eq.s32.totalorder %s29, 0
      %p50 = por %p48, %p49
      %p51 = scmp.ne.s32.totalorder %s37, %s38
      %p52 = scmp.eq.s32.totalorder %s30, 3
      %p53 = por %p51, %p52
      %p55 = scmp.ne.s32.totalorder %s38, %s54
      %p56 = scmp.eq.s32.totalorder %s30, 0
      %p57 = por %p55, %p56
      %s58 = ssub.s32 %s24, %s31
      %p59 = scmp.eq.s32.totalorder %s58, 0
      %s61 = sadd.s32 %s60, 1
      %s62 = scalar_select %p59, %s60, %s61
      %p65 = pneg %p59
      %p66 = scmp.eq.s32.totalorder %s24, 3
      %p67 = por %p65, %p66
      %p68 = scmp.ne.s32.totalorder %s60, %s63
      %p69 = scmp.eq.s32.totalorder %s24, 0
      %p70 = por %p68, %p69
      %p71 = scmp.ne.s32.totalorder %s60, %s63
      %p72 = scmp.eq.s32.totalorder %s29, 3
      %p73 = por %p71, %p72
      %p74 = scmp.ne.s32.totalorder %s63, %s64
      %p75 = scmp.eq.s32.totalorder %s29, 0
      %p76 = por %p74, %p75
      %p77 = scmp.ne.s32.totalorder %s63, %s64
      %p78 = scmp.eq.s32.totalorder %s30, 3
      %p79 = por %p77, %p78
      %p81 = scmp.ne.s32.totalorder %s64, %s80
      %p82 = scmp.eq.s32.totalorder %s30, 0
      %p83 = por %p81, %p82
      %s85 = sadd.s32 %s84, 1
      %p88 = scmp.eq.s32.totalorder %s24, 3
      %p89 = scmp.ne.s32.totalorder %s84, %s86
      %p90 = scmp.eq.s32.totalorder %s24, 0
      %p91 = por %p89, %p90
      %p92 = scmp.ne.s32.totalorder %s84, %s86
      %p93 = scmp.eq.s32.totalorder %s29, 3
      %p94 = por %p92, %p93
      %p95 = scmp.ne.s32.totalorder %s86, %s87
      %p96 = scmp.eq.s32.totalorder %s29, 0
      %p97 = por %p95, %p96
      %p98 = scmp.ne.s32.totalorder %s86, %s87
      %p99 = scmp.eq.s32.totalorder %s30, 3
      %p100 = por %p98, %p99
      %p102 = scmp.ne.s32.totalorder %s87, %s101
      %p103 = scmp.eq.s32.totalorder %s30, 0
      %p104 = por %p102, %p103
      %s106 = sadd.s32 %s105, 1
      %p109 = scmp.eq.s32.totalorder %s24, 3
      %p110 = scmp.ne.s32.totalorder %s105, %s107
      %p111 = scmp.eq.s32.totalorder %s24, 0
      %p112 = por %p110, %p111
      %p113 = scmp.ne.s32.totalorder %s105, %s107
      %p114 = scmp.eq.s32.totalorder %s29, 3
      %p115 = por %p113, %p114
      %p116 = scmp.ne.s32.totalorder %s107, %s108
      %p117 = scmp.eq.s32.totalorder %s29, 0
      %p118 = por %p116, %p117
      %p119 = scmp.ne.s32.totalorder %s107, %s108
      %p120 = scmp.eq.s32.totalorder %s30, 3
      %p121 = por %p119, %p120
      %p123 = scmp.ne.s32.totalorder %s108, %s122
      %p124 = scmp.eq.s32.totalorder %s30, 0
      %p125 = por %p123, %p124
      %s127 = sadd.s32 %s126, 1
      %p130 = scmp.eq.s32.totalorder %s24, 3
      %p131 = scmp.ne.s32.totalorder %s126, %s128
      %p132 = scmp.eq.s32.totalorder %s24, 0
      %p133 = por %p131, %p132
      %p134 = scmp.ne.s32.totalorder %s126, %s128
      %p135 = scmp.eq.s32.totalorder %s29, 3
      %p136 = por %p134, %p135
      %p137 = scmp.ne.s32.totalorder %s128, %s129
      %p138 = scmp.eq.s32.totalorder %s29, 0
      %p139 = por %p137, %p138
      %p140 = scmp.ne.s32.totalorder %s128, %s129
      %p141 = scmp.eq.s32.totalorder %s30, 3
      %p142 = por %p140, %p141
      %p144 = scmp.ne.s32.totalorder %s129, %s143
      %p145 = scmp.eq.s32.totalorder %s30, 0
      %p146 = por %p144, %p145
      %s148 = sadd.s32 %s147, 1
      %p151 = scmp.eq.s32.totalorder %s24, 3
      %p152 = scmp.ne.s32.totalorder %s147, %s149
      %p153 = scmp.eq.s32.totalorder %s24, 0
      %p154 = por %p152, %p153
      %p155 = scmp.ne.s32.totalorder %s147, %s149
      %p156 = scmp.eq.s32.totalorder %s29, 3
      %p157 = por %p155, %p156
      %p158 = scmp.ne.s32.totalorder %s149, %s150
      %p159 = scmp.eq.s32.totalorder %s29, 0
      %p160 = por %p158, %p159
      %p161 = scmp.ne.s32.totalorder %s149, %s150
      %p162 = scmp.eq.s32.totalorder %s30, 3
      %p163 = por %p161, %p162
      %p165 = scmp.ne.s32.totalorder %s150, %s164
      %p166 = scmp.eq.s32.totalorder %s30, 0
      %p167 = por %p165, %p166
      %s169 = sadd.s32 %s168, 1
      %p172 = scmp.eq.s32.totalorder %s24, 3
      %p173 = scmp.ne.s32.totalorder %s168, %s170
      %p174 = scmp.eq.s32.totalorder %s24, 0
      %p175 = por %p173, %p174
      %p176 = scmp.ne.s32.totalorder %s168, %s170
      %p177 = scmp.eq.s32.totalorder %s29, 3
      %p178 = por %p176, %p177
      %p179 = scmp.ne.s32.totalorder %s170, %s171
      %p180 = scmp.eq.s32.totalorder %s29, 0
      %p181 = por %p179, %p180
      %p182 = scmp.ne.s32.totalorder %s170, %s171
      %p183 = scmp.eq.s32.totalorder %s30, 3
      %p184 = por %p182, %p183
      %p186 = scmp.ne.s32.totalorder %s171, %s185
      %p187 = scmp.eq.s32.totalorder %s30, 0
      %p188 = por %p186, %p187
      %s190 = sadd.s32 %s189, 1
      %p193 = scmp.eq.s32.totalorder %s24, 3
      %p194 = scmp.ne.s32.totalorder %s189, %s191
      %p195 = scmp.eq.s32.totalorder %s24, 0
      %p196 = por %p194, %p195
      %p197 = scmp.ne.s32.totalorder %s189, %s191
      %p198 = scmp.eq.s32.totalorder %s29, 3
      %p199 = por %p197, %p198
      %p200 = scmp.ne.s32.totalorder %s191, %s192
      %p201 = scmp.eq.s32.totalorder %s29, 0
      %p202 = por %p200, %p201
      %p203 = scmp.ne.s32.totalorder %s191, %s192
      %p204 = scmp.eq.s32.totalorder %s30, 3
      %p205 = por %p203, %p204
      %p207 = scmp.ne.s32.totalorder %s192, %s206
      %p208 = scmp.eq.s32.totalorder %s30, 0
      %p209 = por %p207, %p208
      %s211 = sadd.s32 %s210, 1
      %p214 = scmp.eq.s32.totalorder %s24, 3
      %p215 = scmp.ne.s32.totalorder %s210, %s212
      %p216 = scmp.eq.s32.totalorder %s24, 0
      %p217 = por %p215, %p216
      %p218 = scmp.ne.s32.totalorder %s210, %s212
      %p219 = scmp.eq.s32.totalorder %s29, 3
      %p220 = por %p218, %p219
      %p221 = scmp.ne.s32.totalorder %s212, %s213
      %p222 = scmp.eq.s32.totalorder %s29, 0
      %p223 = por %p221, %p222
      %p224 = scmp.ne.s32.totalorder %s212, %s213
      %p225 = scmp.eq.s32.totalorder %s30, 3
      %p226 = por %p224, %p225
      %p228 = scmp.ne.s32.totalorder %s213, %s227
      %p229 = scmp.eq.s32.totalorder %s30, 0
      %p230 = por %p228, %p229
      %s232 = sadd.s32 %s231, 1
      %p235 = scmp.eq.s32.totalorder %s24, 3
      %p236 = scmp.ne.s32.totalorder %s231, %s233
      %p237 = scmp.eq.s32.totalorder %s24, 0
      %p238 = por %p236, %p237
      %p239 = scmp.ne.s32.totalorder %s231, %s233
      %p240 = scmp.eq.s32.totalorder %s29, 3
      %p241 = por %p239, %p240
      %p242 = scmp.ne.s32.totalorder %s233, %s234
      %p243 = scmp.eq.s32.totalorder %s29, 0
      %p244 = por %p242, %p243
      %p245 = scmp.ne.s32.totalorder %s233, %s234
      %p246 = scmp.eq.s32.totalorder %s30, 3
      %p247 = por %p245, %p246
      %p249 = scmp.ne.s32.totalorder %s234, %s248
      %p250 = scmp.eq.s32.totalorder %s30, 0
      %p251 = por %p249, %p250
      %s252 = ssub.s32 %s24, %s31
      %p253 = scmp.eq.s32.totalorder %s252, 0
      %s255 = sadd.s32 %s254, 1
      %s256 = scalar_select %p253, %s254, %s255
      %p259 = pneg %p253
      %p260 = scmp.eq.s32.totalorder %s24, 3
      %p261 = por %p259, %p260
      %p262 = scmp.ne.s32.totalorder %s254, %s257
      %p263 = scmp.eq.s32.totalorder %s24, 0
      %p264 = por %p262, %p263
      %p265 = scmp.ne.s32.totalorder %s254, %s257
      %p266 = scmp.eq.s32.totalorder %s29, 3
      %p267 = por %p265, %p266
      %p268 = scmp.ne.s32.totalorder %s257, %s258
      %p269 = scmp.eq.s32.totalorder %s29, 0
      %p270 = por %p268, %p269
      %p271 = scmp.ne.s32.totalorder %s257, %s258
      %p272 = scmp.eq.s32.totalorder %s30, 3
      %p273 = por %p271, %p272
      %p275 = scmp.ne.s32.totalorder %s258, %s274
      %p276 = scmp.eq.s32.totalorder %s30, 0
      %p277 = por %p275, %p276
      %s278 = ssub.s32 %s24, %s31
      %p279 = scmp.eq.s32.totalorder %s278, 0
      %s281 = sadd.s32 %s280, 1
      %s282 = scalar_select %p279, %s280, %s281
      %p285 = pneg %p279
      %p286 = scmp.eq.s32.totalorder %s24, 3
      %p287 = por %p285, %p286
      %p288 = scmp.ne.s32.totalorder %s280, %s283
      %p289 = scmp.eq.s32.totalorder %s24, 0
      %p290 = por %p288, %p289
      %p291 = scmp.ne.s32.totalorder %s280, %s283
      %p292 = scmp.eq.s32.totalorder %s29, 3
      %p293 = por %p291, %p292
      %p294 = scmp.ne.s32.totalorder %s283, %s284
      %p295 = scmp.eq.s32.totalorder %s29, 0
      %p296 = por %p294, %p295
      %p297 = scmp.ne.s32.totalorder %s283, %s284
      %p298 = scmp.eq.s32.totalorder %s30, 3
      %p299 = por %p297, %p298
      %p301 = scmp.ne.s32.totalorder %s284, %s300
      %p302 = scmp.eq.s32.totalorder %s30, 0
      %p303 = por %p301, %p302
      %p304 = scmp.le.s32.totalorder 1, %s24
      %p305 = scmp.lt.s32.totalorder %s24, 5
      %p306 = pnand %p304, %p305
      %p307 = pneg %p306
      // Predicated region
      $region9: #{tpu_custom_call.1} parent=5 // pred_check
        _
      $region10: #{tpu_custom_call.1} parent=5 // pred_check_branch
        %309 = sbr.rel (%p306) target = $region12
      $region11: #{tpu_custom_call.1} parent=5 // pred_region
        %s310 = ssub.s32 %s24, 1
        // Predicated region
        $region13: #{tpu_custom_call.1} parent=11 // pred_check
          %p311 = pneg %p97
        $region14: #{tpu_custom_call.1} parent=11 // pred_check_branch
          %313 = sbr.rel (%p311) target = $region16
        $region15: #{tpu_custom_call.1} parent=11 // pred_region
          _
        $region16: #{tpu_custom_call.1} parent=11 // pred_fallthru
          _
        // Predicated region
        $region17: #{tpu_custom_call.1} parent=11 // pred_check
          %p314 = pneg %p118
        $region18: #{tpu_custom_call.1} parent=11 // pred_check_branch
          %316 = sbr.rel (%p314) target = $region20
        $region19: #{tpu_custom_call.1} parent=11 // pred_region
          _
        $region20: #{tpu_custom_call.1} parent=11 // pred_fallthru
          _
        // Predicated region
        $region21: #{tpu_custom_call.1} parent=11 // pred_check
          %p317 = pneg %p139
        $region22: #{tpu_custom_call.1} parent=11 // pred_check_branch
          %319 = sbr.rel (%p317) target = $region24
        $region23: #{tpu_custom_call.1} parent=11 // pred_region
          _
        $region24: #{tpu_custom_call.1} parent=11 // pred_fallthru
          _
        // Predicated region
        $region25: #{tpu_custom_call.1} parent=11 // pred_check
          %p320 = pneg %p160
        $region26: #{tpu_custom_call.1} parent=11 // pred_check_branch
          %322 = sbr.rel (%p320) target = $region28
        $region27: #{tpu_custom_call.1} parent=11 // pred_region
          _
        $region28: #{tpu_custom_call.1} parent=11 // pred_fallthru
          _
        // Predicated region
        $region29: #{tpu_custom_call.1} parent=11 // pred_check
          %p323 = pneg %p181
        $region30: #{tpu_custom_call.1} parent=11 // pred_check_branch
          %325 = sbr.rel (%p323) target = $region32
        $region31: #{tpu_custom_call.1} parent=11 // pred_region
          _
        $region32: #{tpu_custom_call.1} parent=11 // pred_fallthru
          _
        // Predicated region
        $region33: #{tpu_custom_call.1} parent=11 // pred_check
          %p326 = pneg %p202
        $region34: #{tpu_custom_call.1} parent=11 // pred_check_branch
          %328 = sbr.rel (%p326) target = $region36
        $region35: #{tpu_custom_call.1} parent=11 // pred_region
          _
        $region36: #{tpu_custom_call.1} parent=11 // pred_fallthru
          _
        // Predicated region
        $region37: #{tpu_custom_call.1} parent=11 // pred_check
          %p329 = pneg %p223
        $region38: #{tpu_custom_call.1} parent=11 // pred_check_branch
          %331 = sbr.rel (%p329) target = $region40
        $region39: #{tpu_custom_call.1} parent=11 // pred_region
          _
        $region40: #{tpu_custom_call.1} parent=11 // pred_fallthru
          _
        // Predicated region
        $region41: #{tpu_custom_call.1} parent=11 // pred_check
          %p332 = pneg %p244
        $region42: #{tpu_custom_call.1} parent=11 // pred_check_branch
          %334 = sbr.rel (%p332) target = $region44
        $region43: #{tpu_custom_call.1} parent=11 // pred_region
          _
        $region44: #{tpu_custom_call.1} parent=11 // pred_fallthru
          _
      $region12: #{tpu_custom_call.1} parent=5 // pred_fallthru
        _
      %p335 = scmp.lt.s32.totalorder %s24, 4
      // Predicated region
      $region45: #{tpu_custom_call.1} parent=5 // pred_check
        %p336 = pneg %p335
      $region46: #{tpu_custom_call.1} parent=5 // pred_check_branch
        %338 = sbr.rel (%p336) target = $region48
      $region47: #{tpu_custom_call.1} parent=5 // pred_region
        // Predicated region
        $region49: #{tpu_custom_call.1} parent=47 // pred_check
          %p339 = pneg %p44
        $region50: #{tpu_custom_call.1} parent=47 // pred_check_branch
          %341 = sbr.rel (%p339) target = $region52
        $region51: #{tpu_custom_call.1} parent=47 // pred_region
          %s342 = smul.u32 16, %s24
          %p343 = scmp.lt.s32.totalorder %s342, 63
          %s344 = scalar_select %p343, %s342, 63
          %s345 = smul.addr %s344, 7
          %s346 = smul.addr %s345, 8
          %s347 = scalar_lea.vmem %s0, %s346
          %s348 = smul.u32 16, %s24
        $region52: #{tpu_custom_call.1} parent=47 // pred_fallthru
          _
        // Predicated region
        $region53: #{tpu_custom_call.1} parent=47 // pred_check
          %p349 = pneg %p70
        $region54: #{tpu_custom_call.1} parent=47 // pred_check_branch
          %351 = sbr.rel (%p349) target = $region56
        $region55: #{tpu_custom_call.1} parent=47 // pred_region
          %s352 = smul.u32 16, %s24
          %p353 = scmp.lt.s32.totalorder %s352, 63
          %s354 = scalar_select %p353, %s352, 63
          %s355 = smul.addr %s354, 8
          %s356 = scalar_lea.vmem %s1, %s355
          %s357 = smul.u32 16, %s24
        $region56: #{tpu_custom_call.1} parent=47 // pred_fallthru
          _
      $region48: #{tpu_custom_call.1} parent=5 // pred_fallthru
        _
      %p358 = scmp.le.s32.totalorder 1, %s24
      %p359 = scmp.lt.s32.totalorder %s24, 5
      %p360 = pnand %p358, %p359
      %p361 = pneg %p360
      // Predicated region
      $region57: #{tpu_custom_call.1} parent=5 // pred_check
        _
      $region58: #{tpu_custom_call.1} parent=5 // pred_check_branch
        %363 = sbr.rel (%p360) target = $region60
      $region59: #{tpu_custom_call.1} parent=5 // pred_region
        %s364 = ssub.s32 %s24, 1
        %s365 = smul.u32 16, %s29
        %p366 = scmp.lt.s32.totalorder %s365, 63
        %s367 = scalar_select %p366, %s365, 63
        %s368 = smul.addr %s367, 7
        %s369 = smul.addr %s368, 8
        %s370 = scalar_lea.vmem %s0, %s369
        %p371 = pneg %p50
        %p372 = pneg %p47
        %s373 = smul.u32 16, %s29
        %p374 = scmp.lt.s32.totalorder %s373, 63
        %s375 = scalar_select %p374, %s373, 63
        %s376 = smul.addr %s375, 8
        %s377 = scalar_lea.vmem %s1, %s376
        %p378 = pneg %p76
        %p379 = pneg %p73
        %p380 = pneg %p97
        %p381 = pneg %p94
        %p382 = pneg %p118
        %p383 = pneg %p115
        %p384 = pneg %p139
        %p385 = pneg %p136
        %p386 = pneg %p160
        %p387 = pneg %p157
        %p388 = pneg %p181
        %p389 = pneg %p178
        %p390 = pneg %p202
        %p391 = pneg %p199
        %p392 = pneg %p223
        %p393 = pneg %p220
        %p394 = pneg %p244
        %p395 = pneg %p241
        %p396 = pneg %p270
        %p397 = pneg %p267
        %s398 = sand.u32 %s257, 1
        %s399 = scalar_lea.sflag [#allocation3], %s398
        %s400 = sand.u32 %s257, 1
        %s401 = smul.addr %s400, 896
        %s402 = scalar_lea.vmem [#allocation2], %s401
        %p403 = pneg %p296
        %p404 = pneg %p293
        %s405 = sand.u32 %s283, 1
        %s406 = scalar_lea.sflag [#allocation5], %s405
        %s407 = sand.u32 %s283, 1
        %s408 = smul.addr %s407, 128
        %s409 = scalar_lea.vmem [#allocation4], %s408
        %s410 = smul.u32 16, %s29
        %p411 = scmp.lt.s32.totalorder %s410, 63
        %s412 = scalar_select %p411, %s410, 63
        %s413 = smul.addr %s412, 7
        %s414 = smul.addr %s413, 8
        %s415 = scalar_lea.vmem %s0, %s414
        %s416 = smul.u32 16, %s29
        %s417 = smul.u32 16, %s29
        %p418 = scmp.lt.s32.totalorder %s417, 63
        %s419 = scalar_select %p418, %s417, 63
        %s420 = smul.addr %s419, 8
        %s421 = scalar_lea.vmem %s1, %s420
        %s422 = smul.u32 16, %s29
        %s423 = smul.u32 16, %s29
        %s424 = smul.u32 16, %s29
        %v426 = vld [vmem:[%s415] sm:$0xff]
        %v427 = vld [vmem:[%s415 + $0x8] sm:$0xff]
        %v428 = vld [vmem:[%s415 + $0x10] sm:$0xff]
        %v429 = vld [vmem:[%s415 + $0x18] sm:$0xff]
        %v430 = vld [vmem:[%s415 + $0x20] sm:$0xff]
        %v431 = vld [vmem:[%s415 + $0x28] sm:$0xff]
        %v432 = vld [vmem:[%s415 + $0x30] sm:$0xff]
        %v433 = vld [vmem:[%s415 + $0x38] sm:$0xff]
        %v434 = vld [vmem:[%s415 + $0x40] sm:$0xff]
        %v435 = vld [vmem:[%s415 + $0x48] sm:$0xff]
        %v436 = vld [vmem:[%s415 + $0x50] sm:$0xff]
        %v437 = vld [vmem:[%s415 + $0x58] sm:$0xff]
        %v438 = vld [vmem:[%s415 + $0x60] sm:$0xff]
        %v439 = vld [vmem:[%s415 + $0x68] sm:$0xff]
        %v440 = vld [vmem:[%s415 + $0x70] sm:$0xff]
        %v441 = vld [vmem:[%s415 + $0x78] sm:$0xff]
        %v442 = vld [vmem:[%s415 + $0x80] sm:$0xff]
        %v443 = vld [vmem:[%s415 + $0x88] sm:$0xff]
        %v444 = vld [vmem:[%s415 + $0x90] sm:$0xff]
        %v445 = vld [vmem:[%s415 + $0x98] sm:$0xff]
        %v446 = vld [vmem:[%s415 + $0xa0] sm:$0xff]
        %v447 = vld [vmem:[%s415 + $0xa8] sm:$0xff]
        %v448 = vld [vmem:[%s415 + $0xb0] sm:$0xff]
        %v449 = vld [vmem:[%s415 + $0xb8] sm:$0xff]
        %v450 = vld [vmem:[%s415 + $0xc0] sm:$0xff]
        %v451 = vld [vmem:[%s415 + $0xc8] sm:$0xff]
        %v452 = vld [vmem:[%s415 + $0xd0] sm:$0xff]
        %v453 = vld [vmem:[%s415 + $0xd8] sm:$0xff]
        %v454 = vld [vmem:[%s415 + $0xe0] sm:$0xff]
        %v455 = vld [vmem:[%s415 + $0xe8] sm:$0xff]
        %v456 = vld [vmem:[%s415 + $0xf0] sm:$0xff]
        %v457 = vld [vmem:[%s415 + $0xf8] sm:$0xff]
        %v458 = vld [vmem:[%s415 + $0x100] sm:$0xff]
        %v459 = vld [vmem:[%s415 + $0x108] sm:$0xff]
        %v460 = vld [vmem:[%s415 + $0x110] sm:$0xff]
        %v461 = vld [vmem:[%s415 + $0x118] sm:$0xff]
        %v462 = vld [vmem:[%s415 + $0x120] sm:$0xff]
        %v463 = vld [vmem:[%s415 + $0x128] sm:$0xff]
        %v464 = vld [vmem:[%s415 + $0x130] sm:$0xff]
        %v465 = vld [vmem:[%s415 + $0x138] sm:$0xff]
        %v466 = vld [vmem:[%s415 + $0x140] sm:$0xff]
        %v467 = vld [vmem:[%s415 + $0x148] sm:$0xff]
        %v468 = vld [vmem:[%s415 + $0x150] sm:$0xff]
        %v469 = vld [vmem:[%s415 + $0x158] sm:$0xff]
        %v470 = vld [vmem:[%s415 + $0x160] sm:$0xff]
        %v471 = vld [vmem:[%s415 + $0x168] sm:$0xff]
        %v472 = vld [vmem:[%s415 + $0x170] sm:$0xff]
        %v473 = vld [vmem:[%s415 + $0x178] sm:$0xff]
        %v474 = vld [vmem:[%s415 + $0x180] sm:$0xff]
        %v475 = vld [vmem:[%s415 + $0x188] sm:$0xff]
        %v476 = vld [vmem:[%s415 + $0x190] sm:$0xff]
        %v477 = vld [vmem:[%s415 + $0x198] sm:$0xff]
        %v478 = vld [vmem:[%s415 + $0x1a0] sm:$0xff]
        %v479 = vld [vmem:[%s415 + $0x1a8] sm:$0xff]
        %v480 = vld [vmem:[%s415 + $0x1b0] sm:$0xff]
        %v481 = vld [vmem:[%s415 + $0x1b8] sm:$0xff]
        %v482 = vld [vmem:[%s415 + $0x1c0] sm:$0xff]
        %v483 = vld [vmem:[%s415 + $0x1c8] sm:$0xff]
        %v484 = vld [vmem:[%s415 + $0x1d0] sm:$0xff]
        %v485 = vld [vmem:[%s415 + $0x1d8] sm:$0xff]
        %v486 = vld [vmem:[%s415 + $0x1e0] sm:$0xff]
        %v487 = vld [vmem:[%s415 + $0x1e8] sm:$0xff]
        %v488 = vld [vmem:[%s415 + $0x1f0] sm:$0xff]
        %v489 = vld [vmem:[%s415 + $0x1f8] sm:$0xff]
        %v490 = vld [vmem:[%s415 + $0x200] sm:$0xff]
        %v491 = vld [vmem:[%s415 + $0x208] sm:$0xff]
        %v492 = vld [vmem:[%s415 + $0x210] sm:$0xff]
        %v493 = vld [vmem:[%s415 + $0x218] sm:$0xff]
        %v494 = vld [vmem:[%s415 + $0x220] sm:$0xff]
        %v495 = vld [vmem:[%s415 + $0x228] sm:$0xff]
        %v496 = vld [vmem:[%s415 + $0x230] sm:$0xff]
        %v497 = vld [vmem:[%s415 + $0x238] sm:$0xff]
        %v498 = vld [vmem:[%s415 + $0x240] sm:$0xff]
        %v499 = vld [vmem:[%s415 + $0x248] sm:$0xff]
        %v500 = vld [vmem:[%s415 + $0x250] sm:$0xff]
        %v501 = vld [vmem:[%s415 + $0x258] sm:$0xff]
        %v502 = vld [vmem:[%s415 + $0x260] sm:$0xff]
        %v503 = vld [vmem:[%s415 + $0x268] sm:$0xff]
        %v504 = vld [vmem:[%s415 + $0x270] sm:$0xff]
        %v505 = vld [vmem:[%s415 + $0x278] sm:$0xff]
        %v506 = vld [vmem:[%s415 + $0x280] sm:$0xff]
        %v507 = vld [vmem:[%s415 + $0x288] sm:$0xff]
        %v508 = vld [vmem:[%s415 + $0x290] sm:$0xff]
        %v509 = vld [vmem:[%s415 + $0x298] sm:$0xff]
        %v510 = vld [vmem:[%s415 + $0x2a0] sm:$0xff]
        %v511 = vld [vmem:[%s415 + $0x2a8] sm:$0xff]
        %v512 = vld [vmem:[%s415 + $0x2b0] sm:$0xff]
        %v513 = vld [vmem:[%s415 + $0x2b8] sm:$0xff]
        %v514 = vld [vmem:[%s415 + $0x2c0] sm:$0xff]
        %v515 = vld [vmem:[%s415 + $0x2c8] sm:$0xff]
        %v516 = vld [vmem:[%s415 + $0x2d0] sm:$0xff]
        %v517 = vld [vmem:[%s415 + $0x2d8] sm:$0xff]
        %v518 = vld [vmem:[%s415 + $0x2e0] sm:$0xff]
        %v519 = vld [vmem:[%s415 + $0x2e8] sm:$0xff]
        %v520 = vld [vmem:[%s415 + $0x2f0] sm:$0xff]
        %v521 = vld [vmem:[%s415 + $0x2f8] sm:$0xff]
        %v522 = vld [vmem:[%s415 + $0x300] sm:$0xff]
        %v523 = vld [vmem:[%s415 + $0x308] sm:$0xff]
        %v524 = vld [vmem:[%s415 + $0x310] sm:$0xff]
        %v525 = vld [vmem:[%s415 + $0x318] sm:$0xff]
        %v526 = vld [vmem:[%s415 + $0x320] sm:$0xff]
        %v527 = vld [vmem:[%s415 + $0x328] sm:$0xff]
        %v528 = vld [vmem:[%s415 + $0x330] sm:$0xff]
        %v529 = vld [vmem:[%s415 + $0x338] sm:$0xff]
        %v530 = vld [vmem:[%s415 + $0x340] sm:$0xff]
        %v531 = vld [vmem:[%s415 + $0x348] sm:$0xff]
        %v532 = vld [vmem:[%s415 + $0x350] sm:$0xff]
        %v533 = vld [vmem:[%s415 + $0x358] sm:$0xff]
        %v534 = vld [vmem:[%s415 + $0x360] sm:$0xff]
        %v535 = vld [vmem:[%s415 + $0x368] sm:$0xff]
        %v536 = vld [vmem:[%s415 + $0x370] sm:$0xff]
        %v537 = vld [vmem:[%s415 + $0x378] sm:$0xff]
        %v538 = vld [vmem:[%s421] sm:$0xff]
        %v539 = vld [vmem:[%s421 + $0x8] sm:$0xff]
        %v540 = vld [vmem:[%s421 + $0x10] sm:$0xff]
        %v541 = vld [vmem:[%s421 + $0x18] sm:$0xff]
        %v542 = vld [vmem:[%s421 + $0x20] sm:$0xff]
        %v543 = vld [vmem:[%s421 + $0x28] sm:$0xff]
        %v544 = vld [vmem:[%s421 + $0x30] sm:$0xff]
        %v545 = vld [vmem:[%s421 + $0x38] sm:$0xff]
        %v546 = vld [vmem:[%s421 + $0x40] sm:$0xff]
        %v547 = vld [vmem:[%s421 + $0x48] sm:$0xff]
        %v548 = vld [vmem:[%s421 + $0x50] sm:$0xff]
        %v549 = vld [vmem:[%s421 + $0x58] sm:$0xff]
        %v550 = vld [vmem:[%s421 + $0x60] sm:$0xff]
        %v551 = vld [vmem:[%s421 + $0x68] sm:$0xff]
        %v552 = vld [vmem:[%s421 + $0x70] sm:$0xff]
        %v553 = vld [vmem:[%s421 + $0x78] sm:$0xff]
        %v554 = vpack.c.bf16 %v433, %v426
        %v555 = vpack.c.bf16 %v434, %v427
        %v556 = vpack.c.bf16 %v435, %v428
        %v557 = vpack.c.bf16 %v436, %v429
        %v558 = vpack.c.bf16 %v437, %v430
        %v559 = vpack.c.bf16 %v438, %v431
        %v560 = vpack.c.bf16 %v439, %v432
        %v561 = vpack.c.bf16 %v447, %v440
        %v562 = vpack.c.bf16 %v448, %v441
        %v563 = vpack.c.bf16 %v449, %v442
        %v564 = vpack.c.bf16 %v450, %v443
        %v565 = vpack.c.bf16 %v451, %v444
        %v566 = vpack.c.bf16 %v452, %v445
        %v567 = vpack.c.bf16 %v453, %v446
        %v568 = vpack.c.bf16 %v461, %v454
        %v569 = vpack.c.bf16 %v462, %v455
        %v570 = vpack.c.bf16 %v463, %v456
        %v571 = vpack.c.bf16 %v464, %v457
        %v572 = vpack.c.bf16 %v465, %v458
        %v573 = vpack.c.bf16 %v466, %v459
        %v574 = vpack.c.bf16 %v467, %v460
        %v575 = vpack.c.bf16 %v475, %v468
        %v576 = vpack.c.bf16 %v476, %v469
        %v577 = vpack.c.bf16 %v477, %v470
        %v578 = vpack.c.bf16 %v478, %v471
        %v579 = vpack.c.bf16 %v479, %v472
        %v580 = vpack.c.bf16 %v480, %v473
        %v581 = vpack.c.bf16 %v481, %v474
        %v582 = vpack.c.bf16 %v489, %v482
        %v583 = vpack.c.bf16 %v490, %v483
        %v584 = vpack.c.bf16 %v491, %v484
        %v585 = vpack.c.bf16 %v492, %v485
        %v586 = vpack.c.bf16 %v493, %v486
        %v587 = vpack.c.bf16 %v494, %v487
        %v588 = vpack.c.bf16 %v495, %v488
        %v589 = vpack.c.bf16 %v503, %v496
        %v590 = vpack.c.bf16 %v504, %v497
        %v591 = vpack.c.bf16 %v505, %v498
        %v592 = vpack.c.bf16 %v506, %v499
        %v593 = vpack.c.bf16 %v507, %v500
        %v594 = vpack.c.bf16 %v508, %v501
        %v595 = vpack.c.bf16 %v509, %v502
        %v596 = vpack.c.bf16 %v517, %v510
        %v597 = vpack.c.bf16 %v518, %v511
        %v598 = vpack.c.bf16 %v519, %v512
        %v599 = vpack.c.bf16 %v520, %v513
        %v600 = vpack.c.bf16 %v521, %v514
        %v601 = vpack.c.bf16 %v522, %v515
        %v602 = vpack.c.bf16 %v523, %v516
        %v603 = vpack.c.bf16 %v531, %v524
        %v604 = vpack.c.bf16 %v532, %v525
        %v605 = vpack.c.bf16 %v533, %v526
        %v606 = vpack.c.bf16 %v534, %v527
        %v607 = vpack.c.bf16 %v535, %v528
        %v608 = vpack.c.bf16 %v536, %v529
        %v609 = vpack.c.bf16 %v537, %v530
        %v610 = vld [vmem:[%s2] sm:$0xff]
        %v611 = vld [vmem:[%s2 + $0x8] sm:$0xff]
        %v612 = vld [vmem:[%s2 + $0x10] sm:$0xff]
        %v613 = vld [vmem:[%s2 + $0x18] sm:$0xff]
        %v614 = vld [vmem:[%s2 + $0x20] sm:$0xff]
        %v615 = vld [vmem:[%s2 + $0x28] sm:$0xff]
        %v616 = vld [vmem:[%s2 + $0x30] sm:$0xff]
        %v617 = vld [vmem:[%s2 + $0x38] sm:$0xff]
        %v618 = vld [vmem:[%s2 + $0x40] sm:$0xff]
        %v619 = vld [vmem:[%s2 + $0x48] sm:$0xff]
        %v620 = vld [vmem:[%s2 + $0x50] sm:$0xff]
        %v621 = vld [vmem:[%s2 + $0x58] sm:$0xff]
        %v622 = vld [vmem:[%s2 + $0x60] sm:$0xff]
        %v623 = vld [vmem:[%s2 + $0x68] sm:$0xff]
        %v624 = vld [vmem:[%s2 + $0x70] sm:$0xff]
        %v625 = vld [vmem:[%s2 + $0x78] sm:$0xff]
        %v626 = vld [vmem:[%s2 + $0x80] sm:$0xff]
        %v627 = vld [vmem:[%s2 + $0x88] sm:$0xff]
        %v628 = vld [vmem:[%s2 + $0x90] sm:$0xff]
        %v629 = vld [vmem:[%s2 + $0x98] sm:$0xff]
        %v630 = vld [vmem:[%s2 + $0xa0] sm:$0xff]
        %v631 = vld [vmem:[%s2 + $0xa8] sm:$0xff]
        %v632 = vld [vmem:[%s2 + $0xb0] sm:$0xff]
        %v633 = vld [vmem:[%s2 + $0xb8] sm:$0xff]
        %v634 = vld [vmem:[%s2 + $0xc0] sm:$0xff]
        %v635 = vld [vmem:[%s2 + $0xc8] sm:$0xff]
        %v636 = vld [vmem:[%s2 + $0xd0] sm:$0xff]
        %v637 = vld [vmem:[%s2 + $0xd8] sm:$0xff]
        %v638 = vld [vmem:[%s2 + $0xe0] sm:$0xff]
        %v639 = vld [vmem:[%s2 + $0xe8] sm:$0xff]
        %v640 = vld [vmem:[%s2 + $0xf0] sm:$0xff]
        %v641 = vld [vmem:[%s2 + $0xf8] sm:$0xff]
        %v642 = vld [vmem:[%s2 + $0x100] sm:$0xff]
        %v643 = vld [vmem:[%s2 + $0x108] sm:$0xff]
        %v644 = vld [vmem:[%s2 + $0x110] sm:$0xff]
        %v645 = vld [vmem:[%s2 + $0x118] sm:$0xff]
        %v646 = vld [vmem:[%s2 + $0x120] sm:$0xff]
        %v647 = vld [vmem:[%s2 + $0x128] sm:$0xff]
        %v648 = vld [vmem:[%s2 + $0x130] sm:$0xff]
        %v649 = vld [vmem:[%s2 + $0x138] sm:$0xff]
        %v650 = vld [vmem:[%s2 + $0x140] sm:$0xff]
        %v651 = vld [vmem:[%s2 + $0x148] sm:$0xff]
        %v652 = vld [vmem:[%s2 + $0x150] sm:$0xff]
        %v653 = vld [vmem:[%s2 + $0x158] sm:$0xff]
        %v654 = vld [vmem:[%s2 + $0x160] sm:$0xff]
        %v655 = vld [vmem:[%s2 + $0x168] sm:$0xff]
        %v656 = vld [vmem:[%s2 + $0x170] sm:$0xff]
        %v657 = vld [vmem:[%s2 + $0x178] sm:$0xff]
        %v658 = vld [vmem:[%s2 + $0x180] sm:$0xff]
        %v659 = vld [vmem:[%s2 + $0x188] sm:$0xff]
        %v660 = vld [vmem:[%s2 + $0x190] sm:$0xff]
        %v661 = vld [vmem:[%s2 + $0x198] sm:$0xff]
        %v662 = vld [vmem:[%s2 + $0x1a0] sm:$0xff]
        %v663 = vld [vmem:[%s2 + $0x1a8] sm:$0xff]
        %v664 = vld [vmem:[%s2 + $0x1b0] sm:$0xff]
        %v665 = vld [vmem:[%s2 + $0x1b8] sm:$0xff]
        %v666 = vld [vmem:[%s2 + $0x1c0] sm:$0xff]
        %v667 = vld [vmem:[%s2 + $0x1c8] sm:$0xff]
        %v668 = vld [vmem:[%s2 + $0x1d0] sm:$0xff]
        %v669 = vld [vmem:[%s2 + $0x1d8] sm:$0xff]
        %v670 = vld [vmem:[%s2 + $0x1e0] sm:$0xff]
        %v671 = vld [vmem:[%s2 + $0x1e8] sm:$0xff]
        %v672 = vld [vmem:[%s2 + $0x1f0] sm:$0xff]
        %v673 = vld [vmem:[%s2 + $0x1f8] sm:$0xff]
        %v674 = vld [vmem:[%s2 + $0x200] sm:$0xff]
        %v675 = vld [vmem:[%s2 + $0x208] sm:$0xff]
        %v676 = vld [vmem:[%s2 + $0x210] sm:$0xff]
        %v677 = vld [vmem:[%s2 + $0x218] sm:$0xff]
        %v678 = vld [vmem:[%s2 + $0x220] sm:$0xff]
        %v679 = vld [vmem:[%s2 + $0x228] sm:$0xff]
        %v680 = vld [vmem:[%s2 + $0x230] sm:$0xff]
        %v681 = vld [vmem:[%s2 + $0x238] sm:$0xff]
        %v682 = vld [vmem:[%s2 + $0x240] sm:$0xff]
        %v683 = vld [vmem:[%s2 + $0x248] sm:$0xff]
        %v684 = vld [vmem:[%s2 + $0x250] sm:$0xff]
        %v685 = vld [vmem:[%s2 + $0x258] sm:$0xff]
        %v686 = vld [vmem:[%s2 + $0x260] sm:$0xff]
        %v687 = vld [vmem:[%s2 + $0x268] sm:$0xff]
        %v688 = vld [vmem:[%s2 + $0x270] sm:$0xff]
        %v689 = vld [vmem:[%s2 + $0x278] sm:$0xff]
        %v690 = vld [vmem:[%s2 + $0x280] sm:$0xff]
        %v691 = vld [vmem:[%s2 + $0x288] sm:$0xff]
        %v692 = vld [vmem:[%s2 + $0x290] sm:$0xff]
        %v693 = vld [vmem:[%s2 + $0x298] sm:$0xff]
        %v694 = vld [vmem:[%s2 + $0x2a0] sm:$0xff]
        %v695 = vld [vmem:[%s2 + $0x2a8] sm:$0xff]
        %v696 = vld [vmem:[%s2 + $0x2b0] sm:$0xff]
        %v697 = vld [vmem:[%s2 + $0x2b8] sm:$0xff]
        %v698 = vld [vmem:[%s2 + $0x2c0] sm:$0xff]
        %v699 = vld [vmem:[%s2 + $0x2c8] sm:$0xff]
        %v700 = vld [vmem:[%s2 + $0x2d0] sm:$0xff]
        %v701 = vld [vmem:[%s2 + $0x2d8] sm:$0xff]
        %v702 = vld [vmem:[%s2 + $0x2e0] sm:$0xff]
        %v703 = vld [vmem:[%s2 + $0x2e8] sm:$0xff]
        %v704 = vld [vmem:[%s2 + $0x2f0] sm:$0xff]
        %v705 = vld [vmem:[%s2 + $0x2f8] sm:$0xff]
        %v706 = vld [vmem:[%s2 + $0x300] sm:$0xff]
        %v707 = vld [vmem:[%s2 + $0x308] sm:$0xff]
        %v708 = vld [vmem:[%s2 + $0x310] sm:$0xff]
        %v709 = vld [vmem:[%s2 + $0x318] sm:$0xff]
        %v710 = vld [vmem:[%s2 + $0x320] sm:$0xff]
        %v711 = vld [vmem:[%s2 + $0x328] sm:$0xff]
        %v712 = vld [vmem:[%s2 + $0x330] sm:$0xff]
        %v713 = vld [vmem:[%s2 + $0x338] sm:$0xff]
        %v714 = vld [vmem:[%s2 + $0x340] sm:$0xff]
        %v715 = vld [vmem:[%s2 + $0x348] sm:$0xff]
        %v716 = vld [vmem:[%s2 + $0x350] sm:$0xff]
        %v717 = vld [vmem:[%s2 + $0x358] sm:$0xff]
        %v718 = vld [vmem:[%s2 + $0x360] sm:$0xff]
        %v719 = vld [vmem:[%s2 + $0x368] sm:$0xff]
        %v720 = vld [vmem:[%s2 + $0x370] sm:$0xff]
        %v721 = vld [vmem:[%s2 + $0x378] sm:$0xff]
        %v722 = vld [vmem:[%s2 + $0x380] sm:$0xff]
        %v723 = vld [vmem:[%s2 + $0x388] sm:$0xff]
        %v724 = vld [vmem:[%s2 + $0x390] sm:$0xff]
        %v725 = vld [vmem:[%s2 + $0x398] sm:$0xff]
        %v726 = vld [vmem:[%s2 + $0x3a0] sm:$0xff]
        %v727 = vld [vmem:[%s2 + $0x3a8] sm:$0xff]
        %v728 = vld [vmem:[%s2 + $0x3b0] sm:$0xff]
        %v729 = vld [vmem:[%s2 + $0x3b8] sm:$0xff]
        %v730 = vld [vmem:[%s2 + $0x3c0] sm:$0xff]
        %v731 = vld [vmem:[%s2 + $0x3c8] sm:$0xff]
        %v732 = vld [vmem:[%s2 + $0x3d0] sm:$0xff]
        %v733 = vld [vmem:[%s2 + $0x3d8] sm:$0xff]
        %v734 = vld [vmem:[%s2 + $0x3e0] sm:$0xff]
        %v735 = vld [vmem:[%s2 + $0x3e8] sm:$0xff]
        %v736 = vld [vmem:[%s2 + $0x3f0] sm:$0xff]
        %v737 = vld [vmem:[%s2 + $0x3f8] sm:$0xff]
        %v738 = vld [vmem:[%s2 + $0x400] sm:$0xff]
        %v739 = vld [vmem:[%s2 + $0x408] sm:$0xff]
        %v740 = vld [vmem:[%s2 + $0x410] sm:$0xff]
        %v741 = vld [vmem:[%s2 + $0x418] sm:$0xff]
        %v742 = vld [vmem:[%s2 + $0x420] sm:$0xff]
        %v743 = vld [vmem:[%s2 + $0x428] sm:$0xff]
        %v744 = vld [vmem:[%s2 + $0x430] sm:$0xff]
        %v745 = vld [vmem:[%s2 + $0x438] sm:$0xff]
        %v746 = vld [vmem:[%s2 + $0x440] sm:$0xff]
        %v747 = vld [vmem:[%s2 + $0x448] sm:$0xff]
        %v748 = vld [vmem:[%s2 + $0x450] sm:$0xff]
        %v749 = vld [vmem:[%s2 + $0x458] sm:$0xff]
        %v750 = vld [vmem:[%s2 + $0x460] sm:$0xff]
        %v751 = vld [vmem:[%s2 + $0x468] sm:$0xff]
        %v752 = vld [vmem:[%s2 + $0x470] sm:$0xff]
        %v753 = vld [vmem:[%s2 + $0x478] sm:$0xff]
        %v754 = vld [vmem:[%s2 + $0x480] sm:$0xff]
        %v755 = vld [vmem:[%s2 + $0x488] sm:$0xff]
        %v756 = vld [vmem:[%s2 + $0x490] sm:$0xff]
        %v757 = vld [vmem:[%s2 + $0x498] sm:$0xff]
        %v758 = vld [vmem:[%s2 + $0x4a0] sm:$0xff]
        %v759 = vld [vmem:[%s2 + $0x4a8] sm:$0xff]
        %v760 = vld [vmem:[%s2 + $0x4b0] sm:$0xff]
        %v761 = vld [vmem:[%s2 + $0x4b8] sm:$0xff]
        %v762 = vld [vmem:[%s2 + $0x4c0] sm:$0xff]
        %v763 = vld [vmem:[%s2 + $0x4c8] sm:$0xff]
        %v764 = vld [vmem:[%s2 + $0x4d0] sm:$0xff]
        %v765 = vld [vmem:[%s2 + $0x4d8] sm:$0xff]
        %v766 = vld [vmem:[%s2 + $0x4e0] sm:$0xff]
        %v767 = vld [vmem:[%s2 + $0x4e8] sm:$0xff]
        %v768 = vld [vmem:[%s2 + $0x4f0] sm:$0xff]
        %v769 = vld [vmem:[%s2 + $0x4f8] sm:$0xff]
        %v770 = vld [vmem:[%s2 + $0x500] sm:$0xff]
        %v771 = vld [vmem:[%s2 + $0x508] sm:$0xff]
        %v772 = vld [vmem:[%s2 + $0x510] sm:$0xff]
        %v773 = vld [vmem:[%s2 + $0x518] sm:$0xff]
        %v774 = vld [vmem:[%s2 + $0x520] sm:$0xff]
        %v775 = vld [vmem:[%s2 + $0x528] sm:$0xff]
        %v776 = vld [vmem:[%s2 + $0x530] sm:$0xff]
        %v777 = vld [vmem:[%s2 + $0x538] sm:$0xff]
        %v778 = vld [vmem:[%s2 + $0x540] sm:$0xff]
        %v779 = vld [vmem:[%s2 + $0x548] sm:$0xff]
        %v780 = vld [vmem:[%s2 + $0x550] sm:$0xff]
        %v781 = vld [vmem:[%s2 + $0x558] sm:$0xff]
        %v782 = vld [vmem:[%s2 + $0x560] sm:$0xff]
        %v783 = vld [vmem:[%s2 + $0x568] sm:$0xff]
        %v784 = vld [vmem:[%s2 + $0x570] sm:$0xff]
        %v785 = vld [vmem:[%s2 + $0x578] sm:$0xff]
        %v786 = vld [vmem:[%s2 + $0x580] sm:$0xff]
        %v787 = vld [vmem:[%s2 + $0x588] sm:$0xff]
        %v788 = vld [vmem:[%s2 + $0x590] sm:$0xff]
        %v789 = vld [vmem:[%s2 + $0x598] sm:$0xff]
        %v790 = vld [vmem:[%s2 + $0x5a0] sm:$0xff]
        %v791 = vld [vmem:[%s2 + $0x5a8] sm:$0xff]
        %v792 = vld [vmem:[%s2 + $0x5b0] sm:$0xff]
        %v793 = vld [vmem:[%s2 + $0x5b8] sm:$0xff]
        %v794 = vld [vmem:[%s2 + $0x5c0] sm:$0xff]
        %v795 = vld [vmem:[%s2 + $0x5c8] sm:$0xff]
        %v796 = vld [vmem:[%s2 + $0x5d0] sm:$0xff]
        %v797 = vld [vmem:[%s2 + $0x5d8] sm:$0xff]
        %v798 = vld [vmem:[%s2 + $0x5e0] sm:$0xff]
        %v799 = vld [vmem:[%s2 + $0x5e8] sm:$0xff]
        %v800 = vld [vmem:[%s2 + $0x5f0] sm:$0xff]
        %v801 = vld [vmem:[%s2 + $0x5f8] sm:$0xff]
        %v802 = vld [vmem:[%s2 + $0x600] sm:$0xff]
        %v803 = vld [vmem:[%s2 + $0x608] sm:$0xff]
        %v804 = vld [vmem:[%s2 + $0x610] sm:$0xff]
        %v805 = vld [vmem:[%s2 + $0x618] sm:$0xff]
        %v806 = vld [vmem:[%s3] sm:$0xf]
        %v808 = vlaneseq
        %v809 = vshrl.u32 %v808, 7
        %v810 = vsub.s32 0, %v809
        %v811 = vrot.slane %v806, %v810
        %v812 = vlaneseq
        %v813 = vshrl.u32 %v812, 7
        %v814 = vsub.s32 1, %v813
        %v815 = vrot.slane %v806, %v814
        %v816 = vlaneseq
        %v817 = vshrl.u32 %v816, 7
        %v818 = vsub.s32 2, %v817
        %v819 = vrot.slane %v806, %v818
        %v820 = vlaneseq
        %v821 = vshrl.u32 %v820, 7
        %v822 = vsub.s32 3, %v821
        %v823 = vrot.slane %v806, %v822
        %v1024 = vunpack.c.l.b16 %v610
        %v1025 = vunpack.c.h.b16 %v610
        %v1026 = vunpack.c.l.b16 %v611
        %v1027 = vunpack.c.h.b16 %v611
        %v1028 = vunpack.c.l.b16 %v612
        %v1029 = vunpack.c.h.b16 %v612
        %v1030 = vunpack.c.l.b16 %v613
        %v1031 = vunpack.c.h.b16 %v613
        %v1032 = vunpack.c.l.b16 %v614
        %v1033 = vunpack.c.h.b16 %v614
        %v1034 = vunpack.c.l.b16 %v615
        %v1035 = vunpack.c.h.b16 %v615
        %v1036 = vunpack.c.l.b16 %v616
        %v1037 = vunpack.c.h.b16 %v616
        %v1038 = vunpack.c.l.b16 %v617
        %v1039 = vunpack.c.h.b16 %v617
        %v1040 = vunpack.c.l.b16 %v618
        %v1041 = vunpack.c.h.b16 %v618
        %v1042 = vunpack.c.l.b16 %v619
        %v1043 = vunpack.c.h.b16 %v619
        %v1044 = vunpack.c.l.b16 %v620
        %v1045 = vunpack.c.h.b16 %v620
        %v1046 = vunpack.c.l.b16 %v621
        %v1047 = vunpack.c.h.b16 %v621
        %v1048 = vunpack.c.l.b16 %v622
        %v1049 = vunpack.c.h.b16 %v622
        %v1050 = vunpack.c.l.b16 %v623
        %v1051 = vunpack.c.h.b16 %v623
        %v1052 = vunpack.c.l.b16 %v624
        %v1053 = vunpack.c.h.b16 %v624
        %v1054 = vunpack.c.l.b16 %v625
        %v1055 = vunpack.c.h.b16 %v625
        %v1056 = vunpack.c.l.b16 %v626
        %v1057 = vunpack.c.h.b16 %v626
        %v1058 = vunpack.c.l.b16 %v627
        %v1059 = vunpack.c.h.b16 %v627
        %v1060 = vunpack.c.l.b16 %v628
        %v1061 = vunpack.c.h.b16 %v628
        %v1062 = vunpack.c.l.b16 %v629
        %v1063 = vunpack.c.h.b16 %v629
        %v1064 = vunpack.c.l.b16 %v630
        %v1065 = vunpack.c.h.b16 %v630
        %v1066 = vunpack.c.l.b16 %v631
        %v1067 = vunpack.c.h.b16 %v631
        %v1068 = vunpack.c.l.b16 %v632
        %v1069 = vunpack.c.h.b16 %v632
        %v1070 = vunpack.c.l.b16 %v633
        %v1071 = vunpack.c.h.b16 %v633
        %v1072 = vunpack.c.l.b16 %v634
        %v1073 = vunpack.c.h.b16 %v634
        %v1074 = vunpack.c.l.b16 %v635
        %v1075 = vunpack.c.h.b16 %v635
        %v1076 = vunpack.c.l.b16 %v636
        %v1077 = vunpack.c.h.b16 %v636
        %v1078 = vunpack.c.l.b16 %v637
        %v1079 = vunpack.c.h.b16 %v637
        %v1080 = vunpack.c.l.b16 %v638
        %v1081 = vunpack.c.h.b16 %v638
        %v1082 = vunpack.c.l.b16 %v639
        %v1083 = vunpack.c.h.b16 %v639
        %v1084 = vunpack.c.l.b16 %v640
        %v1085 = vunpack.c.h.b16 %v640
        %v1086 = vunpack.c.l.b16 %v641
        %v1087 = vunpack.c.h.b16 %v641
        %v1088 = vunpack.c.l.b16 %v642
        %v1089 = vunpack.c.h.b16 %v642
        %v1090 = vunpack.c.l.b16 %v643
        %v1091 = vunpack.c.h.b16 %v643
        %v1092 = vunpack.c.l.b16 %v644
        %v1093 = vunpack.c.h.b16 %v644
        %v1094 = vunpack.c.l.b16 %v645
        %v1095 = vunpack.c.h.b16 %v645
        %v1096 = vunpack.c.l.b16 %v646
        %v1097 = vunpack.c.h.b16 %v646
        %v1098 = vunpack.c.l.b16 %v647
        %v1099 = vunpack.c.h.b16 %v647
        %v1100 = vunpack.c.l.b16 %v648
        %v1101 = vunpack.c.h.b16 %v648
        %v1102 = vunpack.c.l.b16 %v649
        %v1103 = vunpack.c.h.b16 %v649
        %v1104 = vunpack.c.l.b16 %v650
        %v1105 = vunpack.c.h.b16 %v650
        %v1106 = vunpack.c.l.b16 %v651
        %v1107 = vunpack.c.h.b16 %v651
        %v1108 = vunpack.c.l.b16 %v652
        %v1109 = vunpack.c.h.b16 %v652
        %v1110 = vunpack.c.l.b16 %v653
        %v1111 = vunpack.c.h.b16 %v653
        %v1112 = vunpack.c.l.b16 %v654
        %v1113 = vunpack.c.h.b16 %v654
        %v1114 = vunpack.c.l.b16 %v655
        %v1115 = vunpack.c.h.b16 %v655
        %v1116 = vunpack.c.l.b16 %v656
        %v1117 = vunpack.c.h.b16 %v656
        %v1118 = vunpack.c.l.b16 %v657
        %v1119 = vunpack.c.h.b16 %v657
        %v1120 = vunpack.c.l.b16 %v658
        %v1121 = vunpack.c.h.b16 %v658
        %v1122 = vunpack.c.l.b16 %v659
        %v1123 = vunpack.c.h.b16 %v659
        %v1124 = vunpack.c.l.b16 %v660
        %v1125 = vunpack.c.h.b16 %v660
        %v1126 = vunpack.c.l.b16 %v661
        %v1127 = vunpack.c.h.b16 %v661
        %v1128 = vunpack.c.l.b16 %v662
        %v1129 = vunpack.c.h.b16 %v662
        %v1130 = vunpack.c.l.b16 %v663
        %v1131 = vunpack.c.h.b16 %v663
        %v1132 = vunpack.c.l.b16 %v664
        %v1133 = vunpack.c.h.b16 %v664
        %v1134 = vunpack.c.l.b16 %v665
        %v1135 = vunpack.c.h.b16 %v665
        %v1136 = vunpack.c.l.b16 %v666
        %v1137 = vunpack.c.h.b16 %v666
        %v1138 = vunpack.c.l.b16 %v667
        %v1139 = vunpack.c.h.b16 %v667
        %v1140 = vunpack.c.l.b16 %v668
        %v1141 = vunpack.c.h.b16 %v668
        %v1142 = vunpack.c.l.b16 %v669
        %v1143 = vunpack.c.h.b16 %v669
        %v1144 = vunpack.c.l.b16 %v670
        %v1145 = vunpack.c.h.b16 %v670
        %v1146 = vunpack.c.l.b16 %v671
        %v1147 = vunpack.c.h.b16 %v671
        %v1148 = vunpack.c.l.b16 %v672
        %v1149 = vunpack.c.h.b16 %v672
        %v1150 = vunpack.c.l.b16 %v673
        %v1151 = vunpack.c.h.b16 %v673
        %v1152 = vunpack.c.l.b16 %v674
        %v1153 = vunpack.c.h.b16 %v674
        %v1154 = vunpack.c.l.b16 %v675
        %v1155 = vunpack.c.h.b16 %v675
        %v1156 = vunpack.c.l.b16 %v676
        %v1157 = vunpack.c.h.b16 %v676
        %v1158 = vunpack.c.l.b16 %v677
        %v1159 = vunpack.c.h.b16 %v677
        %v1160 = vunpack.c.l.b16 %v678
        %v1161 = vunpack.c.h.b16 %v678
        %v1162 = vunpack.c.l.b16 %v679
        %v1163 = vunpack.c.h.b16 %v679
        %v1164 = vunpack.c.l.b16 %v680
        %v1165 = vunpack.c.h.b16 %v680
        %v1166 = vunpack.c.l.b16 %v681
        %v1167 = vunpack.c.h.b16 %v681
        %v1168 = vunpack.c.l.b16 %v682
        %v1169 = vunpack.c.h.b16 %v682
        %v1170 = vunpack.c.l.b16 %v683
        %v1171 = vunpack.c.h.b16 %v683
        %v1172 = vunpack.c.l.b16 %v684
        %v1173 = vunpack.c.h.b16 %v684
        %v1174 = vunpack.c.l.b16 %v685
        %v1175 = vunpack.c.h.b16 %v685
        %v1176 = vunpack.c.l.b16 %v686
        %v1177 = vunpack.c.h.b16 %v686
        %v1178 = vunpack.c.l.b16 %v687
        %v1179 = vunpack.c.h.b16 %v687
        %v1180 = vunpack.c.l.b16 %v688
        %v1181 = vunpack.c.h.b16 %v688
        %v1182 = vunpack.c.l.b16 %v689
        %v1183 = vunpack.c.h.b16 %v689
        %v1184 = vunpack.c.l.b16 %v690
        %v1185 = vunpack.c.h.b16 %v690
        %v1186 = vunpack.c.l.b16 %v691
        %v1187 = vunpack.c.h.b16 %v691
        %v1188 = vunpack.c.l.b16 %v692
        %v1189 = vunpack.c.h.b16 %v692
        %v1190 = vunpack.c.l.b16 %v693
        %v1191 = vunpack.c.h.b16 %v693
        %v1192 = vunpack.c.l.b16 %v694
        %v1193 = vunpack.c.h.b16 %v694
        %v1194 = vunpack.c.l.b16 %v695
        %v1195 = vunpack.c.h.b16 %v695
        %v1196 = vunpack.c.l.b16 %v696
        %v1197 = vunpack.c.h.b16 %v696
        %v1198 = vunpack.c.l.b16 %v697
        %v1199 = vunpack.c.h.b16 %v697
        %v1200 = vunpack.c.l.b16 %v698
        %v1201 = vunpack.c.h.b16 %v698
        %v1202 = vunpack.c.l.b16 %v699
        %v1203 = vunpack.c.h.b16 %v699
        %v1204 = vunpack.c.l.b16 %v700
        %v1205 = vunpack.c.h.b16 %v700
        %v1206 = vunpack.c.l.b16 %v701
        %v1207 = vunpack.c.h.b16 %v701
        %v1208 = vunpack.c.l.b16 %v702
        %v1209 = vunpack.c.h.b16 %v702
        %v1210 = vunpack.c.l.b16 %v703
        %v1211 = vunpack.c.h.b16 %v703
        %v1212 = vunpack.c.l.b16 %v704
        %v1213 = vunpack.c.h.b16 %v704
        %v1214 = vunpack.c.l.b16 %v705
        %v1215 = vunpack.c.h.b16 %v705
        %v1216 = vunpack.c.l.b16 %v706
        %v1217 = vunpack.c.h.b16 %v706
        %v1218 = vunpack.c.l.b16 %v707
        %v1219 = vunpack.c.h.b16 %v707
        %v1220 = vunpack.c.l.b16 %v708
        %v1221 = vunpack.c.h.b16 %v708
        %v1222 = vunpack.c.l.b16 %v709
        %v1223 = vunpack.c.h.b16 %v709
        %v1224 = vunpack.c.l.b16 %v710
        %v1225 = vunpack.c.h.b16 %v710
        %v1226 = vunpack.c.l.b16 %v711
        %v1227 = vunpack.c.h.b16 %v711
        %v1228 = vunpack.c.l.b16 %v712
        %v1229 = vunpack.c.h.b16 %v712
        %v1230 = vunpack.c.l.b16 %v713
        %v1231 = vunpack.c.h.b16 %v713
        %v1232 = vunpack.c.l.b16 %v714
        %v1233 = vunpack.c.h.b16 %v714
        %v1234 = vunpack.c.l.b16 %v715
        %v1235 = vunpack.c.h.b16 %v715
        %v1236 = vunpack.c.l.b16 %v716
        %v1237 = vunpack.c.h.b16 %v716
        %v1238 = vunpack.c.l.b16 %v717
        %v1239 = vunpack.c.h.b16 %v717
        %v1240 = vunpack.c.l.b16 %v718
        %v1241 = vunpack.c.h.b16 %v718
        %v1242 = vunpack.c.l.b16 %v719
        %v1243 = vunpack.c.h.b16 %v719
        %v1244 = vunpack.c.l.b16 %v720
        %v1245 = vunpack.c.h.b16 %v720
        %v1246 = vunpack.c.l.b16 %v721
        %v1247 = vunpack.c.h.b16 %v721
        %v1248 = vunpack.c.l.b16 %v722
        %v1249 = vunpack.c.h.b16 %v722
        %v1250 = vunpack.c.l.b16 %v723
        %v1251 = vunpack.c.h.b16 %v723
        %v1252 = vunpack.c.l.b16 %v724
        %v1253 = vunpack.c.h.b16 %v724
        %v1254 = vunpack.c.l.b16 %v725
        %v1255 = vunpack.c.h.b16 %v725
        %v1256 = vunpack.c.l.b16 %v726
        %v1257 = vunpack.c.h.b16 %v726
        %v1258 = vunpack.c.l.b16 %v727
        %v1259 = vunpack.c.h.b16 %v727
        %v1260 = vunpack.c.l.b16 %v728
        %v1261 = vunpack.c.h.b16 %v728
        %v1262 = vunpack.c.l.b16 %v729
        %v1263 = vunpack.c.h.b16 %v729
        %v1264 = vunpack.c.l.b16 %v730
        %v1265 = vunpack.c.h.b16 %v730
        %v1266 = vunpack.c.l.b16 %v731
        %v1267 = vunpack.c.h.b16 %v731
        %v1268 = vunpack.c.l.b16 %v732
        %v1269 = vunpack.c.h.b16 %v732
        %v1270 = vunpack.c.l.b16 %v733
        %v1271 = vunpack.c.h.b16 %v733
        %v1272 = vunpack.c.l.b16 %v734
        %v1273 = vunpack.c.h.b16 %v734
        %v1274 = vunpack.c.l.b16 %v735
        %v1275 = vunpack.c.h.b16 %v735
        %v1276 = vunpack.c.l.b16 %v736
        %v1277 = vunpack.c.h.b16 %v736
        %v1278 = vunpack.c.l.b16 %v737
        %v1279 = vunpack.c.h.b16 %v737
        %v1280 = vunpack.c.l.b16 %v738
        %v1281 = vunpack.c.h.b16 %v738
        %v1282 = vunpack.c.l.b16 %v739
        %v1283 = vunpack.c.h.b16 %v739
        %v1284 = vunpack.c.l.b16 %v740
        %v1285 = vunpack.c.h.b16 %v740
        %v1286 = vunpack.c.l.b16 %v741
        %v1287 = vunpack.c.h.b16 %v741
        %v1288 = vunpack.c.l.b16 %v742
        %v1289 = vunpack.c.h.b16 %v742
        %v1290 = vunpack.c.l.b16 %v743
        %v1291 = vunpack.c.h.b16 %v743
        %v1292 = vunpack.c.l.b16 %v744
        %v1293 = vunpack.c.h.b16 %v744
        %v1294 = vunpack.c.l.b16 %v745
        %v1295 = vunpack.c.h.b16 %v745
        %v1296 = vunpack.c.l.b16 %v746
        %v1297 = vunpack.c.h.b16 %v746
        %v1298 = vunpack.c.l.b16 %v747
        %v1299 = vunpack.c.h.b16 %v747
        %v1300 = vunpack.c.l.b16 %v748
        %v1301 = vunpack.c.h.b16 %v748
        %v1302 = vunpack.c.l.b16 %v749
        %v1303 = vunpack.c.h.b16 %v749
        %v1304 = vunpack.c.l.b16 %v750
        %v1305 = vunpack.c.h.b16 %v750
        %v1306 = vunpack.c.l.b16 %v751
        %v1307 = vunpack.c.h.b16 %v751
        %v1308 = vunpack.c.l.b16 %v752
        %v1309 = vunpack.c.h.b16 %v752
        %v1310 = vunpack.c.l.b16 %v753
        %v1311 = vunpack.c.h.b16 %v753
        %v1312 = vunpack.c.l.b16 %v754
        %v1313 = vunpack.c.h.b16 %v754
        %v1314 = vunpack.c.l.b16 %v755
        %v1315 = vunpack.c.h.b16 %v755
        %v1316 = vunpack.c.l.b16 %v756
        %v1317 = vunpack.c.h.b16 %v756
        %v1318 = vunpack.c.l.b16 %v757
        %v1319 = vunpack.c.h.b16 %v757
        %v1320 = vunpack.c.l.b16 %v758
        %v1321 = vunpack.c.h.b16 %v758
        %v1322 = vunpack.c.l.b16 %v759
        %v1323 = vunpack.c.h.b16 %v759
        %v1324 = vunpack.c.l.b16 %v760
        %v1325 = vunpack.c.h.b16 %v760
        %v1326 = vunpack.c.l.b16 %v761
        %v1327 = vunpack.c.h.b16 %v761
        %v1328 = vunpack.c.l.b16 %v762
        %v1329 = vunpack.c.h.b16 %v762
        %v1330 = vunpack.c.l.b16 %v763
        %v1331 = vunpack.c.h.b16 %v763
        %v1332 = vunpack.c.l.b16 %v764
        %v1333 = vunpack.c.h.b16 %v764
        %v1334 = vunpack.c.l.b16 %v765
        %v1335 = vunpack.c.h.b16 %v765
        %v1336 = vunpack.c.l.b16 %v766
        %v1337 = vunpack.c.h.b16 %v766
        %v1338 = vunpack.c.l.b16 %v767
        %v1339 = vunpack.c.h.b16 %v767
        %v1340 = vunpack.c.l.b16 %v768
        %v1341 = vunpack.c.h.b16 %v768
        %v1342 = vunpack.c.l.b16 %v769
        %v1343 = vunpack.c.h.b16 %v769
        %v1344 = vunpack.c.l.b16 %v770
        %v1345 = vunpack.c.h.b16 %v770
        %v1346 = vunpack.c.l.b16 %v771
        %v1347 = vunpack.c.h.b16 %v771
        %v1348 = vunpack.c.l.b16 %v772
        %v1349 = vunpack.c.h.b16 %v772
        %v1350 = vunpack.c.l.b16 %v773
        %v1351 = vunpack.c.h.b16 %v773
        %v1352 = vunpack.c.l.b16 %v774
        %v1353 = vunpack.c.h.b16 %v774
        %v1354 = vunpack.c.l.b16 %v775
        %v1355 = vunpack.c.h.b16 %v775
        %v1356 = vunpack.c.l.b16 %v776
        %v1357 = vunpack.c.h.b16 %v776
        %v1358 = vunpack.c.l.b16 %v777
        %v1359 = vunpack.c.h.b16 %v777
        %v1360 = vunpack.c.l.b16 %v778
        %v1361 = vunpack.c.h.b16 %v778
        %v1362 = vunpack.c.l.b16 %v779
        %v1363 = vunpack.c.h.b16 %v779
        %v1364 = vunpack.c.l.b16 %v780
        %v1365 = vunpack.c.h.b16 %v780
        %v1366 = vunpack.c.l.b16 %v781
        %v1367 = vunpack.c.h.b16 %v781
        %v1368 = vunpack.c.l.b16 %v782
        %v1369 = vunpack.c.h.b16 %v782
        %v1370 = vunpack.c.l.b16 %v783
        %v1371 = vunpack.c.h.b16 %v783
        %v1372 = vunpack.c.l.b16 %v784
        %v1373 = vunpack.c.h.b16 %v784
        %v1374 = vunpack.c.l.b16 %v785
        %v1375 = vunpack.c.h.b16 %v785
        %v1376 = vunpack.c.l.b16 %v786
        %v1377 = vunpack.c.h.b16 %v786
        %v1378 = vunpack.c.l.b16 %v787
        %v1379 = vunpack.c.h.b16 %v787
        %v1380 = vunpack.c.l.b16 %v788
        %v1381 = vunpack.c.h.b16 %v788
        %v1382 = vunpack.c.l.b16 %v789
        %v1383 = vunpack.c.h.b16 %v789
        %v1384 = vunpack.c.l.b16 %v790
        %v1385 = vunpack.c.h.b16 %v790
        %v1386 = vunpack.c.l.b16 %v791
        %v1387 = vunpack.c.h.b16 %v791
        %v1388 = vunpack.c.l.b16 %v792
        %v1389 = vunpack.c.h.b16 %v792
        %v1390 = vunpack.c.l.b16 %v793
        %v1391 = vunpack.c.h.b16 %v793
        %v1392 = vunpack.c.l.b16 %v794
        %v1393 = vunpack.c.h.b16 %v794
        %v1394 = vunpack.c.l.b16 %v795
        %v1395 = vunpack.c.h.b16 %v795
        %v1396 = vunpack.c.l.b16 %v796
        %v1397 = vunpack.c.h.b16 %v796
        %v1398 = vunpack.c.l.b16 %v797
        %v1399 = vunpack.c.h.b16 %v797
        %v1400 = vunpack.c.l.b16 %v798
        %v1401 = vunpack.c.h.b16 %v798
        %v1402 = vunpack.c.l.b16 %v799
        %v1403 = vunpack.c.h.b16 %v799
        %v1404 = vunpack.c.l.b16 %v800
        %v1405 = vunpack.c.h.b16 %v800
        %v1406 = vunpack.c.l.b16 %v801
        %v1407 = vunpack.c.h.b16 %v801
        %v1408 = vunpack.c.l.b16 %v802
        %v1409 = vunpack.c.h.b16 %v802
        %v1410 = vunpack.c.l.b16 %v803
        %v1411 = vunpack.c.h.b16 %v803
        %v1412 = vunpack.c.l.b16 %v804
        %v1413 = vunpack.c.h.b16 %v804
        %v1414 = vunpack.c.l.b16 %v805
        %v1415 = vunpack.c.h.b16 %v805
        %v1416 = vpack.c.b16 %v1028, %v1024
        %v1417 = vpack.c.b16 %v1029, %v1025
        %v1418 = vpack.c.b16 %v1030, %v1026
        %v1419 = vpack.c.b16 %v1031, %v1027
        %v1420 = vpack.c.b16 %v1036, %v1032
        %v1421 = vpack.c.b16 %v1037, %v1033
        %v1422 = vpack.c.b16 %v1038, %v1034
        %v1423 = vpack.c.b16 %v1039, %v1035
        %v1424 = vpack.c.b16 %v1044, %v1040
        %v1425 = vpack.c.b16 %v1045, %v1041
        %v1426 = vpack.c.b16 %v1046, %v1042
        %v1427 = vpack.c.b16 %v1047, %v1043
        %v1428 = vpack.c.b16 %v1052, %v1048
        %v1429 = vpack.c.b16 %v1053, %v1049
        %v1430 = vpack.c.b16 %v1054, %v1050
        %v1431 = vpack.c.b16 %v1055, %v1051
        %v1432 = vpack.c.b16 %v1060, %v1056
        %v1433 = vpack.c.b16 %v1061, %v1057
        %v1434 = vpack.c.b16 %v1062, %v1058
        %v1435 = vpack.c.b16 %v1063, %v1059
        %v1436 = vpack.c.b16 %v1068, %v1064
        %v1437 = vpack.c.b16 %v1069, %v1065
        %v1438 = vpack.c.b16 %v1070, %v1066
        %v1439 = vpack.c.b16 %v1071, %v1067
        %v1440 = vpack.c.b16 %v1076, %v1072
        %v1441 = vpack.c.b16 %v1077, %v1073
        %v1442 = vpack.c.b16 %v1078, %v1074
        %v1443 = vpack.c.b16 %v1079, %v1075
        %v1444 = vpack.c.b16 %v1084, %v1080
        %v1445 = vpack.c.b16 %v1085, %v1081
        %v1446 = vpack.c.b16 %v1086, %v1082
        %v1447 = vpack.c.b16 %v1087, %v1083
        %v1448 = vpack.c.b16 %v1092, %v1088
        %v1449 = vpack.c.b16 %v1093, %v1089
        %v1450 = vpack.c.b16 %v1094, %v1090
        %v1451 = vpack.c.b16 %v1095, %v1091
        %v1452 = vpack.c.b16 %v1100, %v1096
        %v1453 = vpack.c.b16 %v1101, %v1097
        %v1454 = vpack.c.b16 %v1102, %v1098
        %v1455 = vpack.c.b16 %v1103, %v1099
        %v1456 = vpack.c.b16 %v1108, %v1104
        %v1457 = vpack.c.b16 %v1109, %v1105
        %v1458 = vpack.c.b16 %v1110, %v1106
        %v1459 = vpack.c.b16 %v1111, %v1107
        %v1460 = vpack.c.b16 %v1116, %v1112
        %v1461 = vpack.c.b16 %v1117, %v1113
        %v1462 = vpack.c.b16 %v1118, %v1114
        %v1463 = vpack.c.b16 %v1119, %v1115
        %v1464 = vpack.c.b16 %v1124, %v1120
        %v1465 = vpack.c.b16 %v1125, %v1121
        %v1466 = vpack.c.b16 %v1126, %v1122
        %v1467 = vpack.c.b16 %v1127, %v1123
        %v1468 = vpack.c.b16 %v1132, %v1128
        %v1469 = vpack.c.b16 %v1133, %v1129
        %v1470 = vpack.c.b16 %v1134, %v1130
        %v1471 = vpack.c.b16 %v1135, %v1131
        %v1472 = vpack.c.b16 %v1140, %v1136
        %v1473 = vpack.c.b16 %v1141, %v1137
        %v1474 = vpack.c.b16 %v1142, %v1138
        %v1475 = vpack.c.b16 %v1143, %v1139
        %v1476 = vpack.c.b16 %v1148, %v1144
        %v1477 = vpack.c.b16 %v1149, %v1145
        %v1478 = vpack.c.b16 %v1150, %v1146
        %v1479 = vpack.c.b16 %v1151, %v1147
        %v1480 = vpack.c.b16 %v1156, %v1152
        %v1481 = vpack.c.b16 %v1157, %v1153
        %v1482 = vpack.c.b16 %v1158, %v1154
        %v1483 = vpack.c.b16 %v1159, %v1155
        %v1484 = vpack.c.b16 %v1164, %v1160
        %v1485 = vpack.c.b16 %v1165, %v1161
        %v1486 = vpack.c.b16 %v1166, %v1162
        %v1487 = vpack.c.b16 %v1167, %v1163
        %v1488 = vpack.c.b16 %v1172, %v1168
        %v1489 = vpack.c.b16 %v1173, %v1169
        %v1490 = vpack.c.b16 %v1174, %v1170
        %v1491 = vpack.c.b16 %v1175, %v1171
        %v1492 = vpack.c.b16 %v1180, %v1176
        %v1493 = vpack.c.b16 %v1181, %v1177
        %v1494 = vpack.c.b16 %v1182, %v1178
        %v1495 = vpack.c.b16 %v1183, %v1179
        %v1496 = vpack.c.b16 %v1188, %v1184
        %v1497 = vpack.c.b16 %v1189, %v1185
        %v1498 = vpack.c.b16 %v1190, %v1186
        %v1499 = vpack.c.b16 %v1191, %v1187
        %v1500 = vpack.c.b16 %v1196, %v1192
        %v1501 = vpack.c.b16 %v1197, %v1193
        %v1502 = vpack.c.b16 %v1198, %v1194
        %v1503 = vpack.c.b16 %v1199, %v1195
        %v1504 = vpack.c.b16 %v1204, %v1200
        %v1505 = vpack.c.b16 %v1205, %v1201
        %v1506 = vpack.c.b16 %v1206, %v1202
        %v1507 = vpack.c.b16 %v1207, %v1203
        %v1508 = vpack.c.b16 %v1212, %v1208
        %v1509 = vpack.c.b16 %v1213, %v1209
        %v1510 = vpack.c.b16 %v1214, %v1210
        %v1511 = vpack.c.b16 %v1215, %v1211
        %v1512 = vpack.c.b16 %v1220, %v1216
        %v1513 = vpack.c.b16 %v1221, %v1217
        %v1514 = vpack.c.b16 %v1222, %v1218
        %v1515 = vpack.c.b16 %v1223, %v1219
        %v1516 = vpack.c.b16 %v1228, %v1224
        %v1517 = vpack.c.b16 %v1229, %v1225
        %v1518 = vpack.c.b16 %v1230, %v1226
        %v1519 = vpack.c.b16 %v1231, %v1227
        %v1520 = vpack.c.b16 %v1236, %v1232
        %v1521 = vpack.c.b16 %v1237, %v1233
        %v1522 = vpack.c.b16 %v1238, %v1234
        %v1523 = vpack.c.b16 %v1239, %v1235
        %v1524 = vpack.c.b16 %v1244, %v1240
        %v1525 = vpack.c.b16 %v1245, %v1241
        %v1526 = vpack.c.b16 %v1246, %v1242
        %v1527 = vpack.c.b16 %v1247, %v1243
        %v1528 = vpack.c.b16 %v1252, %v1248
        %v1529 = vpack.c.b16 %v1253, %v1249
        %v1530 = vpack.c.b16 %v1254, %v1250
        %v1531 = vpack.c.b16 %v1255, %v1251
        %v1532 = vpack.c.b16 %v1260, %v1256
        %v1533 = vpack.c.b16 %v1261, %v1257
        %v1534 = vpack.c.b16 %v1262, %v1258
        %v1535 = vpack.c.b16 %v1263, %v1259
        %v1536 = vpack.c.b16 %v1268, %v1264
        %v1537 = vpack.c.b16 %v1269, %v1265
        %v1538 = vpack.c.b16 %v1270, %v1266
        %v1539 = vpack.c.b16 %v1271, %v1267
        %v1540 = vpack.c.b16 %v1276, %v1272
        %v1541 = vpack.c.b16 %v1277, %v1273
        %v1542 = vpack.c.b16 %v1278, %v1274
        %v1543 = vpack.c.b16 %v1279, %v1275
        %v1544 = vpack.c.b16 %v1284, %v1280
        %v1545 = vpack.c.b16 %v1285, %v1281
        %v1546 = vpack.c.b16 %v1286, %v1282
        %v1547 = vpack.c.b16 %v1287, %v1283
        %v1548 = vpack.c.b16 %v1292, %v1288
        %v1549 = vpack.c.b16 %v1293, %v1289
        %v1550 = vpack.c.b16 %v1294, %v1290
        %v1551 = vpack.c.b16 %v1295, %v1291
        %v1552 = vpack.c.b16 %v1300, %v1296
        %v1553 = vpack.c.b16 %v1301, %v1297
        %v1554 = vpack.c.b16 %v1302, %v1298
        %v1555 = vpack.c.b16 %v1303, %v1299
        %v1556 = vpack.c.b16 %v1308, %v1304
        %v1557 = vpack.c.b16 %v1309, %v1305
        %v1558 = vpack.c.b16 %v1310, %v1306
        %v1559 = vpack.c.b16 %v1311, %v1307
        %v1560 = vpack.c.b16 %v1316, %v1312
        %v1561 = vpack.c.b16 %v1317, %v1313
        %v1562 = vpack.c.b16 %v1318, %v1314
        %v1563 = vpack.c.b16 %v1319, %v1315
        %v1564 = vpack.c.b16 %v1324, %v1320
        %v1565 = vpack.c.b16 %v1325, %v1321
        %v1566 = vpack.c.b16 %v1326, %v1322
        %v1567 = vpack.c.b16 %v1327, %v1323
        %v1568 = vpack.c.b16 %v1332, %v1328
        %v1569 = vpack.c.b16 %v1333, %v1329
        %v1570 = vpack.c.b16 %v1334, %v1330
        %v1571 = vpack.c.b16 %v1335, %v1331
        %v1572 = vpack.c.b16 %v1340, %v1336
        %v1573 = vpack.c.b16 %v1341, %v1337
        %v1574 = vpack.c.b16 %v1342, %v1338
        %v1575 = vpack.c.b16 %v1343, %v1339
        %v1576 = vpack.c.b16 %v1348, %v1344
        %v1577 = vpack.c.b16 %v1349, %v1345
        %v1578 = vpack.c.b16 %v1350, %v1346
        %v1579 = vpack.c.b16 %v1351, %v1347
        %v1580 = vpack.c.b16 %v1356, %v1352
        %v1581 = vpack.c.b16 %v1357, %v1353
        %v1582 = vpack.c.b16 %v1358, %v1354
        %v1583 = vpack.c.b16 %v1359, %v1355
        %v1584 = vpack.c.b16 %v1364, %v1360
        %v1585 = vpack.c.b16 %v1365, %v1361
        %v1586 = vpack.c.b16 %v1366, %v1362
        %v1587 = vpack.c.b16 %v1367, %v1363
        %v1588 = vpack.c.b16 %v1372, %v1368
        %v1589 = vpack.c.b16 %v1373, %v1369
        %v1590 = vpack.c.b16 %v1374, %v1370
        %v1591 = vpack.c.b16 %v1375, %v1371
        %v1592 = vpack.c.b16 %v1380, %v1376
        %v1593 = vpack.c.b16 %v1381, %v1377
        %v1594 = vpack.c.b16 %v1382, %v1378
        %v1595 = vpack.c.b16 %v1383, %v1379
        %v1596 = vpack.c.b16 %v1388, %v1384
        %v1597 = vpack.c.b16 %v1389, %v1385
        %v1598 = vpack.c.b16 %v1390, %v1386
        %v1599 = vpack.c.b16 %v1391, %v1387
        %v1600 = vpack.c.b16 %v1396, %v1392
        %v1601 = vpack.c.b16 %v1397, %v1393
        %v1602 = vpack.c.b16 %v1398, %v1394
        %v1603 = vpack.c.b16 %v1399, %v1395
        %v1604 = vpack.c.b16 %v1404, %v1400
        %v1605 = vpack.c.b16 %v1405, %v1401
        %v1606 = vpack.c.b16 %v1406, %v1402
        %v1607 = vpack.c.b16 %v1407, %v1403
        %v1608 = vpack.c.b16 %v1412, %v1408
        %v1609 = vpack.c.b16 %v1413, %v1409
        %v1610 = vpack.c.b16 %v1414, %v1410
        %v1611 = vpack.c.b16 %v1415, %v1411
        %vm1808 = vcmask 130048
        %v1810 = vsel %vm1808, %v560, 0
        %v1813 = vsel %vm1808, %v567, 0
        %v1816 = vsel %vm1808, %v574, 0
        %v1819 = vsel %vm1808, %v581, 0
        %v1822 = vsel %vm1808, %v588, 0
        %v1825 = vsel %vm1808, %v595, 0
        %v1828 = vsel %vm1808, %v602, 0
        %v1831 = vsel %vm1808, %v609, 0
        %1833 = vmatprep.subr.bf16.mxu0 %v1445
        %1834 = vmatpush1.bf16.msra.mxu0 %v1444
        %1835 = vmatprep.subr.bf16.mxu0 %v1441
        %1836 = vmatpush1.bf16.msra.mxu0 %v1440
        %1837 = vmatprep.subr.bf16.mxu0 %v1437
        %1838 = vmatpush1.bf16.msra.mxu0 %v1436
        %1839 = vmatprep.subr.bf16.mxu0 %v1433
        %1840 = vmatpush1.bf16.msra.mxu0 %v1432
        %1841 = vmatprep.subr.bf16.mxu0 %v1429
        %1842 = vmatpush1.bf16.msra.mxu0 %v1428
        %1843 = vmatprep.subr.bf16.mxu0 %v1425
        %1844 = vmatpush1.bf16.msra.mxu0 %v1424
        %1845 = vmatprep.subr.bf16.mxu0 %v1421
        %1846 = vmatpush1.bf16.msra.mxu0 %v1420
        %1847 = vmatprep.subr.bf16.mxu0 %v1417
        %1848 = vmatpush1.bf16.msra.mxu0 %v1416
        %1849 = vmatprep.subr.bf16.mxu0 %v1477
        %1850 = vmatpush2.bf16.msra.mxu0 %v1476
        %1851 = vmatprep.subr.bf16.mxu0 %v1473
        %1852 = vmatpush2.bf16.msra.mxu0 %v1472
        %1853 = vmatprep.subr.bf16.mxu0 %v1469
        %1854 = vmatpush2.bf16.msra.mxu0 %v1468
        %1855 = vmatprep.subr.bf16.mxu0 %v1465
        %1856 = vmatpush2.bf16.msra.mxu0 %v1464
        %1857 = vmatprep.subr.bf16.mxu0 %v1461
        %1858 = vmatpush2.bf16.msra.mxu0 %v1460
        %1859 = vmatprep.subr.bf16.mxu0 %v1457
        %1860 = vmatpush2.bf16.msra.mxu0 %v1456
        %1861 = vmatprep.subr.bf16.mxu0 %v1453
        %1862 = vmatpush2.bf16.msra.mxu0 %v1452
        %1863 = vmatprep.subr.bf16.mxu0 %v1449
        %1864 = vmatpush2.bf16.msra.mxu0 %v1448
        %1865 = vmatprep.mubr.bf16.mxu0 %v555
        %1866 = vmatmul.mubr.bf16.gmra.mxu0 %v554
        %v1867 = vpop.f32.mrf.mxu0
        %v1868 = vadd.f32 %v811, %v1867
        %v1869 = vpop.f32.mrf.mxu0
        %v1870 = vadd.f32 %v815, %v1869
        %v1871 = vpop.f32.mrf.mxu0
        %v1872 = vadd.f32 %v811, %v1871
        %v1873 = vpop.f32.mrf.mxu0
        %v1874 = vadd.f32 %v815, %v1873
        %1875 = vmatprep.mubr.bf16.mxu0 %v562
        %1876 = vmatmul.mubr.bf16.gmra.mxu0 %v561
        %v1877 = vpop.f32.mrf.mxu0
        %v1878 = vadd.f32 %v811, %v1877
        %v1879 = vpop.f32.mrf.mxu0
        %v1880 = vadd.f32 %v815, %v1879
        %v1881 = vpop.f32.mrf.mxu0
        %v1882 = vadd.f32 %v811, %v1881
        %v1883 = vpop.f32.mrf.mxu0
        %v1884 = vadd.f32 %v815, %v1883
        %1885 = vmatprep.mubr.bf16.mxu0 %v569
        %1886 = vmatmul.mubr.bf16.gmra.mxu0 %v568
        %v1887 = vpop.f32.mrf.mxu0
        %v1888 = vadd.f32 %v811, %v1887
        %v1889 = vpop.f32.mrf.mxu0
        %v1890 = vadd.f32 %v815, %v1889
        %v1891 = vpop.f32.mrf.mxu0
        %v1892 = vadd.f32 %v811, %v1891
        %v1893 = vpop.f32.mrf.mxu0
        %v1894 = vadd.f32 %v815, %v1893
        %1895 = vmatprep.mubr.bf16.mxu0 %v576
        %1896 = vmatmul.mubr.bf16.gmra.mxu0 %v575
        %v1897 = vpop.f32.mrf.mxu0
        %v1898 = vadd.f32 %v811, %v1897
        %v1899 = vpop.f32.mrf.mxu0
        %v1900 = vadd.f32 %v815, %v1899
        %v1901 = vpop.f32.mrf.mxu0
        %v1902 = vadd.f32 %v811, %v1901
        %v1903 = vpop.f32.mrf.mxu0
        %v1904 = vadd.f32 %v815, %v1903
        %1905 = vmatprep.mubr.bf16.mxu0 %v583
        %1906 = vmatmul.mubr.bf16.gmra.mxu0 %v582
        %v1907 = vpop.f32.mrf.mxu0
        %v1908 = vadd.f32 %v811, %v1907
        %v1909 = vpop.f32.mrf.mxu0
        %v1910 = vadd.f32 %v815, %v1909
        %v1911 = vpop.f32.mrf.mxu0
        %v1912 = vadd.f32 %v811, %v1911
        %v1913 = vpop.f32.mrf.mxu0
        %v1914 = vadd.f32 %v815, %v1913
        %1915 = vmatprep.mubr.bf16.mxu0 %v590
        %1916 = vmatmul.mubr.bf16.gmra.mxu0 %v589
        %v1917 = vpop.f32.mrf.mxu0
        %v1918 = vadd.f32 %v811, %v1917
        %v1919 = vpop.f32.mrf.mxu0
        %v1920 = vadd.f32 %v815, %v1919
        %v1921 = vpop.f32.mrf.mxu0
        %v1922 = vadd.f32 %v811, %v1921
        %v1923 = vpop.f32.mrf.mxu0
        %v1924 = vadd.f32 %v815, %v1923
        %1925 = vmatprep.mubr.bf16.mxu0 %v597
        %1926 = vmatmul.mubr.bf16.gmra.mxu0 %v596
        %v1927 = vpop.f32.mrf.mxu0
        %v1928 = vadd.f32 %v811, %v1927
        %v1929 = vpop.f32.mrf.mxu0
        %v1930 = vadd.f32 %v815, %v1929
        %v1931 = vpop.f32.mrf.mxu0
        %v1932 = vadd.f32 %v811, %v1931
        %v1933 = vpop.f32.mrf.mxu0
        %v1934 = vadd.f32 %v815, %v1933
        %1935 = vmatprep.mubr.bf16.mxu0 %v604
        %1936 = vmatmul.mubr.bf16.gmra.mxu0 %v603
        %v1937 = vpop.f32.mrf.mxu0
        %v1938 = vadd.f32 %v811, %v1937
        %v1939 = vpop.f32.mrf.mxu0
        %v1940 = vadd.f32 %v815, %v1939
        %v1941 = vpop.f32.mrf.mxu0
        %v1942 = vadd.f32 %v811, %v1941
        %v1943 = vpop.f32.mrf.mxu0
        %v1944 = vadd.f32 %v815, %v1943
        %1945 = vdwg.mxu0
        %1946 = vmatprep.subr.bf16.mxu0 %v1509
        %1947 = vmatpush1.bf16.msra.mxu0 %v1508
        %1948 = vmatprep.subr.bf16.mxu0 %v1505
        %1949 = vmatpush1.bf16.msra.mxu0 %v1504
        %1950 = vmatprep.subr.bf16.mxu0 %v1501
        %1951 = vmatpush1.bf16.msra.mxu0 %v1500
        %1952 = vmatprep.subr.bf16.mxu0 %v1497
        %1953 = vmatpush1.bf16.msra.mxu0 %v1496
        %1954 = vmatprep.subr.bf16.mxu0 %v1493
        %1955 = vmatpush1.bf16.msra.mxu0 %v1492
        %1956 = vmatprep.subr.bf16.mxu0 %v1489
        %1957 = vmatpush1.bf16.msra.mxu0 %v1488
        %1958 = vmatprep.subr.bf16.mxu0 %v1485
        %1959 = vmatpush1.bf16.msra.mxu0 %v1484
        %1960 = vmatprep.subr.bf16.mxu0 %v1481
        %1961 = vmatpush1.bf16.msra.mxu0 %v1480
        %1962 = vmatprep.subr.bf16.mxu0 %v1541
        %1963 = vmatpush2.bf16.msra.mxu0 %v1540
        %1964 = vmatprep.subr.bf16.mxu0 %v1537
        %1965 = vmatpush2.bf16.msra.mxu0 %v1536
        %1966 = vmatprep.subr.bf16.mxu0 %v1533
        %1967 = vmatpush2.bf16.msra.mxu0 %v1532
        %1968 = vmatprep.subr.bf16.mxu0 %v1529
        %1969 = vmatpush2.bf16.msra.mxu0 %v1528
        %1970 = vmatprep.subr.bf16.mxu0 %v1525
        %1971 = vmatpush2.bf16.msra.mxu0 %v1524
        %1972 = vmatprep.subr.bf16.mxu0 %v1521
        %1973 = vmatpush2.bf16.msra.mxu0 %v1520
        %1974 = vmatprep.subr.bf16.mxu0 %v1517
        %1975 = vmatpush2.bf16.msra.mxu0 %v1516
        %1976 = vmatprep.subr.bf16.mxu0 %v1513
        %1977 = vmatpush2.bf16.msra.mxu0 %v1512
        %1978 = vmatprep.mubr.bf16.mxu0 %v557
        %1979 = vmatmul.mubr.bf16.gmra.mxu0 %v556
        %v1980 = vpop.f32.mrf.mxu0
        %v1981 = vadd.f32 %v1868, %v1980
        %v1982 = vpop.f32.mrf.mxu0
        %v1983 = vadd.f32 %v1870, %v1982
        %v1984 = vpop.f32.mrf.mxu0
        %v1985 = vadd.f32 %v1872, %v1984
        %v1986 = vpop.f32.mrf.mxu0
        %v1987 = vadd.f32 %v1874, %v1986
        %1988 = vmatprep.mubr.bf16.mxu0 %v564
        %1989 = vmatmul.mubr.bf16.gmra.mxu0 %v563
        %v1990 = vpop.f32.mrf.mxu0
        %v1991 = vadd.f32 %v1878, %v1990
        %v1992 = vpop.f32.mrf.mxu0
        %v1993 = vadd.f32 %v1880, %v1992
        %v1994 = vpop.f32.mrf.mxu0
        %v1995 = vadd.f32 %v1882, %v1994
        %v1996 = vpop.f32.mrf.mxu0
        %v1997 = vadd.f32 %v1884, %v1996
        %1998 = vmatprep.mubr.bf16.mxu0 %v571
        %1999 = vmatmul.mubr.bf16.gmra.mxu0 %v570
        %v2000 = vpop.f32.mrf.mxu0
        %v2001 = vadd.f32 %v1888, %v2000
        %v2002 = vpop.f32.mrf.mxu0
        %v2003 = vadd.f32 %v1890, %v2002
        %v2004 = vpop.f32.mrf.mxu0
        %v2005 = vadd.f32 %v1892, %v2004
        %v2006 = vpop.f32.mrf.mxu0
        %v2007 = vadd.f32 %v1894, %v2006
        %2008 = vmatprep.mubr.bf16.mxu0 %v578
        %2009 = vmatmul.mubr.bf16.gmra.mxu0 %v577
        %v2010 = vpop.f32.mrf.mxu0
        %v2011 = vadd.f32 %v1898, %v2010
        %v2012 = vpop.f32.mrf.mxu0
        %v2013 = vadd.f32 %v1900, %v2012
        %v2014 = vpop.f32.mrf.mxu0
        %v2015 = vadd.f32 %v1902, %v2014
        %v2016 = vpop.f32.mrf.mxu0
        %v2017 = vadd.f32 %v1904, %v2016
        %2018 = vmatprep.mubr.bf16.mxu0 %v585
        %2019 = vmatmul.mubr.bf16.gmra.mxu0 %v584
        %v2020 = vpop.f32.mrf.mxu0
        %v2021 = vadd.f32 %v1908, %v2020
        %v2022 = vpop.f32.mrf.mxu0
        %v2023 = vadd.f32 %v1910, %v2022
        %v2024 = vpop.f32.mrf.mxu0
        %v2025 = vadd.f32 %v1912, %v2024
        %v2026 = vpop.f32.mrf.mxu0
        %v2027 = vadd.f32 %v1914, %v2026
        %2028 = vmatprep.mubr.bf16.mxu0 %v592
        %2029 = vmatmul.mubr.bf16.gmra.mxu0 %v591
        %v2030 = vpop.f32.mrf.mxu0
        %v2031 = vadd.f32 %v1918, %v2030
        %v2032 = vpop.f32.mrf.mxu0
        %v2033 = vadd.f32 %v1920, %v2032
        %v2034 = vpop.f32.mrf.mxu0
        %v2035 = vadd.f32 %v1922, %v2034
        %v2036 = vpop.f32.mrf.mxu0
        %v2037 = vadd.f32 %v1924, %v2036
        %2038 = vmatprep.mubr.bf16.mxu0 %v599
        %2039 = vmatmul.mubr.bf16.gmra.mxu0 %v598
        %v2040 = vpop.f32.mrf.mxu0
        %v2041 = vadd.f32 %v1928, %v2040
        %v2042 = vpop.f32.mrf.mxu0
        %v2043 = vadd.f32 %v1930, %v2042
        %v2044 = vpop.f32.mrf.mxu0
        %v2045 = vadd.f32 %v1932, %v2044
        %v2046 = vpop.f32.mrf.mxu0
        %v2047 = vadd.f32 %v1934, %v2046
        %2048 = vmatprep.mubr.bf16.mxu0 %v606
        %2049 = vmatmul.mubr.bf16.gmra.mxu0 %v605
        %v2050 = vpop.f32.mrf.mxu0
        %v2051 = vadd.f32 %v1938, %v2050
        %v2052 = vpop.f32.mrf.mxu0
        %v2053 = vadd.f32 %v1940, %v2052
        %v2054 = vpop.f32.mrf.mxu0
        %v2055 = vadd.f32 %v1942, %v2054
        %v2056 = vpop.f32.mrf.mxu0
        %v2057 = vadd.f32 %v1944, %v2056
        %2058 = vdwg.mxu0
        %2059 = vmatprep.subr.bf16.mxu0 %v1573
        %2060 = vmatpush1.bf16.msra.mxu0 %v1572
        %2061 = vmatprep.subr.bf16.mxu0 %v1569
        %2062 = vmatpush1.bf16.msra.mxu0 %v1568
        %2063 = vmatprep.subr.bf16.mxu0 %v1565
        %2064 = vmatpush1.bf16.msra.mxu0 %v1564
        %2065 = vmatprep.subr.bf16.mxu0 %v1561
        %2066 = vmatpush1.bf16.msra.mxu0 %v1560
        %2067 = vmatprep.subr.bf16.mxu0 %v1557
        %2068 = vmatpush1.bf16.msra.mxu0 %v1556
        %2069 = vmatprep.subr.bf16.mxu0 %v1553
        %2070 = vmatpush1.bf16.msra.mxu0 %v1552
        %2071 = vmatprep.subr.bf16.mxu0 %v1549
        %2072 = vmatpush1.bf16.msra.mxu0 %v1548
        %2073 = vmatprep.subr.bf16.mxu0 %v1545
        %2074 = vmatpush1.bf16.msra.mxu0 %v1544
        %2075 = vmatprep.subr.bf16.mxu0 %v1605
        %2076 = vmatpush2.bf16.msra.mxu0 %v1604
        %2077 = vmatprep.subr.bf16.mxu0 %v1601
        %2078 = vmatpush2.bf16.msra.mxu0 %v1600
        %2079 = vmatprep.subr.bf16.mxu0 %v1597
        %2080 = vmatpush2.bf16.msra.mxu0 %v1596
        %2081 = vmatprep.subr.bf16.mxu0 %v1593
        %2082 = vmatpush2.bf16.msra.mxu0 %v1592
        %2083 = vmatprep.subr.bf16.mxu0 %v1589
        %2084 = vmatpush2.bf16.msra.mxu0 %v1588
        %2085 = vmatprep.subr.bf16.mxu0 %v1585
        %2086 = vmatpush2.bf16.msra.mxu0 %v1584
        %2087 = vmatprep.subr.bf16.mxu0 %v1581
        %2088 = vmatpush2.bf16.msra.mxu0 %v1580
        %2089 = vmatprep.subr.bf16.mxu0 %v1577
        %2090 = vmatpush2.bf16.msra.mxu0 %v1576
        %2091 = vmatprep.mubr.bf16.mxu0 %v559
        %2092 = vmatmul.mubr.bf16.gmra.mxu0 %v558
        %v2093 = vpop.f32.mrf.mxu0
        %v2094 = vadd.f32 %v1981, %v2093
        %v2095 = vpop.f32.mrf.mxu0
        %v2096 = vadd.f32 %v1983, %v2095
        %v2097 = vpop.f32.mrf.mxu0
        %v2098 = vadd.f32 %v1985, %v2097
        %v2099 = vpop.f32.mrf.mxu0
        %v2100 = vadd.f32 %v1987, %v2099
        %2101 = vmatprep.mubr.bf16.mxu0 %v566
        %2102 = vmatmul.mubr.bf16.gmra.mxu0 %v565
        %v2103 = vpop.f32.mrf.mxu0
        %v2104 = vadd.f32 %v1991, %v2103
        %v2105 = vpop.f32.mrf.mxu0
        %v2106 = vadd.f32 %v1993, %v2105
        %v2107 = vpop.f32.mrf.mxu0
        %v2108 = vadd.f32 %v1995, %v2107
        %v2109 = vpop.f32.mrf.mxu0
        %v2110 = vadd.f32 %v1997, %v2109
        %2111 = vmatprep.mubr.bf16.mxu0 %v573
        %2112 = vmatmul.mubr.bf16.gmra.mxu0 %v572
        %v2113 = vpop.f32.mrf.mxu0
        %v2114 = vadd.f32 %v2001, %v2113
        %v2115 = vpop.f32.mrf.mxu0
        %v2116 = vadd.f32 %v2003, %v2115
        %v2117 = vpop.f32.mrf.mxu0
        %v2118 = vadd.f32 %v2005, %v2117
        %v2119 = vpop.f32.mrf.mxu0
        %v2120 = vadd.f32 %v2007, %v2119
        %2121 = vmatprep.mubr.bf16.mxu0 %v580
        %2122 = vmatmul.mubr.bf16.gmra.mxu0 %v579
        %v2123 = vpop.f32.mrf.mxu0
        %v2124 = vadd.f32 %v2011, %v2123
        %v2125 = vpop.f32.mrf.mxu0
        %v2126 = vadd.f32 %v2013, %v2125
        %v2127 = vpop.f32.mrf.mxu0
        %v2128 = vadd.f32 %v2015, %v2127
        %v2129 = vpop.f32.mrf.mxu0
        %v2130 = vadd.f32 %v2017, %v2129
        %2131 = vmatprep.mubr.bf16.mxu0 %v587
        %2132 = vmatmul.mubr.bf16.gmra.mxu0 %v586
        %v2133 = vpop.f32.mrf.mxu0
        %v2134 = vadd.f32 %v2021, %v2133
        %v2135 = vpop.f32.mrf.mxu0
        %v2136 = vadd.f32 %v2023, %v2135
        %v2137 = vpop.f32.mrf.mxu0
        %v2138 = vadd.f32 %v2025, %v2137
        %v2139 = vpop.f32.mrf.mxu0
        %v2140 = vadd.f32 %v2027, %v2139
        %2141 = vmatprep.mubr.bf16.mxu0 %v594
        %2142 = vmatmul.mubr.bf16.gmra.mxu0 %v593
        %v2143 = vpop.f32.mrf.mxu0
        %v2144 = vadd.f32 %v2031, %v2143
        %v2145 = vpop.f32.mrf.mxu0
        %v2146 = vadd.f32 %v2033, %v2145
        %v2147 = vpop.f32.mrf.mxu0
        %v2148 = vadd.f32 %v2035, %v2147
        %v2149 = vpop.f32.mrf.mxu0
        %v2150 = vadd.f32 %v2037, %v2149
        %2151 = vmatprep.mubr.bf16.mxu0 %v601
        %2152 = vmatmul.mubr.bf16.gmra.mxu0 %v600
        %v2153 = vpop.f32.mrf.mxu0
        %v2154 = vadd.f32 %v2041, %v2153
        %v2155 = vpop.f32.mrf.mxu0
        %v2156 = vadd.f32 %v2043, %v2155
        %v2157 = vpop.f32.mrf.mxu0
        %v2158 = vadd.f32 %v2045, %v2157
        %v2159 = vpop.f32.mrf.mxu0
        %v2160 = vadd.f32 %v2047, %v2159
        %2161 = vmatprep.mubr.bf16.mxu0 %v608
        %2162 = vmatmul.mubr.bf16.gmra.mxu0 %v607
        %v2163 = vpop.f32.mrf.mxu0
        %v2164 = vadd.f32 %v2051, %v2163
        %v2165 = vpop.f32.mrf.mxu0
        %v2166 = vadd.f32 %v2053, %v2165
        %v2167 = vpop.f32.mrf.mxu0
        %v2168 = vadd.f32 %v2055, %v2167
        %v2169 = vpop.f32.mrf.mxu0
        %v2170 = vadd.f32 %v2057, %v2169
        %2171 = vdwg.mxu0
        %2172 = vmatprep.subr.bf16.mxu0 0
        %2173 = vmatpush1.bf16.msra.mxu0 0
        %2174 = vmatprep.subr.bf16.mxu0 0
        %2175 = vmatpush1.bf16.msra.mxu0 0
        %2176 = vmatprep.subr.bf16.mxu0 0
        %2177 = vmatpush1.bf16.msra.mxu0 0
        %2178 = vmatprep.subr.bf16.mxu0 0
        %2179 = vmatpush1.bf16.msra.mxu0 0
        %2180 = vmatprep.subr.bf16.mxu0 0
        %2181 = vmatpush1.bf16.msra.mxu0 0
        %2182 = vmatprep.subr.bf16.mxu0 0
        %2183 = vmatpush1.bf16.msra.mxu0 0
        %2184 = vmatprep.subr.bf16.mxu0 0
        %2185 = vmatpush1.bf16.msra.mxu0 0
        %2186 = vmatprep.subr.bf16.mxu0 %v1609
        %2187 = vmatpush1.bf16.msra.mxu0 %v1608
        %2188 = vmatprep.subr.bf16.mxu0 0
        %2189 = vmatpush2.bf16.msra.mxu0 0
        %2190 = vmatprep.subr.bf16.mxu0 0
        %2191 = vmatpush2.bf16.msra.mxu0 0
        %2192 = vmatprep.subr.bf16.mxu0 0
        %2193 = vmatpush2.bf16.msra.mxu0 0
        %2194 = vmatprep.subr.bf16.mxu0 0
        %2195 = vmatpush2.bf16.msra.mxu0 0
        %2196 = vmatprep.subr.bf16.mxu0 0
        %2197 = vmatpush2.bf16.msra.mxu0 0
        %2198 = vmatprep.subr.bf16.mxu0 0
        %2199 = vmatpush2.bf16.msra.mxu0 0
        %2200 = vmatprep.subr.bf16.mxu0 0
        %2201 = vmatpush2.bf16.msra.mxu0 0
        %2202 = vmatprep.subr.bf16.mxu0 0
        %2203 = vmatpush2.bf16.msra.mxu0 0
        %2204 = vmatprep.mubr.bf16.mxu0 0
        %2205 = vmatmul.mubr.bf16.gmra.mxu0 %v1810
        %v2206 = vpop.f32.mrf.mxu0
        %v2207 = vadd.f32 %v2094, %v2206
        %v2208 = vpop.f32.mrf.mxu0
        %v2209 = vadd.f32 %v2096, %v2208
        %v2210 = vpop.f32.mrf.mxu0
        %v2211 = vadd.f32 %v2098, %v2210
        %v2212 = vpop.f32.mrf.mxu0
        %v2213 = vadd.f32 %v2100, %v2212
        %2214 = vmatprep.mubr.bf16.mxu0 0
        %2215 = vmatmul.mubr.bf16.gmra.mxu0 %v1813
        %v2216 = vpop.f32.mrf.mxu0
        %v2217 = vadd.f32 %v2104, %v2216
        %v2218 = vpop.f32.mrf.mxu0
        %v2219 = vadd.f32 %v2106, %v2218
        %v2220 = vpop.f32.mrf.mxu0
        %v2221 = vadd.f32 %v2108, %v2220
        %v2222 = vpop.f32.mrf.mxu0
        %v2223 = vadd.f32 %v2110, %v2222
        %2224 = vmatprep.mubr.bf16.mxu0 0
        %2225 = vmatmul.mubr.bf16.gmra.mxu0 %v1816
        %v2226 = vpop.f32.mrf.mxu0
        %v2227 = vadd.f32 %v2114, %v2226
        %v2228 = vpop.f32.mrf.mxu0
        %v2229 = vadd.f32 %v2116, %v2228
        %v2230 = vpop.f32.mrf.mxu0
        %v2231 = vadd.f32 %v2118, %v2230
        %v2232 = vpop.f32.mrf.mxu0
        %v2233 = vadd.f32 %v2120, %v2232
        %2234 = vmatprep.mubr.bf16.mxu0 0
        %2235 = vmatmul.mubr.bf16.gmra.mxu0 %v1819
        %v2236 = vpop.f32.mrf.mxu0
        %v2237 = vadd.f32 %v2124, %v2236
        %v2238 = vpop.f32.mrf.mxu0
        %v2239 = vadd.f32 %v2126, %v2238
        %v2240 = vpop.f32.mrf.mxu0
        %v2241 = vadd.f32 %v2128, %v2240
        %v2242 = vpop.f32.mrf.mxu0
        %v2243 = vadd.f32 %v2130, %v2242
        %2244 = vmatprep.mubr.bf16.mxu0 0
        %2245 = vmatmul.mubr.bf16.gmra.mxu0 %v1822
        %v2246 = vpop.f32.mrf.mxu0
        %v2247 = vadd.f32 %v2134, %v2246
        %v2248 = vpop.f32.mrf.mxu0
        %v2249 = vadd.f32 %v2136, %v2248
        %v2250 = vpop.f32.mrf.mxu0
        %v2251 = vadd.f32 %v2138, %v2250
        %v2252 = vpop.f32.mrf.mxu0
        %v2253 = vadd.f32 %v2140, %v2252
        %2254 = vmatprep.mubr.bf16.mxu0 0
        %2255 = vmatmul.mubr.bf16.gmra.mxu0 %v1825
        %v2256 = vpop.f32.mrf.mxu0
        %v2257 = vadd.f32 %v2144, %v2256
        %v2258 = vpop.f32.mrf.mxu0
        %v2259 = vadd.f32 %v2146, %v2258
        %v2260 = vpop.f32.mrf.mxu0
        %v2261 = vadd.f32 %v2148, %v2260
        %v2262 = vpop.f32.mrf.mxu0
        %v2263 = vadd.f32 %v2150, %v2262
        %2264 = vmatprep.mubr.bf16.mxu0 0
        %2265 = vmatmul.mubr.bf16.gmra.mxu0 %v1828
        %v2266 = vpop.f32.mrf.mxu0
        %v2267 = vadd.f32 %v2154, %v2266
        %v2268 = vpop.f32.mrf.mxu0
        %v2269 = vadd.f32 %v2156, %v2268
        %v2270 = vpop.f32.mrf.mxu0
        %v2271 = vadd.f32 %v2158, %v2270
        %v2272 = vpop.f32.mrf.mxu0
        %v2273 = vadd.f32 %v2160, %v2272
        %2274 = vmatprep.mubr.bf16.mxu0 0
        %2275 = vmatmul.mubr.bf16.gmra.mxu0 %v1831
        %v2276 = vpop.f32.mrf.mxu0
        %v2277 = vadd.f32 %v2164, %v2276
        %v2278 = vpop.f32.mrf.mxu0
        %v2279 = vadd.f32 %v2166, %v2278
        %v2280 = vpop.f32.mrf.mxu0
        %v2281 = vadd.f32 %v2168, %v2280
        %v2282 = vpop.f32.mrf.mxu0
        %v2283 = vadd.f32 %v2170, %v2282
        %2284 = vdwg.mxu0
        %2285 = vmatprep.subr.bf16.mxu0 %v1447
        %2286 = vmatpush1.bf16.msra.mxu0 %v1446
        %2287 = vmatprep.subr.bf16.mxu0 %v1443
        %2288 = vmatpush1.bf16.msra.mxu0 %v1442
        %2289 = vmatprep.subr.bf16.mxu0 %v1439
        %2290 = vmatpush1.bf16.msra.mxu0 %v1438
        %2291 = vmatprep.subr.bf16.mxu0 %v1435
        %2292 = vmatpush1.bf16.msra.mxu0 %v1434
        %2293 = vmatprep.subr.bf16.mxu0 %v1431
        %2294 = vmatpush1.bf16.msra.mxu0 %v1430
        %2295 = vmatprep.subr.bf16.mxu0 %v1427
        %2296 = vmatpush1.bf16.msra.mxu0 %v1426
        %2297 = vmatprep.subr.bf16.mxu0 %v1423
        %2298 = vmatpush1.bf16.msra.mxu0 %v1422
        %2299 = vmatprep.subr.bf16.mxu0 %v1419
        %2300 = vmatpush1.bf16.msra.mxu0 %v1418
        %2301 = vmatprep.subr.bf16.mxu0 %v1479
        %2302 = vmatpush2.bf16.msra.mxu0 %v1478
        %2303 = vmatprep.subr.bf16.mxu0 %v1475
        %2304 = vmatpush2.bf16.msra.mxu0 %v1474
        %2305 = vmatprep.subr.bf16.mxu0 %v1471
        %2306 = vmatpush2.bf16.msra.mxu0 %v1470
        %2307 = vmatprep.subr.bf16.mxu0 %v1467
        %2308 = vmatpush2.bf16.msra.mxu0 %v1466
        %2309 = vmatprep.subr.bf16.mxu0 %v1463
        %2310 = vmatpush2.bf16.msra.mxu0 %v1462
        %2311 = vmatprep.subr.bf16.mxu0 %v1459
        %2312 = vmatpush2.bf16.msra.mxu0 %v1458
        %2313 = vmatprep.subr.bf16.mxu0 %v1455
        %2314 = vmatpush2.bf16.msra.mxu0 %v1454
        %2315 = vmatprep.subr.bf16.mxu0 %v1451
        %2316 = vmatpush2.bf16.msra.mxu0 %v1450
        %2317 = vmatprep.mubr.bf16.mxu0 %v555
        %2318 = vmatmul.mubr.bf16.gmra.mxu0 %v554
        %v2319 = vpop.f32.mrf.mxu0
        %v2320 = vadd.f32 %v819, %v2319
        %v2321 = vpop.f32.mrf.mxu0
        %v2322 = vadd.f32 %v823, %v2321
        %v2323 = vpop.f32.mrf.mxu0
        %v2324 = vadd.f32 %v819, %v2323
        %v2325 = vpop.f32.mrf.mxu0
        %v2326 = vadd.f32 %v823, %v2325
        %2327 = vmatprep.mubr.bf16.mxu0 %v562
        %2328 = vmatmul.mubr.bf16.gmra.mxu0 %v561
        %v2329 = vpop.f32.mrf.mxu0
        %v2330 = vadd.f32 %v819, %v2329
        %v2331 = vpop.f32.mrf.mxu0
        %v2332 = vadd.f32 %v823, %v2331
        %v2333 = vpop.f32.mrf.mxu0
        %v2334 = vadd.f32 %v819, %v2333
        %v2335 = vpop.f32.mrf.mxu0
        %v2336 = vadd.f32 %v823, %v2335
        %2337 = vmatprep.mubr.bf16.mxu0 %v569
        %2338 = vmatmul.mubr.bf16.gmra.mxu0 %v568
        %v2339 = vpop.f32.mrf.mxu0
        %v2340 = vadd.f32 %v819, %v2339
        %v2341 = vpop.f32.mrf.mxu0
        %v2342 = vadd.f32 %v823, %v2341
        %v2343 = vpop.f32.mrf.mxu0
        %v2344 = vadd.f32 %v819, %v2343
        %v2345 = vpop.f32.mrf.mxu0
        %v2346 = vadd.f32 %v823, %v2345
        %2347 = vmatprep.mubr.bf16.mxu0 %v576
        %2348 = vmatmul.mubr.bf16.gmra.mxu0 %v575
        %v2349 = vpop.f32.mrf.mxu0
        %v2350 = vadd.f32 %v819, %v2349
        %v2351 = vpop.f32.mrf.mxu0
        %v2352 = vadd.f32 %v823, %v2351
        %v2353 = vpop.f32.mrf.mxu0
        %v2354 = vadd.f32 %v819, %v2353
        %v2355 = vpop.f32.mrf.mxu0
        %v2356 = vadd.f32 %v823, %v2355
        %2357 = vmatprep.mubr.bf16.mxu0 %v583
        %2358 = vmatmul.mubr.bf16.gmra.mxu0 %v582
        %v2359 = vpop.f32.mrf.mxu0
        %v2360 = vadd.f32 %v819, %v2359
        %v2361 = vpop.f32.mrf.mxu0
        %v2362 = vadd.f32 %v823, %v2361
        %v2363 = vpop.f32.mrf.mxu0
        %v2364 = vadd.f32 %v819, %v2363
        %v2365 = vpop.f32.mrf.mxu0
        %v2366 = vadd.f32 %v823, %v2365
        %2367 = vmatprep.mubr.bf16.mxu0 %v590
        %2368 = vmatmul.mubr.bf16.gmra.mxu0 %v589
        %v2369 = vpop.f32.mrf.mxu0
        %v2370 = vadd.f32 %v819, %v2369
        %v2371 = vpop.f32.mrf.mxu0
        %v2372 = vadd.f32 %v823, %v2371
        %v2373 = vpop.f32.mrf.mxu0
        %v2374 = vadd.f32 %v819, %v2373
        %v2375 = vpop.f32.mrf.mxu0
        %v2376 = vadd.f32 %v823, %v2375
        %2377 = vmatprep.mubr.bf16.mxu0 %v597
        %2378 = vmatmul.mubr.bf16.gmra.mxu0 %v596
        %v2379 = vpop.f32.mrf.mxu0
        %v2380 = vadd.f32 %v819, %v2379
        %v2381 = vpop.f32.mrf.mxu0
        %v2382 = vadd.f32 %v823, %v2381
        %v2383 = vpop.f32.mrf.mxu0
        %v2384 = vadd.f32 %v819, %v2383
        %v2385 = vpop.f32.mrf.mxu0
        %v2386 = vadd.f32 %v823, %v2385
        %2387 = vmatprep.mubr.bf16.mxu0 %v604
        %2388 = vmatmul.mubr.bf16.gmra.mxu0 %v603
        %v2389 = vpop.f32.mrf.mxu0
        %v2390 = vadd.f32 %v819, %v2389
        %v2391 = vpop.f32.mrf.mxu0
        %v2392 = vadd.f32 %v823, %v2391
        %v2393 = vpop.f32.mrf.mxu0
        %v2394 = vadd.f32 %v819, %v2393
        %v2395 = vpop.f32.mrf.mxu0
        %v2396 = vadd.f32 %v823, %v2395
        %2397 = vdwg.mxu0
        %2398 = vmatprep.subr.bf16.mxu0 %v1511
        %2399 = vmatpush1.bf16.msra.mxu0 %v1510
        %2400 = vmatprep.subr.bf16.mxu0 %v1507
        %2401 = vmatpush1.bf16.msra.mxu0 %v1506
        %2402 = vmatprep.subr.bf16.mxu0 %v1503
        %2403 = vmatpush1.bf16.msra.mxu0 %v1502
        %2404 = vmatprep.subr.bf16.mxu0 %v1499
        %2405 = vmatpush1.bf16.msra.mxu0 %v1498
        %2406 = vmatprep.subr.bf16.mxu0 %v1495
        %2407 = vmatpush1.bf16.msra.mxu0 %v1494
        %2408 = vmatprep.subr.bf16.mxu0 %v1491
        %2409 = vmatpush1.bf16.msra.mxu0 %v1490
        %2410 = vmatprep.subr.bf16.mxu0 %v1487
        %2411 = vmatpush1.bf16.msra.mxu0 %v1486
        %2412 = vmatprep.subr.bf16.mxu0 %v1483
        %2413 = vmatpush1.bf16.msra.mxu0 %v1482
        %2414 = vmatprep.subr.bf16.mxu0 %v1543
        %2415 = vmatpush2.bf16.msra.mxu0 %v1542
        %2416 = vmatprep.subr.bf16.mxu0 %v1539
        %2417 = vmatpush2.bf16.msra.mxu0 %v1538
        %2418 = vmatprep.subr.bf16.mxu0 %v1535
        %2419 = vmatpush2.bf16.msra.mxu0 %v1534
        %2420 = vmatprep.subr.bf16.mxu0 %v1531
        %2421 = vmatpush2.bf16.msra.mxu0 %v1530
        %2422 = vmatprep.subr.bf16.mxu0 %v1527
        %2423 = vmatpush2.bf16.msra.mxu0 %v1526
        %2424 = vmatprep.subr.bf16.mxu0 %v1523
        %2425 = vmatpush2.bf16.msra.mxu0 %v1522
        %2426 = vmatprep.subr.bf16.mxu0 %v1519
        %2427 = vmatpush2.bf16.msra.mxu0 %v1518
        %2428 = vmatprep.subr.bf16.mxu0 %v1515
        %2429 = vmatpush2.bf16.msra.mxu0 %v1514
        %2430 = vmatprep.mubr.bf16.mxu0 %v557
        %2431 = vmatmul.mubr.bf16.gmra.mxu0 %v556
        %v2432 = vpop.f32.mrf.mxu0
        %v2433 = vadd.f32 %v2320, %v2432
        %v2434 = vpop.f32.mrf.mxu0
        %v2435 = vadd.f32 %v2322, %v2434
        %v2436 = vpop.f32.mrf.mxu0
        %v2437 = vadd.f32 %v2324, %v2436
        %v2438 = vpop.f32.mrf.mxu0
        %v2439 = vadd.f32 %v2326, %v2438
        %2440 = vmatprep.mubr.bf16.mxu0 %v564
        %2441 = vmatmul.mubr.bf16.gmra.mxu0 %v563
        %v2442 = vpop.f32.mrf.mxu0
        %v2443 = vadd.f32 %v2330, %v2442
        %v2444 = vpop.f32.mrf.mxu0
        %v2445 = vadd.f32 %v2332, %v2444
        %v2446 = vpop.f32.mrf.mxu0
        %v2447 = vadd.f32 %v2334, %v2446
        %v2448 = vpop.f32.mrf.mxu0
        %v2449 = vadd.f32 %v2336, %v2448
        %2450 = vmatprep.mubr.bf16.mxu0 %v571
        %2451 = vmatmul.mubr.bf16.gmra.mxu0 %v570
        %v2452 = vpop.f32.mrf.mxu0
        %v2453 = vadd.f32 %v2340, %v2452
        %v2454 = vpop.f32.mrf.mxu0
        %v2455 = vadd.f32 %v2342, %v2454
        %v2456 = vpop.f32.mrf.mxu0
        %v2457 = vadd.f32 %v2344, %v2456
        %v2458 = vpop.f32.mrf.mxu0
        %v2459 = vadd.f32 %v2346, %v2458
        %2460 = vmatprep.mubr.bf16.mxu0 %v578
        %2461 = vmatmul.mubr.bf16.gmra.mxu0 %v577
        %v2462 = vpop.f32.mrf.mxu0
        %v2463 = vadd.f32 %v2350, %v2462
        %v2464 = vpop.f32.mrf.mxu0
        %v2465 = vadd.f32 %v2352, %v2464
        %v2466 = vpop.f32.mrf.mxu0
        %v2467 = vadd.f32 %v2354, %v2466
        %v2468 = vpop.f32.mrf.mxu0
        %v2469 = vadd.f32 %v2356, %v2468
        %2470 = vmatprep.mubr.bf16.mxu0 %v585
        %2471 = vmatmul.mubr.bf16.gmra.mxu0 %v584
        %v2472 = vpop.f32.mrf.mxu0
        %v2473 = vadd.f32 %v2360, %v2472
        %v2474 = vpop.f32.mrf.mxu0
        %v2475 = vadd.f32 %v2362, %v2474
        %v2476 = vpop.f32.mrf.mxu0
        %v2477 = vadd.f32 %v2364, %v2476
        %v2478 = vpop.f32.mrf.mxu0
        %v2479 = vadd.f32 %v2366, %v2478
        %2480 = vmatprep.mubr.bf16.mxu0 %v592
        %2481 = vmatmul.mubr.bf16.gmra.mxu0 %v591
        %v2482 = vpop.f32.mrf.mxu0
        %v2483 = vadd.f32 %v2370, %v2482
        %v2484 = vpop.f32.mrf.mxu0
        %v2485 = vadd.f32 %v2372, %v2484
        %v2486 = vpop.f32.mrf.mxu0
        %v2487 = vadd.f32 %v2374, %v2486
        %v2488 = vpop.f32.mrf.mxu0
        %v2489 = vadd.f32 %v2376, %v2488
        %2490 = vmatprep.mubr.bf16.mxu0 %v599
        %2491 = vmatmul.mubr.bf16.gmra.mxu0 %v598
        %v2492 = vpop.f32.mrf.mxu0
        %v2493 = vadd.f32 %v2380, %v2492
        %v2494 = vpop.f32.mrf.mxu0
        %v2495 = vadd.f32 %v2382, %v2494
        %v2496 = vpop.f32.mrf.mxu0
        %v2497 = vadd.f32 %v2384, %v2496
        %v2498 = vpop.f32.mrf.mxu0
        %v2499 = vadd.f32 %v2386, %v2498
        %2500 = vmatprep.mubr.bf16.mxu0 %v606
        %2501 = vmatmul.mubr.bf16.gmra.mxu0 %v605
        %v2502 = vpop.f32.mrf.mxu0
        %v2503 = vadd.f32 %v2390, %v2502
        %v2504 = vpop.f32.mrf.mxu0
        %v2505 = vadd.f32 %v2392, %v2504
        %v2506 = vpop.f32.mrf.mxu0
        %v2507 = vadd.f32 %v2394, %v2506
        %v2508 = vpop.f32.mrf.mxu0
        %v2509 = vadd.f32 %v2396, %v2508
        %2510 = vdwg.mxu0
        %2511 = vmatprep.subr.bf16.mxu0 %v1575
        %2512 = vmatpush1.bf16.msra.mxu0 %v1574
        %2513 = vmatprep.subr.bf16.mxu0 %v1571
        %2514 = vmatpush1.bf16.msra.mxu0 %v1570
        %2515 = vmatprep.subr.bf16.mxu0 %v1567
        %2516 = vmatpush1.bf16.msra.mxu0 %v1566
        %2517 = vmatprep.subr.bf16.mxu0 %v1563
        %2518 = vmatpush1.bf16.msra.mxu0 %v1562
        %2519 = vmatprep.subr.bf16.mxu0 %v1559
        %2520 = vmatpush1.bf16.msra.mxu0 %v1558
        %2521 = vmatprep.subr.bf16.mxu0 %v1555
        %2522 = vmatpush1.bf16.msra.mxu0 %v1554
        %2523 = vmatprep.subr.bf16.mxu0 %v1551
        %2524 = vmatpush1.bf16.msra.mxu0 %v1550
        %2525 = vmatprep.subr.bf16.mxu0 %v1547
        %2526 = vmatpush1.bf16.msra.mxu0 %v1546
        %2527 = vmatprep.subr.bf16.mxu0 %v1607
        %2528 = vmatpush2.bf16.msra.mxu0 %v1606
        %2529 = vmatprep.subr.bf16.mxu0 %v1603
        %2530 = vmatpush2.bf16.msra.mxu0 %v1602
        %2531 = vmatprep.subr.bf16.mxu0 %v1599
        %2532 = vmatpush2.bf16.msra.mxu0 %v1598
        %2533 = vmatprep.subr.bf16.mxu0 %v1595
        %2534 = vmatpush2.bf16.msra.mxu0 %v1594
        %2535 = vmatprep.subr.bf16.mxu0 %v1591
        %2536 = vmatpush2.bf16.msra.mxu0 %v1590
        %2537 = vmatprep.subr.bf16.mxu0 %v1587
        %2538 = vmatpush2.bf16.msra.mxu0 %v1586
        %2539 = vmatprep.subr.bf16.mxu0 %v1583
        %2540 = vmatpush2.bf16.msra.mxu0 %v1582
        %2541 = vmatprep.subr.bf16.mxu0 %v1579
        %2542 = vmatpush2.bf16.msra.mxu0 %v1578
        %2543 = vmatprep.mubr.bf16.mxu0 %v559
        %2544 = vmatmul.mubr.bf16.gmra.mxu0 %v558
        %v2545 = vpop.f32.mrf.mxu0
        %v2546 = vadd.f32 %v2433, %v2545
        %v2547 = vpop.f32.mrf.mxu0
        %v2548 = vadd.f32 %v2435, %v2547
        %v2549 = vpop.f32.mrf.mxu0
        %v2550 = vadd.f32 %v2437, %v2549
        %v2551 = vpop.f32.mrf.mxu0
        %v2552 = vadd.f32 %v2439, %v2551
        %2553 = vmatprep.mubr.bf16.mxu0 %v566
        %2554 = vmatmul.mubr.bf16.gmra.mxu0 %v565
        %v2555 = vpop.f32.mrf.mxu0
        %v2556 = vadd.f32 %v2443, %v2555
        %v2557 = vpop.f32.mrf.mxu0
        %v2558 = vadd.f32 %v2445, %v2557
        %v2559 = vpop.f32.mrf.mxu0
        %v2560 = vadd.f32 %v2447, %v2559
        %v2561 = vpop.f32.mrf.mxu0
        %v2562 = vadd.f32 %v2449, %v2561
        %2563 = vmatprep.mubr.bf16.mxu0 %v573
        %2564 = vmatmul.mubr.bf16.gmra.mxu0 %v572
        %v2565 = vpop.f32.mrf.mxu0
        %v2566 = vadd.f32 %v2453, %v2565
        %v2567 = vpop.f32.mrf.mxu0
        %v2568 = vadd.f32 %v2455, %v2567
        %v2569 = vpop.f32.mrf.mxu0
        %v2570 = vadd.f32 %v2457, %v2569
        %v2571 = vpop.f32.mrf.mxu0
        %v2572 = vadd.f32 %v2459, %v2571
        %2573 = vmatprep.mubr.bf16.mxu0 %v580
        %2574 = vmatmul.mubr.bf16.gmra.mxu0 %v579
        %v2575 = vpop.f32.mrf.mxu0
        %v2576 = vadd.f32 %v2463, %v2575
        %v2577 = vpop.f32.mrf.mxu0
        %v2578 = vadd.f32 %v2465, %v2577
        %v2579 = vpop.f32.mrf.mxu0
        %v2580 = vadd.f32 %v2467, %v2579
        %v2581 = vpop.f32.mrf.mxu0
        %v2582 = vadd.f32 %v2469, %v2581
        %2583 = vmatprep.mubr.bf16.mxu0 %v587
        %2584 = vmatmul.mubr.bf16.gmra.mxu0 %v586
        %v2585 = vpop.f32.mrf.mxu0
        %v2586 = vadd.f32 %v2473, %v2585
        %v2587 = vpop.f32.mrf.mxu0
        %v2588 = vadd.f32 %v2475, %v2587
        %v2589 = vpop.f32.mrf.mxu0
        %v2590 = vadd.f32 %v2477, %v2589
        %v2591 = vpop.f32.mrf.mxu0
        %v2592 = vadd.f32 %v2479, %v2591
        %2593 = vmatprep.mubr.bf16.mxu0 %v594
        %2594 = vmatmul.mubr.bf16.gmra.mxu0 %v593
        %v2595 = vpop.f32.mrf.mxu0
        %v2596 = vadd.f32 %v2483, %v2595
        %v2597 = vpop.f32.mrf.mxu0
        %v2598 = vadd.f32 %v2485, %v2597
        %v2599 = vpop.f32.mrf.mxu0
        %v2600 = vadd.f32 %v2487, %v2599
        %v2601 = vpop.f32.mrf.mxu0
        %v2602 = vadd.f32 %v2489, %v2601
        %2603 = vmatprep.mubr.bf16.mxu0 %v601
        %2604 = vmatmul.mubr.bf16.gmra.mxu0 %v600
        %v2605 = vpop.f32.mrf.mxu0
        %v2606 = vadd.f32 %v2493, %v2605
        %v2607 = vpop.f32.mrf.mxu0
        %v2608 = vadd.f32 %v2495, %v2607
        %v2609 = vpop.f32.mrf.mxu0
        %v2610 = vadd.f32 %v2497, %v2609
        %v2611 = vpop.f32.mrf.mxu0
        %v2612 = vadd.f32 %v2499, %v2611
        %2613 = vmatprep.mubr.bf16.mxu0 %v608
        %2614 = vmatmul.mubr.bf16.gmra.mxu0 %v607
        %v2615 = vpop.f32.mrf.mxu0
        %v2616 = vadd.f32 %v2503, %v2615
        %v2617 = vpop.f32.mrf.mxu0
        %v2618 = vadd.f32 %v2505, %v2617
        %v2619 = vpop.f32.mrf.mxu0
        %v2620 = vadd.f32 %v2507, %v2619
        %v2621 = vpop.f32.mrf.mxu0
        %v2622 = vadd.f32 %v2509, %v2621
        %2623 = vdwg.mxu0
        %2624 = vmatprep.subr.bf16.mxu0 0
        %2625 = vmatpush1.bf16.msra.mxu0 0
        %2626 = vmatprep.subr.bf16.mxu0 0
        %2627 = vmatpush1.bf16.msra.mxu0 0
        %2628 = vmatprep.subr.bf16.mxu0 0
        %2629 = vmatpush1.bf16.msra.mxu0 0
        %2630 = vmatprep.subr.bf16.mxu0 0
        %2631 = vmatpush1.bf16.msra.mxu0 0
        %2632 = vmatprep.subr.bf16.mxu0 0
        %2633 = vmatpush1.bf16.msra.mxu0 0
        %2634 = vmatprep.subr.bf16.mxu0 0
        %2635 = vmatpush1.bf16.msra.mxu0 0
        %2636 = vmatprep.subr.bf16.mxu0 0
        %2637 = vmatpush1.bf16.msra.mxu0 0
        %2638 = vmatprep.subr.bf16.mxu0 %v1611
        %2639 = vmatpush1.bf16.msra.mxu0 %v1610
        %2640 = vmatprep.subr.bf16.mxu0 0
        %2641 = vmatpush2.bf16.msra.mxu0 0
        %2642 = vmatprep.subr.bf16.mxu0 0
        %2643 = vmatpush2.bf16.msra.mxu0 0
        %2644 = vmatprep.subr.bf16.mxu0 0
        %2645 = vmatpush2.bf16.msra.mxu0 0
        %2646 = vmatprep.subr.bf16.mxu0 0
        %2647 = vmatpush2.bf16.msra.mxu0 0
        %2648 = vmatprep.subr.bf16.mxu0 0
        %2649 = vmatpush2.bf16.msra.mxu0 0
        %2650 = vmatprep.subr.bf16.mxu0 0
        %2651 = vmatpush2.bf16.msra.mxu0 0
        %2652 = vmatprep.subr.bf16.mxu0 0
        %2653 = vmatpush2.bf16.msra.mxu0 0
        %2654 = vmatprep.subr.bf16.mxu0 0
        %2655 = vmatpush2.bf16.msra.mxu0 0
        %2656 = vmatprep.mubr.bf16.mxu0 0
        %2657 = vmatmul.mubr.bf16.gmra.mxu0 %v1810
        %v2658 = vpop.f32.mrf.mxu0
        %v2659 = vadd.f32 %v2546, %v2658
        %v2660 = vpop.f32.mrf.mxu0
        %v2661 = vadd.f32 %v2548, %v2660
        %v2662 = vpop.f32.mrf.mxu0
        %v2663 = vadd.f32 %v2550, %v2662
        %v2664 = vpop.f32.mrf.mxu0
        %v2665 = vadd.f32 %v2552, %v2664
        %2666 = vmatprep.mubr.bf16.mxu0 0
        %2667 = vmatmul.mubr.bf16.gmra.mxu0 %v1813
        %v2668 = vpop.f32.mrf.mxu0
        %v2669 = vadd.f32 %v2556, %v2668
        %v2670 = vpop.f32.mrf.mxu0
        %v2671 = vadd.f32 %v2558, %v2670
        %v2672 = vpop.f32.mrf.mxu0
        %v2673 = vadd.f32 %v2560, %v2672
        %v2674 = vpop.f32.mrf.mxu0
        %v2675 = vadd.f32 %v2562, %v2674
        %2676 = vmatprep.mubr.bf16.mxu0 0
        %2677 = vmatmul.mubr.bf16.gmra.mxu0 %v1816
        %v2678 = vpop.f32.mrf.mxu0
        %v2679 = vadd.f32 %v2566, %v2678
        %v2680 = vpop.f32.mrf.mxu0
        %v2681 = vadd.f32 %v2568, %v2680
        %v2682 = vpop.f32.mrf.mxu0
        %v2683 = vadd.f32 %v2570, %v2682
        %v2684 = vpop.f32.mrf.mxu0
        %v2685 = vadd.f32 %v2572, %v2684
        %2686 = vmatprep.mubr.bf16.mxu0 0
        %2687 = vmatmul.mubr.bf16.gmra.mxu0 %v1819
        %v2688 = vpop.f32.mrf.mxu0
        %v2689 = vadd.f32 %v2576, %v2688
        %v2690 = vpop.f32.mrf.mxu0
        %v2691 = vadd.f32 %v2578, %v2690
        %v2692 = vpop.f32.mrf.mxu0
        %v2693 = vadd.f32 %v2580, %v2692
        %v2694 = vpop.f32.mrf.mxu0
        %v2695 = vadd.f32 %v2582, %v2694
        %2696 = vmatprep.mubr.bf16.mxu0 0
        %2697 = vmatmul.mubr.bf16.gmra.mxu0 %v1822
        %v2698 = vpop.f32.mrf.mxu0
        %v2699 = vadd.f32 %v2586, %v2698
        %v2700 = vpop.f32.mrf.mxu0
        %v2701 = vadd.f32 %v2588, %v2700
        %v2702 = vpop.f32.mrf.mxu0
        %v2703 = vadd.f32 %v2590, %v2702
        %v2704 = vpop.f32.mrf.mxu0
        %v2705 = vadd.f32 %v2592, %v2704
        %2706 = vmatprep.mubr.bf16.mxu0 0
        %2707 = vmatmul.mubr.bf16.gmra.mxu0 %v1825
        %v2708 = vpop.f32.mrf.mxu0
        %v2709 = vadd.f32 %v2596, %v2708
        %v2710 = vpop.f32.mrf.mxu0
        %v2711 = vadd.f32 %v2598, %v2710
        %v2712 = vpop.f32.mrf.mxu0
        %v2713 = vadd.f32 %v2600, %v2712
        %v2714 = vpop.f32.mrf.mxu0
        %v2715 = vadd.f32 %v2602, %v2714
        %2716 = vmatprep.mubr.bf16.mxu0 0
        %2717 = vmatmul.mubr.bf16.gmra.mxu0 %v1828
        %v2718 = vpop.f32.mrf.mxu0
        %v2719 = vadd.f32 %v2606, %v2718
        %v2720 = vpop.f32.mrf.mxu0
        %v2721 = vadd.f32 %v2608, %v2720
        %v2722 = vpop.f32.mrf.mxu0
        %v2723 = vadd.f32 %v2610, %v2722
        %v2724 = vpop.f32.mrf.mxu0
        %v2725 = vadd.f32 %v2612, %v2724
        %2726 = vmatprep.mubr.bf16.mxu0 0
        %2727 = vmatmul.mubr.bf16.gmra.mxu0 %v1831
        %v2728 = vpop.f32.mrf.mxu0
        %v2729 = vadd.f32 %v2616, %v2728
        %v2730 = vpop.f32.mrf.mxu0
        %v2731 = vadd.f32 %v2618, %v2730
        %v2732 = vpop.f32.mrf.mxu0
        %v2733 = vadd.f32 %v2620, %v2732
        %v2734 = vpop.f32.mrf.mxu0
        %v2735 = vadd.f32 %v2622, %v2734
        %2736 = vdwg.mxu0
        %v2737 = vmax.f32 %v2207, 0.0
        %v2738 = vmax.f32 %v2209, 0.0
        %v2739 = vmax.f32 %v2659, 0.0
        %v2740 = vmax.f32 %v2661, 0.0
        %v2741 = vmax.f32 %v2211, 0.0
        %v2742 = vmax.f32 %v2213, 0.0
        %v2743 = vmax.f32 %v2663, 0.0
        %v2744 = vmax.f32 %v2665, 0.0
        %v2745 = vmax.f32 %v2217, 0.0
        %v2746 = vmax.f32 %v2219, 0.0
        %v2747 = vmax.f32 %v2669, 0.0
        %v2748 = vmax.f32 %v2671, 0.0
        %v2749 = vmax.f32 %v2221, 0.0
        %v2750 = vmax.f32 %v2223, 0.0
        %v2751 = vmax.f32 %v2673, 0.0
        %v2752 = vmax.f32 %v2675, 0.0
        %v2753 = vmax.f32 %v2227, 0.0
        %v2754 = vmax.f32 %v2229, 0.0
        %v2755 = vmax.f32 %v2679, 0.0
        %v2756 = vmax.f32 %v2681, 0.0
        %v2757 = vmax.f32 %v2231, 0.0
        %v2758 = vmax.f32 %v2233, 0.0
        %v2759 = vmax.f32 %v2683, 0.0
        %v2760 = vmax.f32 %v2685, 0.0
        %v2761 = vmax.f32 %v2237, 0.0
        %v2762 = vmax.f32 %v2239, 0.0
        %v2763 = vmax.f32 %v2689, 0.0
        %v2764 = vmax.f32 %v2691, 0.0
        %v2765 = vmax.f32 %v2241, 0.0
        %v2766 = vmax.f32 %v2243, 0.0
        %v2767 = vmax.f32 %v2693, 0.0
        %v2768 = vmax.f32 %v2695, 0.0
        %v2769 = vmax.f32 %v2247, 0.0
        %v2770 = vmax.f32 %v2249, 0.0
        %v2771 = vmax.f32 %v2699, 0.0
        %v2772 = vmax.f32 %v2701, 0.0
        %v2773 = vmax.f32 %v2251, 0.0
        %v2774 = vmax.f32 %v2253, 0.0
        %v2775 = vmax.f32 %v2703, 0.0
        %v2776 = vmax.f32 %v2705, 0.0
        %v2777 = vmax.f32 %v2257, 0.0
        %v2778 = vmax.f32 %v2259, 0.0
        %v2779 = vmax.f32 %v2709, 0.0
        %v2780 = vmax.f32 %v2711, 0.0
        %v2781 = vmax.f32 %v2261, 0.0
        %v2782 = vmax.f32 %v2263, 0.0
        %v2783 = vmax.f32 %v2713, 0.0
        %v2784 = vmax.f32 %v2715, 0.0
        %v2785 = vmax.f32 %v2267, 0.0
        %v2786 = vmax.f32 %v2269, 0.0
        %v2787 = vmax.f32 %v2719, 0.0
        %v2788 = vmax.f32 %v2721, 0.0
        %v2789 = vmax.f32 %v2271, 0.0
        %v2790 = vmax.f32 %v2273, 0.0
        %v2791 = vmax.f32 %v2723, 0.0
        %v2792 = vmax.f32 %v2725, 0.0
        %v2793 = vmax.f32 %v2277, 0.0
        %v2794 = vmax.f32 %v2279, 0.0
        %v2795 = vmax.f32 %v2729, 0.0
        %v2796 = vmax.f32 %v2731, 0.0
        %v2797 = vmax.f32 %v2281, 0.0
        %v2798 = vmax.f32 %v2283, 0.0
        %v2799 = vmax.f32 %v2733, 0.0
        %v2800 = vmax.f32 %v2735, 0.0
        %v2801 = vpack.c.bf16 %v2741, %v2737
        %v2802 = vpack.c.bf16 %v2742, %v2738
        %v2803 = vpack.c.bf16 %v2743, %v2739
        %v2804 = vpack.c.bf16 %v2744, %v2740
        %v2805 = vpack.c.bf16 %v2749, %v2745
        %v2806 = vpack.c.bf16 %v2750, %v2746
        %v2807 = vpack.c.bf16 %v2751, %v2747
        %v2808 = vpack.c.bf16 %v2752, %v2748
        %v2809 = vpack.c.bf16 %v2757, %v2753
        %v2810 = vpack.c.bf16 %v2758, %v2754
        %v2811 = vpack.c.bf16 %v2759, %v2755
        %v2812 = vpack.c.bf16 %v2760, %v2756
        %v2813 = vpack.c.bf16 %v2765, %v2761
        %v2814 = vpack.c.bf16 %v2766, %v2762
        %v2815 = vpack.c.bf16 %v2767, %v2763
        %v2816 = vpack.c.bf16 %v2768, %v2764
        %v2817 = vpack.c.bf16 %v2773, %v2769
        %v2818 = vpack.c.bf16 %v2774, %v2770
        %v2819 = vpack.c.bf16 %v2775, %v2771
        %v2820 = vpack.c.bf16 %v2776, %v2772
        %v2821 = vpack.c.bf16 %v2781, %v2777
        %v2822 = vpack.c.bf16 %v2782, %v2778
        %v2823 = vpack.c.bf16 %v2783, %v2779
        %v2824 = vpack.c.bf16 %v2784, %v2780
        %v2825 = vpack.c.bf16 %v2789, %v2785
        %v2826 = vpack.c.bf16 %v2790, %v2786
        %v2827 = vpack.c.bf16 %v2791, %v2787
        %v2828 = vpack.c.bf16 %v2792, %v2788
        %v2829 = vpack.c.bf16 %v2797, %v2793
        %v2830 = vpack.c.bf16 %v2798, %v2794
        %v2831 = vpack.c.bf16 %v2799, %v2795
        %v2832 = vpack.c.bf16 %v2800, %v2796
        %v2833 = vld [vmem:[%s4] sm:$0xf]
        %v2834 = vld [vmem:[%s4 + $0x4] sm:$0xf]
        %v2835 = vld [vmem:[%s4 + $0x8] sm:$0xf]
        %v2836 = vld [vmem:[%s4 + $0xc] sm:$0xf]
        %v2837 = vld [vmem:[%s4 + $0x10] sm:$0xf]
        %v2838 = vld [vmem:[%s4 + $0x14] sm:$0xf]
        %v2839 = vld [vmem:[%s4 + $0x18] sm:$0xf]
        %v2840 = vld [vmem:[%s4 + $0x1c] sm:$0xf]
        %v2841 = vld [vmem:[%s4 + $0x20] sm:$0xf]
        %v2842 = vld [vmem:[%s4 + $0x24] sm:$0xf]
        %v2843 = vld [vmem:[%s4 + $0x28] sm:$0xf]
        %v2844 = vld [vmem:[%s4 + $0x2c] sm:$0xf]
        %v2845 = vld [vmem:[%s4 + $0x30] sm:$0xf]
        %v2846 = vld [vmem:[%s4 + $0x34] sm:$0xf]
        %v2847 = vld [vmem:[%s4 + $0x38] sm:$0xf]
        %v2848 = vld [vmem:[%s4 + $0x3c] sm:$0xf]
        %v2849 = vld [vmem:[%s4 + $0x40] sm:$0xf]
        %v2850 = vld [vmem:[%s4 + $0x44] sm:$0xf]
        %v2851 = vld [vmem:[%s4 + $0x48] sm:$0xf]
        %v2852 = vld [vmem:[%s4 + $0x4c] sm:$0xf]
        %v2853 = vld [vmem:[%s4 + $0x50] sm:$0xf]
        %v2854 = vld [vmem:[%s4 + $0x54] sm:$0xf]
        %v2855 = vld [vmem:[%s4 + $0x58] sm:$0xf]
        %v2856 = vld [vmem:[%s4 + $0x5c] sm:$0xf]
        %v2857 = vld [vmem:[%s4 + $0x60] sm:$0xf]
        %v2858 = vld [vmem:[%s4 + $0x64] sm:$0xf]
        %v2859 = vld [vmem:[%s4 + $0x68] sm:$0xf]
        %v2860 = vld [vmem:[%s4 + $0x6c] sm:$0xf]
        %v2861 = vld [vmem:[%s4 + $0x70] sm:$0xf]
        %v2862 = vld [vmem:[%s4 + $0x74] sm:$0xf]
        %v2863 = vld [vmem:[%s4 + $0x78] sm:$0xf]
        %v2864 = vld [vmem:[%s4 + $0x7c] sm:$0xf]
        %v2865 = vld [vmem:[%s4 + $0x80] sm:$0xf]
        %v2866 = vld [vmem:[%s4 + $0x84] sm:$0xf]
        %v2867 = vld [vmem:[%s4 + $0x88] sm:$0xf]
        %v2868 = vld [vmem:[%s4 + $0x8c] sm:$0xf]
        %v2869 = vld [vmem:[%s4 + $0x90] sm:$0xf]
        %v2870 = vld [vmem:[%s4 + $0x94] sm:$0xf]
        %v2871 = vld [vmem:[%s4 + $0x98] sm:$0xf]
        %v2872 = vld [vmem:[%s4 + $0x9c] sm:$0xf]
        %v2873 = vld [vmem:[%s4 + $0xa0] sm:$0xf]
        %v2874 = vld [vmem:[%s4 + $0xa4] sm:$0xf]
        %v2875 = vld [vmem:[%s4 + $0xa8] sm:$0xf]
        %v2876 = vld [vmem:[%s4 + $0xac] sm:$0xf]
        %v2877 = vld [vmem:[%s4 + $0xb0] sm:$0xf]
        %v2878 = vld [vmem:[%s4 + $0xb4] sm:$0xf]
        %v2879 = vld [vmem:[%s4 + $0xb8] sm:$0xf]
        %v2880 = vld [vmem:[%s4 + $0xbc] sm:$0xf]
        %v2881 = vld [vmem:[%s4 + $0xc0] sm:$0xf]
        %v2882 = vld [vmem:[%s4 + $0xc4] sm:$0xf]
        %v2883 = vld [vmem:[%s5] sm:$0x1]
        %v2885 = vlaneseq
        %v2886 = vshrl.u32 %v2885, 7
        %v2887 = vsub.s32 0, %v2886
        %v2888 = vrot.slane %v2883, %v2887
        %v2940 = vunpack.c.l.b16 %v2833
        %v2941 = vunpack.c.l.b16 %v2834
        %v2942 = vunpack.c.l.b16 %v2835
        %v2943 = vunpack.c.l.b16 %v2836
        %v2944 = vunpack.c.l.b16 %v2837
        %v2945 = vunpack.c.l.b16 %v2838
        %v2946 = vunpack.c.l.b16 %v2839
        %v2947 = vunpack.c.l.b16 %v2840
        %v2948 = vunpack.c.l.b16 %v2841
        %v2949 = vunpack.c.l.b16 %v2842
        %v2950 = vunpack.c.l.b16 %v2843
        %v2951 = vunpack.c.l.b16 %v2844
        %v2952 = vunpack.c.l.b16 %v2845
        %v2953 = vunpack.c.l.b16 %v2846
        %v2954 = vunpack.c.l.b16 %v2847
        %v2955 = vunpack.c.l.b16 %v2848
        %v2956 = vunpack.c.l.b16 %v2849
        %v2957 = vunpack.c.l.b16 %v2850
        %v2958 = vunpack.c.l.b16 %v2851
        %v2959 = vunpack.c.l.b16 %v2852
        %v2960 = vunpack.c.l.b16 %v2853
        %v2961 = vunpack.c.l.b16 %v2854
        %v2962 = vunpack.c.l.b16 %v2855
        %v2963 = vunpack.c.l.b16 %v2856
        %v2964 = vunpack.c.l.b16 %v2857
        %v2965 = vunpack.c.l.b16 %v2858
        %v2966 = vunpack.c.l.b16 %v2859
        %v2967 = vunpack.c.l.b16 %v2860
        %v2968 = vunpack.c.l.b16 %v2861
        %v2969 = vunpack.c.l.b16 %v2862
        %v2970 = vunpack.c.l.b16 %v2863
        %v2971 = vunpack.c.l.b16 %v2864
        %v2972 = vunpack.c.l.b16 %v2865
        %v2973 = vunpack.c.l.b16 %v2866
        %v2974 = vunpack.c.l.b16 %v2867
        %v2975 = vunpack.c.l.b16 %v2868
        %v2976 = vunpack.c.l.b16 %v2869
        %v2977 = vunpack.c.l.b16 %v2870
        %v2978 = vunpack.c.l.b16 %v2871
        %v2979 = vunpack.c.l.b16 %v2872
        %v2980 = vunpack.c.l.b16 %v2873
        %v2981 = vunpack.c.l.b16 %v2874
        %v2982 = vunpack.c.l.b16 %v2875
        %v2983 = vunpack.c.l.b16 %v2876
        %v2984 = vunpack.c.l.b16 %v2877
        %v2985 = vunpack.c.l.b16 %v2878
        %v2986 = vunpack.c.l.b16 %v2879
        %v2987 = vunpack.c.l.b16 %v2880
        %v2988 = vunpack.c.l.b16 %v2881
        %v2989 = vunpack.c.l.b16 %v2882
        %v2990 = vpack.c.b16 %v2941, %v2940
        %v2991 = vpack.c.b16 %v2943, %v2942
        %v2992 = vpack.c.b16 %v2945, %v2944
        %v2993 = vpack.c.b16 %v2947, %v2946
        %v2994 = vpack.c.b16 %v2949, %v2948
        %v2995 = vpack.c.b16 %v2951, %v2950
        %v2996 = vpack.c.b16 %v2953, %v2952
        %v2997 = vpack.c.b16 %v2955, %v2954
        %v2998 = vpack.c.b16 %v2957, %v2956
        %v2999 = vpack.c.b16 %v2959, %v2958
        %v3000 = vpack.c.b16 %v2961, %v2960
        %v3001 = vpack.c.b16 %v2963, %v2962
        %v3002 = vpack.c.b16 %v2965, %v2964
        %v3003 = vpack.c.b16 %v2967, %v2966
        %v3004 = vpack.c.b16 %v2969, %v2968
        %v3005 = vpack.c.b16 %v2971, %v2970
        %v3006 = vpack.c.b16 %v2973, %v2972
        %v3007 = vpack.c.b16 %v2975, %v2974
        %v3008 = vpack.c.b16 %v2977, %v2976
        %v3009 = vpack.c.b16 %v2979, %v2978
        %v3010 = vpack.c.b16 %v2981, %v2980
        %v3011 = vpack.c.b16 %v2983, %v2982
        %v3012 = vpack.c.b16 %v2985, %v2984
        %v3013 = vpack.c.b16 %v2987, %v2986
        %v3014 = vpack.c.b16 %v2989, %v2988
        %v3041 = vsel %vm1808, %v2804, 0
        %v3044 = vsel %vm1808, %v2808, 0
        %v3047 = vsel %vm1808, %v2812, 0
        %v3050 = vsel %vm1808, %v2816, 0
        %v3053 = vsel %vm1808, %v2820, 0
        %v3056 = vsel %vm1808, %v2824, 0
        %v3059 = vsel %vm1808, %v2828, 0
        %v3062 = vsel %vm1808, %v2832, 0
        %3064 = vmatprep.subr.bf16.mxu0 0
        %3065 = vmatpush1.bf16.msra.mxu0 %v2997
        %3066 = vmatprep.subr.bf16.mxu0 0
        %3067 = vmatpush1.bf16.msra.mxu0 %v2996
        %3068 = vmatprep.subr.bf16.mxu0 0
        %3069 = vmatpush1.bf16.msra.mxu0 %v2995
        %3070 = vmatprep.subr.bf16.mxu0 0
        %3071 = vmatpush1.bf16.msra.mxu0 %v2994
        %3072 = vmatprep.subr.bf16.mxu0 0
        %3073 = vmatpush1.bf16.msra.mxu0 %v2993
        %3074 = vmatprep.subr.bf16.mxu0 0
        %3075 = vmatpush1.bf16.msra.mxu0 %v2992
        %3076 = vmatprep.subr.bf16.mxu0 0
        %3077 = vmatpush1.bf16.msra.mxu0 %v2991
        %3078 = vmatprep.subr.bf16.mxu0 0
        %3079 = vmatpush1.bf16.msra.mxu0 %v2990
        %3080 = vmatprep.subr.bf16.mxu0 0
        %3081 = vmatpush2.bf16.msra.mxu0 %v3005
        %3082 = vmatprep.subr.bf16.mxu0 0
        %3083 = vmatpush2.bf16.msra.mxu0 %v3004
        %3084 = vmatprep.subr.bf16.mxu0 0
        %3085 = vmatpush2.bf16.msra.mxu0 %v3003
        %3086 = vmatprep.subr.bf16.mxu0 0
        %3087 = vmatpush2.bf16.msra.mxu0 %v3002
        %3088 = vmatprep.subr.bf16.mxu0 0
        %3089 = vmatpush2.bf16.msra.mxu0 %v3001
        %3090 = vmatprep.subr.bf16.mxu0 0
        %3091 = vmatpush2.bf16.msra.mxu0 %v3000
        %3092 = vmatprep.subr.bf16.mxu0 0
        %3093 = vmatpush2.bf16.msra.mxu0 %v2999
        %3094 = vmatprep.subr.bf16.mxu0 0
        %3095 = vmatpush2.bf16.msra.mxu0 %v2998
        %3096 = vmatprep.mubr.bf16.mxu0 %v2802
        %3097 = vmatmul.mubr.bf16.gmra.mxu0 %v2801
        %v3098 = vpop.f32.mrf.mxu0
        %v3099 = vadd.f32 %v2888, %v3098
        %v3100 = vpop.f32.mrf.mxu0
        %v3101 = vpop.f32.mrf.mxu0
        %v3102 = vadd.f32 %v2888, %v3101
        %v3103 = vpop.f32.mrf.mxu0
        %3104 = vmatprep.mubr.bf16.mxu0 %v2806
        %3105 = vmatmul.mubr.bf16.gmra.mxu0 %v2805
        %v3106 = vpop.f32.mrf.mxu0
        %v3107 = vadd.f32 %v2888, %v3106
        %v3108 = vpop.f32.mrf.mxu0
        %v3109 = vpop.f32.mrf.mxu0
        %v3110 = vadd.f32 %v2888, %v3109
        %v3111 = vpop.f32.mrf.mxu0
        %3112 = vmatprep.mubr.bf16.mxu0 %v2810
        %3113 = vmatmul.mubr.bf16.gmra.mxu0 %v2809
        %v3114 = vpop.f32.mrf.mxu0
        %v3115 = vadd.f32 %v2888, %v3114
        %v3116 = vpop.f32.mrf.mxu0
        %v3117 = vpop.f32.mrf.mxu0
        %v3118 = vadd.f32 %v2888, %v3117
        %v3119 = vpop.f32.mrf.mxu0
        %3120 = vmatprep.mubr.bf16.mxu0 %v2814
        %3121 = vmatmul.mubr.bf16.gmra.mxu0 %v2813
        %v3122 = vpop.f32.mrf.mxu0
        %v3123 = vadd.f32 %v2888, %v3122
        %v3124 = vpop.f32.mrf.mxu0
        %v3125 = vpop.f32.mrf.mxu0
        %v3126 = vadd.f32 %v2888, %v3125
        %v3127 = vpop.f32.mrf.mxu0
        %3128 = vmatprep.mubr.bf16.mxu0 %v2818
        %3129 = vmatmul.mubr.bf16.gmra.mxu0 %v2817
        %v3130 = vpop.f32.mrf.mxu0
        %v3131 = vadd.f32 %v2888, %v3130
        %v3132 = vpop.f32.mrf.mxu0
        %v3133 = vpop.f32.mrf.mxu0
        %v3134 = vadd.f32 %v2888, %v3133
        %v3135 = vpop.f32.mrf.mxu0
        %3136 = vmatprep.mubr.bf16.mxu0 %v2822
        %3137 = vmatmul.mubr.bf16.gmra.mxu0 %v2821
        %v3138 = vpop.f32.mrf.mxu0
        %v3139 = vadd.f32 %v2888, %v3138
        %v3140 = vpop.f32.mrf.mxu0
        %v3141 = vpop.f32.mrf.mxu0
        %v3142 = vadd.f32 %v2888, %v3141
        %v3143 = vpop.f32.mrf.mxu0
        %3144 = vmatprep.mubr.bf16.mxu0 %v2826
        %3145 = vmatmul.mubr.bf16.gmra.mxu0 %v2825
        %v3146 = vpop.f32.mrf.mxu0
        %v3147 = vadd.f32 %v2888, %v3146
        %v3148 = vpop.f32.mrf.mxu0
        %v3149 = vpop.f32.mrf.mxu0
        %v3150 = vadd.f32 %v2888, %v3149
        %v3151 = vpop.f32.mrf.mxu0
        %3152 = vmatprep.mubr.bf16.mxu0 %v2830
        %3153 = vmatmul.mubr.bf16.gmra.mxu0 %v2829
        %v3154 = vpop.f32.mrf.mxu0
        %v3155 = vadd.f32 %v2888, %v3154
        %v3156 = vpop.f32.mrf.mxu0
        %v3157 = vpop.f32.mrf.mxu0
        %v3158 = vadd.f32 %v2888, %v3157
        %v3159 = vpop.f32.mrf.mxu0
        %3160 = vdwg.mxu0
        %3161 = vmatprep.subr.bf16.mxu0 0
        %3162 = vmatpush1.bf16.msra.mxu0 %v3013
        %3163 = vmatprep.subr.bf16.mxu0 0
        %3164 = vmatpush1.bf16.msra.mxu0 %v3012
        %3165 = vmatprep.subr.bf16.mxu0 0
        %3166 = vmatpush1.bf16.msra.mxu0 %v3011
        %3167 = vmatprep.subr.bf16.mxu0 0
        %3168 = vmatpush1.bf16.msra.mxu0 %v3010
        %3169 = vmatprep.subr.bf16.mxu0 0
        %3170 = vmatpush1.bf16.msra.mxu0 %v3009
        %3171 = vmatprep.subr.bf16.mxu0 0
        %3172 = vmatpush1.bf16.msra.mxu0 %v3008
        %3173 = vmatprep.subr.bf16.mxu0 0
        %3174 = vmatpush1.bf16.msra.mxu0 %v3007
        %3175 = vmatprep.subr.bf16.mxu0 0
        %3176 = vmatpush1.bf16.msra.mxu0 %v3006
        %3177 = vmatprep.subr.bf16.mxu0 0
        %3178 = vmatpush2.bf16.msra.mxu0 0
        %3179 = vmatprep.subr.bf16.mxu0 0
        %3180 = vmatpush2.bf16.msra.mxu0 0
        %3181 = vmatprep.subr.bf16.mxu0 0
        %3182 = vmatpush2.bf16.msra.mxu0 0
        %3183 = vmatprep.subr.bf16.mxu0 0
        %3184 = vmatpush2.bf16.msra.mxu0 0
        %3185 = vmatprep.subr.bf16.mxu0 0
        %3186 = vmatpush2.bf16.msra.mxu0 0
        %3187 = vmatprep.subr.bf16.mxu0 0
        %3188 = vmatpush2.bf16.msra.mxu0 0
        %3189 = vmatprep.subr.bf16.mxu0 0
        %3190 = vmatpush2.bf16.msra.mxu0 0
        %3191 = vmatprep.subr.bf16.mxu0 0
        %3192 = vmatpush2.bf16.msra.mxu0 %v3014
        %3193 = vmatprep.mubr.bf16.mxu0 %v3041
        %3194 = vmatmul.mubr.bf16.gmra.mxu0 %v2803
        %v3195 = vpop.f32.mrf.mxu0
        %v3196 = vadd.f32 %v3099, %v3195
        %v3197 = vpop.f32.mrf.mxu0
        %v3198 = vpop.f32.mrf.mxu0
        %v3199 = vadd.f32 %v3102, %v3198
        %v3200 = vpop.f32.mrf.mxu0
        %3201 = vmatprep.mubr.bf16.mxu0 %v3044
        %3202 = vmatmul.mubr.bf16.gmra.mxu0 %v2807
        %v3203 = vpop.f32.mrf.mxu0
        %v3204 = vadd.f32 %v3107, %v3203
        %v3205 = vpop.f32.mrf.mxu0
        %v3206 = vpop.f32.mrf.mxu0
        %v3207 = vadd.f32 %v3110, %v3206
        %v3208 = vpop.f32.mrf.mxu0
        %3209 = vmatprep.mubr.bf16.mxu0 %v3047
        %3210 = vmatmul.mubr.bf16.gmra.mxu0 %v2811
        %v3211 = vpop.f32.mrf.mxu0
        %v3212 = vadd.f32 %v3115, %v3211
        %v3213 = vpop.f32.mrf.mxu0
        %v3214 = vpop.f32.mrf.mxu0
        %v3215 = vadd.f32 %v3118, %v3214
        %v3216 = vpop.f32.mrf.mxu0
        %3217 = vmatprep.mubr.bf16.mxu0 %v3050
        %3218 = vmatmul.mubr.bf16.gmra.mxu0 %v2815
        %v3219 = vpop.f32.mrf.mxu0
        %v3220 = vadd.f32 %v3123, %v3219
        %v3221 = vpop.f32.mrf.mxu0
        %v3222 = vpop.f32.mrf.mxu0
        %v3223 = vadd.f32 %v3126, %v3222
        %v3224 = vpop.f32.mrf.mxu0
        %3225 = vmatprep.mubr.bf16.mxu0 %v3053
        %3226 = vmatmul.mubr.bf16.gmra.mxu0 %v2819
        %v3227 = vpop.f32.mrf.mxu0
        %v3228 = vadd.f32 %v3131, %v3227
        %v3229 = vpop.f32.mrf.mxu0
        %v3230 = vpop.f32.mrf.mxu0
        %v3231 = vadd.f32 %v3134, %v3230
        %v3232 = vpop.f32.mrf.mxu0
        %3233 = vmatprep.mubr.bf16.mxu0 %v3056
        %3234 = vmatmul.mubr.bf16.gmra.mxu0 %v2823
        %v3235 = vpop.f32.mrf.mxu0
        %v3236 = vadd.f32 %v3139, %v3235
        %v3237 = vpop.f32.mrf.mxu0
        %v3238 = vpop.f32.mrf.mxu0
        %v3239 = vadd.f32 %v3142, %v3238
        %v3240 = vpop.f32.mrf.mxu0
        %3241 = vmatprep.mubr.bf16.mxu0 %v3059
        %3242 = vmatmul.mubr.bf16.gmra.mxu0 %v2827
        %v3243 = vpop.f32.mrf.mxu0
        %v3244 = vadd.f32 %v3147, %v3243
        %v3245 = vpop.f32.mrf.mxu0
        %v3246 = vpop.f32.mrf.mxu0
        %v3247 = vadd.f32 %v3150, %v3246
        %v3248 = vpop.f32.mrf.mxu0
        %3249 = vmatprep.mubr.bf16.mxu0 %v3062
        %3250 = vmatmul.mubr.bf16.gmra.mxu0 %v2831
        %v3251 = vpop.f32.mrf.mxu0
        %v3252 = vadd.f32 %v3155, %v3251
        %v3253 = vpop.f32.mrf.mxu0
        %v3254 = vpop.f32.mrf.mxu0
        %v3255 = vadd.f32 %v3158, %v3254
        %v3256 = vpop.f32.mrf.mxu0
        %3257 = vdwg.mxu0
        %v3258 = vmul.f32 %v3196, 0.5
        %v3259 = vmul.f32 %v3199, 0.5
        %v3260 = vmul.f32 %v3204, 0.5
        %v3261 = vmul.f32 %v3207, 0.5
        %v3262 = vmul.f32 %v3212, 0.5
        %v3263 = vmul.f32 %v3215, 0.5
        %v3264 = vmul.f32 %v3220, 0.5
        %v3265 = vmul.f32 %v3223, 0.5
        %v3266 = vmul.f32 %v3228, 0.5
        %v3267 = vmul.f32 %v3231, 0.5
        %v3268 = vmul.f32 %v3236, 0.5
        %v3269 = vmul.f32 %v3239, 0.5
        %v3270 = vmul.f32 %v3244, 0.5
        %v3271 = vmul.f32 %v3247, 0.5
        %v3272 = vmul.f32 %v3252, 0.5
        %v3273 = vmul.f32 %v3255, 0.5
        %v3274 = vmul.f32 %v3258, 1.442695
        %v3275 = vpow.pop %v3274
        %v3276 = vmul.f32 %v3259, 1.442695
        %v3277 = vpow.pop %v3276
        %v3278 = vmul.f32 %v3260, 1.442695
        %v3279 = vpow.pop %v3278
        %v3280 = vmul.f32 %v3261, 1.442695
        %v3281 = vpow.pop %v3280
        %v3282 = vmul.f32 %v3262, 1.442695
        %v3283 = vpow.pop %v3282
        %v3284 = vmul.f32 %v3263, 1.442695
        %v3285 = vpow.pop %v3284
        %v3286 = vmul.f32 %v3264, 1.442695
        %v3287 = vpow.pop %v3286
        %v3288 = vmul.f32 %v3265, 1.442695
        %v3289 = vpow.pop %v3288
        %v3290 = vmul.f32 %v3266, 1.442695
        %v3291 = vpow.pop %v3290
        %v3292 = vmul.f32 %v3267, 1.442695
        %v3293 = vpow.pop %v3292
        %v3294 = vmul.f32 %v3268, 1.442695
        %v3295 = vpow.pop %v3294
        %v3296 = vmul.f32 %v3269, 1.442695
        %v3297 = vpow.pop %v3296
        %v3298 = vmul.f32 %v3270, 1.442695
        %v3299 = vpow.pop %v3298
        %v3300 = vmul.f32 %v3271, 1.442695
        %v3301 = vpow.pop %v3300
        %v3302 = vmul.f32 %v3272, 1.442695
        %v3303 = vpow.pop %v3302
        %v3304 = vmul.f32 %v3273, 1.442695
        %v3305 = vpow.pop %v3304
        %3322 = vrot.lane.b32.xlu0 %v3275, 64
        %v3323 = vpop.permute.xlu0 %3322
        %3324 = vrot.lane.b32.xlu0 %v3277, 64
        %v3325 = vpop.permute.xlu0 %3324
        %3326 = vrot.lane.b32.xlu0 %v3279, 64
        %v3327 = vpop.permute.xlu0 %3326
        %3328 = vrot.lane.b32.xlu0 %v3281, 64
        %v3329 = vpop.permute.xlu0 %3328
        %3330 = vrot.lane.b32.xlu0 %v3283, 64
        %v3331 = vpop.permute.xlu0 %3330
        %3332 = vrot.lane.b32.xlu0 %v3285, 64
        %v3333 = vpop.permute.xlu0 %3332
        %3334 = vrot.lane.b32.xlu0 %v3287, 64
        %v3335 = vpop.permute.xlu0 %3334
        %3336 = vrot.lane.b32.xlu0 %v3289, 64
        %v3337 = vpop.permute.xlu0 %3336
        %3338 = vrot.lane.b32.xlu0 %v3291, 64
        %v3339 = vpop.permute.xlu0 %3338
        %3340 = vrot.lane.b32.xlu0 %v3293, 64
        %v3341 = vpop.permute.xlu0 %3340
        %3342 = vrot.lane.b32.xlu0 %v3295, 64
        %v3343 = vpop.permute.xlu0 %3342
        %3344 = vrot.lane.b32.xlu0 %v3297, 64
        %v3345 = vpop.permute.xlu0 %3344
        %3346 = vrot.lane.b32.xlu0 %v3299, 64
        %v3347 = vpop.permute.xlu0 %3346
        %3348 = vrot.lane.b32.xlu0 %v3301, 64
        %v3349 = vpop.permute.xlu0 %3348
        %3350 = vrot.lane.b32.xlu0 %v3303, 64
        %v3351 = vpop.permute.xlu0 %3350
        %3352 = vrot.lane.b32.xlu0 %v3305, 64
        %v3353 = vpop.permute.xlu0 %3352
        %v3370 = vmul.f32 %v538, %v3323
        %v3371 = vmul.f32 %v539, %v3325
        %v3372 = vmul.f32 %v540, %v3327
        %v3373 = vmul.f32 %v541, %v3329
        %v3374 = vmul.f32 %v542, %v3331
        %v3375 = vmul.f32 %v543, %v3333
        %v3376 = vmul.f32 %v544, %v3335
        %v3377 = vmul.f32 %v545, %v3337
        %v3378 = vmul.f32 %v546, %v3339
        %v3379 = vmul.f32 %v547, %v3341
        %v3380 = vmul.f32 %v548, %v3343
        %v3381 = vmul.f32 %v549, %v3345
        %v3382 = vmul.f32 %v550, %v3347
        %v3383 = vmul.f32 %v551, %v3349
        %v3384 = vmul.f32 %v552, %v3351
        %v3385 = vmul.f32 %v553, %v3353
        %v3386 = vadd.f32 %v3196, %v3370
        %v3387 = vadd.f32 %v3199, %v3371
        %v3388 = vadd.f32 %v3204, %v3372
        %v3389 = vadd.f32 %v3207, %v3373
        %v3390 = vadd.f32 %v3212, %v3374
        %v3391 = vadd.f32 %v3215, %v3375
        %v3392 = vadd.f32 %v3220, %v3376
        %v3393 = vadd.f32 %v3223, %v3377
        %v3394 = vadd.f32 %v3228, %v3378
        %v3395 = vadd.f32 %v3231, %v3379
        %v3396 = vadd.f32 %v3236, %v3380
        %v3397 = vadd.f32 %v3239, %v3381
        %v3398 = vadd.f32 %v3244, %v3382
        %v3399 = vadd.f32 %v3247, %v3383
        %v3400 = vadd.f32 %v3252, %v3384
        %v3401 = vadd.f32 %v3255, %v3385
        %v3402 = vpack.c.bf16 %v3387, %v3386
        %v3403 = vpack.c.bf16 %v3389, %v3388
        %v3404 = vpack.c.bf16 %v3391, %v3390
        %v3405 = vpack.c.bf16 %v3393, %v3392
        %v3406 = vpack.c.bf16 %v3395, %v3394
        %v3407 = vpack.c.bf16 %v3397, %v3396
        %v3408 = vpack.c.bf16 %v3399, %v3398
        %v3409 = vpack.c.bf16 %v3401, %v3400
        %v3410 = vld [vmem:[%s6] sm:$0xff]
        %v3411 = vld [vmem:[%s6 + $0x8] sm:$0xff]
        %v3412 = vld [vmem:[%s6 + $0x10] sm:$0xff]
        %v3413 = vld [vmem:[%s6 + $0x18] sm:$0xff]
        %v3414 = vld [vmem:[%s6 + $0x20] sm:$0xff]
        %v3415 = vld [vmem:[%s6 + $0x28] sm:$0xff]
        %v3416 = vld [vmem:[%s6 + $0x30] sm:$0xff]
        %v3417 = vld [vmem:[%s6 + $0x38] sm:$0xff]
        %v3418 = vld [vmem:[%s6 + $0x40] sm:$0xff]
        %v3419 = vld [vmem:[%s6 + $0x48] sm:$0xff]
        %v3420 = vld [vmem:[%s6 + $0x50] sm:$0xff]
        %v3421 = vld [vmem:[%s6 + $0x58] sm:$0xff]
        %v3422 = vld [vmem:[%s6 + $0x60] sm:$0xff]
        %v3423 = vld [vmem:[%s6 + $0x68] sm:$0xff]
        %v3424 = vld [vmem:[%s6 + $0x70] sm:$0xff]
        %v3425 = vld [vmem:[%s6 + $0x78] sm:$0xff]
        %v3426 = vld [vmem:[%s7] sm:$0xf]
        %v3428 = vlaneseq
        %v3429 = vshrl.u32 %v3428, 7
        %v3430 = vsub.s32 0, %v3429
        %v3431 = vrot.slane %v3426, %v3430
        %v3432 = vlaneseq
        %v3433 = vshrl.u32 %v3432, 7
        %v3434 = vsub.s32 1, %v3433
        %v3435 = vrot.slane %v3426, %v3434
        %v3436 = vlaneseq
        %v3437 = vshrl.u32 %v3436, 7
        %v3438 = vsub.s32 2, %v3437
        %v3439 = vrot.slane %v3426, %v3438
        %v3440 = vlaneseq
        %v3441 = vshrl.u32 %v3440, 7
        %v3442 = vsub.s32 3, %v3441
        %v3443 = vrot.slane %v3426, %v3442
        %v3464 = vunpack.c.l.b16 %v3410
        %v3465 = vunpack.c.h.b16 %v3410
        %v3466 = vunpack.c.l.b16 %v3411
        %v3467 = vunpack.c.h.b16 %v3411
        %v3468 = vunpack.c.l.b16 %v3412
        %v3469 = vunpack.c.h.b16 %v3412
        %v3470 = vunpack.c.l.b16 %v3413
        %v3471 = vunpack.c.h.b16 %v3413
        %v3472 = vunpack.c.l.b16 %v3414
        %v3473 = vunpack.c.h.b16 %v3414
        %v3474 = vunpack.c.l.b16 %v3415
        %v3475 = vunpack.c.h.b16 %v3415
        %v3476 = vunpack.c.l.b16 %v3416
        %v3477 = vunpack.c.h.b16 %v3416
        %v3478 = vunpack.c.l.b16 %v3417
        %v3479 = vunpack.c.h.b16 %v3417
        %v3480 = vunpack.c.l.b16 %v3418
        %v3481 = vunpack.c.h.b16 %v3418
        %v3482 = vunpack.c.l.b16 %v3419
        %v3483 = vunpack.c.h.b16 %v3419
        %v3484 = vunpack.c.l.b16 %v3420
        %v3485 = vunpack.c.h.b16 %v3420
        %v3486 = vunpack.c.l.b16 %v3421
        %v3487 = vunpack.c.h.b16 %v3421
        %v3488 = vunpack.c.l.b16 %v3422
        %v3489 = vunpack.c.h.b16 %v3422
        %v3490 = vunpack.c.l.b16 %v3423
        %v3491 = vunpack.c.h.b16 %v3423
        %v3492 = vunpack.c.l.b16 %v3424
        %v3493 = vunpack.c.h.b16 %v3424
        %v3494 = vunpack.c.l.b16 %v3425
        %v3495 = vunpack.c.h.b16 %v3425
        %v3496 = vpack.c.b16 %v3468, %v3464
        %v3497 = vpack.c.b16 %v3469, %v3465
        %v3498 = vpack.c.b16 %v3470, %v3466
        %v3499 = vpack.c.b16 %v3471, %v3467
        %v3500 = vpack.c.b16 %v3476, %v3472
        %v3501 = vpack.c.b16 %v3477, %v3473
        %v3502 = vpack.c.b16 %v3478, %v3474
        %v3503 = vpack.c.b16 %v3479, %v3475
        %v3504 = vpack.c.b16 %v3484, %v3480
        %v3505 = vpack.c.b16 %v3485, %v3481
        %v3506 = vpack.c.b16 %v3486, %v3482
        %v3507 = vpack.c.b16 %v3487, %v3483
        %v3508 = vpack.c.b16 %v3492, %v3488
        %v3509 = vpack.c.b16 %v3493, %v3489
        %v3510 = vpack.c.b16 %v3494, %v3490
        %v3511 = vpack.c.b16 %v3495, %v3491
        %vm3528 = vcmask 523264
        %v3530 = vsel %vm3528, %v3402, 0
        %v3533 = vsel %vm3528, %v3403, 0
        %v3536 = vsel %vm3528, %v3404, 0
        %v3539 = vsel %vm3528, %v3405, 0
        %v3542 = vsel %vm3528, %v3406, 0
        %v3545 = vsel %vm3528, %v3407, 0
        %v3548 = vsel %vm3528, %v3408, 0
        %v3551 = vsel %vm3528, %v3409, 0
        %3553 = vmatprep.subr.bf16.mxu0 0
        %3554 = vmatpush1.bf16.msra.mxu0 0
        %3555 = vmatprep.subr.bf16.mxu0 0
        %3556 = vmatpush1.bf16.msra.mxu0 0
        %3557 = vmatprep.subr.bf16.mxu0 0
        %3558 = vmatpush1.bf16.msra.mxu0 0
        %3559 = vmatprep.subr.bf16.mxu0 0
        %3560 = vmatpush1.bf16.msra.mxu0 0
        %3561 = vmatprep.subr.bf16.mxu0 %v3509
        %3562 = vmatpush1.bf16.msra.mxu0 %v3508
        %3563 = vmatprep.subr.bf16.mxu0 %v3505
        %3564 = vmatpush1.bf16.msra.mxu0 %v3504
        %3565 = vmatprep.subr.bf16.mxu0 %v3501
        %3566 = vmatpush1.bf16.msra.mxu0 %v3500
        %3567 = vmatprep.subr.bf16.mxu0 %v3497
        %3568 = vmatpush1.bf16.msra.mxu0 %v3496
        %3569 = vmatprep.subr.bf16.mxu0 0
        %3570 = vmatpush2.bf16.msra.mxu0 0
        %3571 = vmatprep.subr.bf16.mxu0 0
        %3572 = vmatpush2.bf16.msra.mxu0 0
        %3573 = vmatprep.subr.bf16.mxu0 0
        %3574 = vmatpush2.bf16.msra.mxu0 0
        %3575 = vmatprep.subr.bf16.mxu0 0
        %3576 = vmatpush2.bf16.msra.mxu0 0
        %3577 = vmatprep.subr.bf16.mxu0 0
        %3578 = vmatpush2.bf16.msra.mxu0 0
        %3579 = vmatprep.subr.bf16.mxu0 0
        %3580 = vmatpush2.bf16.msra.mxu0 0
        %3581 = vmatprep.subr.bf16.mxu0 0
        %3582 = vmatpush2.bf16.msra.mxu0 0
        %3583 = vmatprep.subr.bf16.mxu0 0
        %3584 = vmatpush2.bf16.msra.mxu0 0
        %3585 = vmatprep.mubr.bf16.mxu0 0
        %3586 = vmatmul.mubr.bf16.gmra.mxu0 %v3530
        %v3587 = vpop.f32.mrf.mxu0
        %v3588 = vadd.f32 %v3431, %v3587
        %v3589 = vpop.f32.mrf.mxu0
        %v3590 = vadd.f32 %v3435, %v3589
        %v3591 = vpop.f32.mrf.mxu0
        %v3592 = vadd.f32 %v3431, %v3591
        %v3593 = vpop.f32.mrf.mxu0
        %v3594 = vadd.f32 %v3435, %v3593
        %3595 = vmatprep.mubr.bf16.mxu0 0
        %3596 = vmatmul.mubr.bf16.gmra.mxu0 %v3533
        %v3597 = vpop.f32.mrf.mxu0
        %v3598 = vadd.f32 %v3431, %v3597
        %v3599 = vpop.f32.mrf.mxu0
        %v3600 = vadd.f32 %v3435, %v3599
        %v3601 = vpop.f32.mrf.mxu0
        %v3602 = vadd.f32 %v3431, %v3601
        %v3603 = vpop.f32.mrf.mxu0
        %v3604 = vadd.f32 %v3435, %v3603
        %3605 = vmatprep.mubr.bf16.mxu0 0
        %3606 = vmatmul.mubr.bf16.gmra.mxu0 %v3536
        %v3607 = vpop.f32.mrf.mxu0
        %v3608 = vadd.f32 %v3431, %v3607
        %v3609 = vpop.f32.mrf.mxu0
        %v3610 = vadd.f32 %v3435, %v3609
        %v3611 = vpop.f32.mrf.mxu0
        %v3612 = vadd.f32 %v3431, %v3611
        %v3613 = vpop.f32.mrf.mxu0
        %v3614 = vadd.f32 %v3435, %v3613
        %3615 = vmatprep.mubr.bf16.mxu0 0
        %3616 = vmatmul.mubr.bf16.gmra.mxu0 %v3539
        %v3617 = vpop.f32.mrf.mxu0
        %v3618 = vadd.f32 %v3431, %v3617
        %v3619 = vpop.f32.mrf.mxu0
        %v3620 = vadd.f32 %v3435, %v3619
        %v3621 = vpop.f32.mrf.mxu0
        %v3622 = vadd.f32 %v3431, %v3621
        %v3623 = vpop.f32.mrf.mxu0
        %v3624 = vadd.f32 %v3435, %v3623
        %3625 = vmatprep.mubr.bf16.mxu0 0
        %3626 = vmatmul.mubr.bf16.gmra.mxu0 %v3542
        %v3627 = vpop.f32.mrf.mxu0
        %v3628 = vadd.f32 %v3431, %v3627
        %v3629 = vpop.f32.mrf.mxu0
        %v3630 = vadd.f32 %v3435, %v3629
        %v3631 = vpop.f32.mrf.mxu0
        %v3632 = vadd.f32 %v3431, %v3631
        %v3633 = vpop.f32.mrf.mxu0
        %v3634 = vadd.f32 %v3435, %v3633
        %3635 = vmatprep.mubr.bf16.mxu0 0
        %3636 = vmatmul.mubr.bf16.gmra.mxu0 %v3545
        %v3637 = vpop.f32.mrf.mxu0
        %v3638 = vadd.f32 %v3431, %v3637
        %v3639 = vpop.f32.mrf.mxu0
        %v3640 = vadd.f32 %v3435, %v3639
        %v3641 = vpop.f32.mrf.mxu0
        %v3642 = vadd.f32 %v3431, %v3641
        %v3643 = vpop.f32.mrf.mxu0
        %v3644 = vadd.f32 %v3435, %v3643
        %3645 = vmatprep.mubr.bf16.mxu0 0
        %3646 = vmatmul.mubr.bf16.gmra.mxu0 %v3548
        %v3647 = vpop.f32.mrf.mxu0
        %v3648 = vadd.f32 %v3431, %v3647
        %v3649 = vpop.f32.mrf.mxu0
        %v3650 = vadd.f32 %v3435, %v3649
        %v3651 = vpop.f32.mrf.mxu0
        %v3652 = vadd.f32 %v3431, %v3651
        %v3653 = vpop.f32.mrf.mxu0
        %v3654 = vadd.f32 %v3435, %v3653
        %3655 = vmatprep.mubr.bf16.mxu0 0
        %3656 = vmatmul.mubr.bf16.gmra.mxu0 %v3551
        %v3657 = vpop.f32.mrf.mxu0
        %v3658 = vadd.f32 %v3431, %v3657
        %v3659 = vpop.f32.mrf.mxu0
        %v3660 = vadd.f32 %v3435, %v3659
        %v3661 = vpop.f32.mrf.mxu0
        %v3662 = vadd.f32 %v3431, %v3661
        %v3663 = vpop.f32.mrf.mxu0
        %v3664 = vadd.f32 %v3435, %v3663
        %3665 = vdwg.mxu0
        %3666 = vmatprep.subr.bf16.mxu0 0
        %3667 = vmatpush1.bf16.msra.mxu0 0
        %3668 = vmatprep.subr.bf16.mxu0 0
        %3669 = vmatpush1.bf16.msra.mxu0 0
        %3670 = vmatprep.subr.bf16.mxu0 0
        %3671 = vmatpush1.bf16.msra.mxu0 0
        %3672 = vmatprep.subr.bf16.mxu0 0
        %3673 = vmatpush1.bf16.msra.mxu0 0
        %3674 = vmatprep.subr.bf16.mxu0 %v3511
        %3675 = vmatpush1.bf16.msra.mxu0 %v3510
        %3676 = vmatprep.subr.bf16.mxu0 %v3507
        %3677 = vmatpush1.bf16.msra.mxu0 %v3506
        %3678 = vmatprep.subr.bf16.mxu0 %v3503
        %3679 = vmatpush1.bf16.msra.mxu0 %v3502
        %3680 = vmatprep.subr.bf16.mxu0 %v3499
        %3681 = vmatpush1.bf16.msra.mxu0 %v3498
        %3682 = vmatprep.subr.bf16.mxu0 0
        %3683 = vmatpush2.bf16.msra.mxu0 0
        %3684 = vmatprep.subr.bf16.mxu0 0
        %3685 = vmatpush2.bf16.msra.mxu0 0
        %3686 = vmatprep.subr.bf16.mxu0 0
        %3687 = vmatpush2.bf16.msra.mxu0 0
        %3688 = vmatprep.subr.bf16.mxu0 0
        %3689 = vmatpush2.bf16.msra.mxu0 0
        %3690 = vmatprep.subr.bf16.mxu0 0
        %3691 = vmatpush2.bf16.msra.mxu0 0
        %3692 = vmatprep.subr.bf16.mxu0 0
        %3693 = vmatpush2.bf16.msra.mxu0 0
        %3694 = vmatprep.subr.bf16.mxu0 0
        %3695 = vmatpush2.bf16.msra.mxu0 0
        %3696 = vmatprep.subr.bf16.mxu0 0
        %3697 = vmatpush2.bf16.msra.mxu0 0
        %3698 = vmatprep.mubr.bf16.mxu0 0
        %3699 = vmatmul.mubr.bf16.gmra.mxu0 %v3530
        %v3700 = vpop.f32.mrf.mxu0
        %v3701 = vadd.f32 %v3439, %v3700
        %v3702 = vpop.f32.mrf.mxu0
        %v3703 = vadd.f32 %v3443, %v3702
        %v3704 = vpop.f32.mrf.mxu0
        %v3705 = vadd.f32 %v3439, %v3704
        %v3706 = vpop.f32.mrf.mxu0
        %v3707 = vadd.f32 %v3443, %v3706
        %3708 = vmatprep.mubr.bf16.mxu0 0
        %3709 = vmatmul.mubr.bf16.gmra.mxu0 %v3533
        %v3710 = vpop.f32.mrf.mxu0
        %v3711 = vadd.f32 %v3439, %v3710
        %v3712 = vpop.f32.mrf.mxu0
        %v3713 = vadd.f32 %v3443, %v3712
        %v3714 = vpop.f32.mrf.mxu0
        %v3715 = vadd.f32 %v3439, %v3714
        %v3716 = vpop.f32.mrf.mxu0
        %v3717 = vadd.f32 %v3443, %v3716
        %3718 = vmatprep.mubr.bf16.mxu0 0
        %3719 = vmatmul.mubr.bf16.gmra.mxu0 %v3536
        %v3720 = vpop.f32.mrf.mxu0
        %v3721 = vadd.f32 %v3439, %v3720
        %v3722 = vpop.f32.mrf.mxu0
        %v3723 = vadd.f32 %v3443, %v3722
        %v3724 = vpop.f32.mrf.mxu0
        %v3725 = vadd.f32 %v3439, %v3724
        %v3726 = vpop.f32.mrf.mxu0
        %v3727 = vadd.f32 %v3443, %v3726
        %3728 = vmatprep.mubr.bf16.mxu0 0
        %3729 = vmatmul.mubr.bf16.gmra.mxu0 %v3539
        %v3730 = vpop.f32.mrf.mxu0
        %v3731 = vadd.f32 %v3439, %v3730
        %v3732 = vpop.f32.mrf.mxu0
        %v3733 = vadd.f32 %v3443, %v3732
        %v3734 = vpop.f32.mrf.mxu0
        %v3735 = vadd.f32 %v3439, %v3734
        %v3736 = vpop.f32.mrf.mxu0
        %v3737 = vadd.f32 %v3443, %v3736
        %3738 = vmatprep.mubr.bf16.mxu0 0
        %3739 = vmatmul.mubr.bf16.gmra.mxu0 %v3542
        %v3740 = vpop.f32.mrf.mxu0
        %v3741 = vadd.f32 %v3439, %v3740
        %v3742 = vpop.f32.mrf.mxu0
        %v3743 = vadd.f32 %v3443, %v3742
        %v3744 = vpop.f32.mrf.mxu0
        %v3745 = vadd.f32 %v3439, %v3744
        %v3746 = vpop.f32.mrf.mxu0
        %v3747 = vadd.f32 %v3443, %v3746
        %3748 = vmatprep.mubr.bf16.mxu0 0
        %3749 = vmatmul.mubr.bf16.gmra.mxu0 %v3545
        %v3750 = vpop.f32.mrf.mxu0
        %v3751 = vadd.f32 %v3439, %v3750
        %v3752 = vpop.f32.mrf.mxu0
        %v3753 = vadd.f32 %v3443, %v3752
        %v3754 = vpop.f32.mrf.mxu0
        %v3755 = vadd.f32 %v3439, %v3754
        %v3756 = vpop.f32.mrf.mxu0
        %v3757 = vadd.f32 %v3443, %v3756
        %3758 = vmatprep.mubr.bf16.mxu0 0
        %3759 = vmatmul.mubr.bf16.gmra.mxu0 %v3548
        %v3760 = vpop.f32.mrf.mxu0
        %v3761 = vadd.f32 %v3439, %v3760
        %v3762 = vpop.f32.mrf.mxu0
        %v3763 = vadd.f32 %v3443, %v3762
        %v3764 = vpop.f32.mrf.mxu0
        %v3765 = vadd.f32 %v3439, %v3764
        %v3766 = vpop.f32.mrf.mxu0
        %v3767 = vadd.f32 %v3443, %v3766
        %3768 = vmatprep.mubr.bf16.mxu0 0
        %3769 = vmatmul.mubr.bf16.gmra.mxu0 %v3551
        %v3770 = vpop.f32.mrf.mxu0
        %v3771 = vadd.f32 %v3439, %v3770
        %v3772 = vpop.f32.mrf.mxu0
        %v3773 = vadd.f32 %v3443, %v3772
        %v3774 = vpop.f32.mrf.mxu0
        %v3775 = vadd.f32 %v3439, %v3774
        %v3776 = vpop.f32.mrf.mxu0
        %v3777 = vadd.f32 %v3443, %v3776
        %3778 = vdwg.mxu0
        %v3779 = vmax.f32 %v3588, 0.0
        %v3780 = vmax.f32 %v3590, 0.0
        %v3781 = vmax.f32 %v3701, 0.0
        %v3782 = vmax.f32 %v3703, 0.0
        %v3783 = vmax.f32 %v3592, 0.0
        %v3784 = vmax.f32 %v3594, 0.0
        %v3785 = vmax.f32 %v3705, 0.0
        %v3786 = vmax.f32 %v3707, 0.0
        %v3787 = vmax.f32 %v3598, 0.0
        %v3788 = vmax.f32 %v3600, 0.0
        %v3789 = vmax.f32 %v3711, 0.0
        %v3790 = vmax.f32 %v3713, 0.0
        %v3791 = vmax.f32 %v3602, 0.0
        %v3792 = vmax.f32 %v3604, 0.0
        %v3793 = vmax.f32 %v3715, 0.0
        %v3794 = vmax.f32 %v3717, 0.0
        %v3795 = vmax.f32 %v3608, 0.0
        %v3796 = vmax.f32 %v3610, 0.0
        %v3797 = vmax.f32 %v3721, 0.0
        %v3798 = vmax.f32 %v3723, 0.0
        %v3799 = vmax.f32 %v3612, 0.0
        %v3800 = vmax.f32 %v3614, 0.0
        %v3801 = vmax.f32 %v3725, 0.0
        %v3802 = vmax.f32 %v3727, 0.0
        %v3803 = vmax.f32 %v3618, 0.0
        %v3804 = vmax.f32 %v3620, 0.0
        %v3805 = vmax.f32 %v3731, 0.0
        %v3806 = vmax.f32 %v3733, 0.0
        %v3807 = vmax.f32 %v3622, 0.0
        %v3808 = vmax.f32 %v3624, 0.0
        %v3809 = vmax.f32 %v3735, 0.0
        %v3810 = vmax.f32 %v3737, 0.0
        %v3811 = vmax.f32 %v3628, 0.0
        %v3812 = vmax.f32 %v3630, 0.0
        %v3813 = vmax.f32 %v3741, 0.0
        %v3814 = vmax.f32 %v3743, 0.0
        %v3815 = vmax.f32 %v3632, 0.0
        %v3816 = vmax.f32 %v3634, 0.0
        %v3817 = vmax.f32 %v3745, 0.0
        %v3818 = vmax.f32 %v3747, 0.0
        %v3819 = vmax.f32 %v3638, 0.0
        %v3820 = vmax.f32 %v3640, 0.0
        %v3821 = vmax.f32 %v3751, 0.0
        %v3822 = vmax.f32 %v3753, 0.0
        %v3823 = vmax.f32 %v3642, 0.0
        %v3824 = vmax.f32 %v3644, 0.0
        %v3825 = vmax.f32 %v3755, 0.0
        %v3826 = vmax.f32 %v3757, 0.0
        %v3827 = vmax.f32 %v3648, 0.0
        %v3828 = vmax.f32 %v3650, 0.0
        %v3829 = vmax.f32 %v3761, 0.0
        %v3830 = vmax.f32 %v3763, 0.0
        %v3831 = vmax.f32 %v3652, 0.0
        %v3832 = vmax.f32 %v3654, 0.0
        %v3833 = vmax.f32 %v3765, 0.0
        %v3834 = vmax.f32 %v3767, 0.0
        %v3835 = vmax.f32 %v3658, 0.0
        %v3836 = vmax.f32 %v3660, 0.0
        %v3837 = vmax.f32 %v3771, 0.0
        %v3838 = vmax.f32 %v3773, 0.0
        %v3839 = vmax.f32 %v3662, 0.0
        %v3840 = vmax.f32 %v3664, 0.0
        %v3841 = vmax.f32 %v3775, 0.0
        %v3842 = vmax.f32 %v3777, 0.0
        %v3843 = vpack.c.bf16 %v3783, %v3779
        %v3844 = vpack.c.bf16 %v3784, %v3780
        %v3845 = vpack.c.bf16 %v3785, %v3781
        %v3846 = vpack.c.bf16 %v3786, %v3782
        %v3847 = vpack.c.bf16 %v3791, %v3787
        %v3848 = vpack.c.bf16 %v3792, %v3788
        %v3849 = vpack.c.bf16 %v3793, %v3789
        %v3850 = vpack.c.bf16 %v3794, %v3790
        %v3851 = vpack.c.bf16 %v3799, %v3795
        %v3852 = vpack.c.bf16 %v3800, %v3796
        %v3853 = vpack.c.bf16 %v3801, %v3797
        %v3854 = vpack.c.bf16 %v3802, %v3798
        %v3855 = vpack.c.bf16 %v3807, %v3803
        %v3856 = vpack.c.bf16 %v3808, %v3804
        %v3857 = vpack.c.bf16 %v3809, %v3805
        %v3858 = vpack.c.bf16 %v3810, %v3806
        %v3859 = vpack.c.bf16 %v3815, %v3811
        %v3860 = vpack.c.bf16 %v3816, %v3812
        %v3861 = vpack.c.bf16 %v3817, %v3813
        %v3862 = vpack.c.bf16 %v3818, %v3814
        %v3863 = vpack.c.bf16 %v3823, %v3819
        %v3864 = vpack.c.bf16 %v3824, %v3820
        %v3865 = vpack.c.bf16 %v3825, %v3821
        %v3866 = vpack.c.bf16 %v3826, %v3822
        %v3867 = vpack.c.bf16 %v3831, %v3827
        %v3868 = vpack.c.bf16 %v3832, %v3828
        %v3869 = vpack.c.bf16 %v3833, %v3829
        %v3870 = vpack.c.bf16 %v3834, %v3830
        %v3871 = vpack.c.bf16 %v3839, %v3835
        %v3872 = vpack.c.bf16 %v3840, %v3836
        %v3873 = vpack.c.bf16 %v3841, %v3837
        %v3874 = vpack.c.bf16 %v3842, %v3838
        %v3875 = vld [vmem:[%s8] sm:$0xff]
        %v3876 = vld [vmem:[%s8 + $0x8] sm:$0xff]
        %v3877 = vld [vmem:[%s8 + $0x10] sm:$0xff]
        %v3878 = vld [vmem:[%s8 + $0x18] sm:$0xf]
        %v3879 = vld [vmem:[%s8 + $0x1c] sm:$0xff]
        %v3880 = vld [vmem:[%s8 + $0x24] sm:$0xff]
        %v3881 = vld [vmem:[%s8 + $0x2c] sm:$0xff]
        %v3882 = vld [vmem:[%s8 + $0x34] sm:$0xf]
        %v3883 = vld [vmem:[%s8 + $0x38] sm:$0xff]
        %v3884 = vld [vmem:[%s8 + $0x40] sm:$0xff]
        %v3885 = vld [vmem:[%s8 + $0x48] sm:$0xff]
        %v3886 = vld [vmem:[%s8 + $0x50] sm:$0xf]
        %v3887 = vld [vmem:[%s8 + $0x54] sm:$0xff]
        %v3888 = vld [vmem:[%s8 + $0x5c] sm:$0xff]
        %v3889 = vld [vmem:[%s8 + $0x64] sm:$0xff]
        %v3890 = vld [vmem:[%s8 + $0x6c] sm:$0xf]
        %v3891 = vld [vmem:[%s8 + $0x70] sm:$0xff]
        %v3892 = vld [vmem:[%s8 + $0x78] sm:$0xff]
        %v3893 = vld [vmem:[%s8 + $0x80] sm:$0xff]
        %v3894 = vld [vmem:[%s8 + $0x88] sm:$0xf]
        %v3895 = vld [vmem:[%s8 + $0x8c] sm:$0xff]
        %v3896 = vld [vmem:[%s8 + $0x94] sm:$0xff]
        %v3897 = vld [vmem:[%s8 + $0x9c] sm:$0xff]
        %v3898 = vld [vmem:[%s8 + $0xa4] sm:$0xf]
        %v3899 = vld [vmem:[%s8 + $0xa8] sm:$0xff]
        %v3900 = vld [vmem:[%s8 + $0xb0] sm:$0xff]
        %v3901 = vld [vmem:[%s8 + $0xb8] sm:$0xff]
        %v3902 = vld [vmem:[%s8 + $0xc0] sm:$0xf]
        %v3903 = vld [vmem:[%s8 + $0xc4] sm:$0xff]
        %v3904 = vld [vmem:[%s8 + $0xcc] sm:$0xff]
        %v3905 = vld [vmem:[%s8 + $0xd4] sm:$0xff]
        %v3906 = vld [vmem:[%s8 + $0xdc] sm:$0xf]
        %v3907 = vld [vmem:[%s8 + $0xe0] sm:$0xff]
        %v3908 = vld [vmem:[%s8 + $0xe8] sm:$0xff]
        %v3909 = vld [vmem:[%s8 + $0xf0] sm:$0xff]
        %v3910 = vld [vmem:[%s8 + $0xf8] sm:$0xf]
        %v3911 = vld [vmem:[%s8 + $0xfc] sm:$0xff]
        %v3912 = vld [vmem:[%s8 + $0x104] sm:$0xff]
        %v3913 = vld [vmem:[%s8 + $0x10c] sm:$0xff]
        %v3914 = vld [vmem:[%s8 + $0x114] sm:$0xf]
        %v3915 = vld [vmem:[%s8 + $0x118] sm:$0xff]
        %v3916 = vld [vmem:[%s8 + $0x120] sm:$0xff]
        %v3917 = vld [vmem:[%s8 + $0x128] sm:$0xff]
        %v3918 = vld [vmem:[%s8 + $0x130] sm:$0xf]
        %v3919 = vld [vmem:[%s8 + $0x134] sm:$0xff]
        %v3920 = vld [vmem:[%s8 + $0x13c] sm:$0xff]
        %v3921 = vld [vmem:[%s8 + $0x144] sm:$0xff]
        %v3922 = vld [vmem:[%s8 + $0x14c] sm:$0xf]
        %v3923 = vld [vmem:[%s8 + $0x150] sm:$0xff]
        %v3924 = vld [vmem:[%s8 + $0x158] sm:$0xff]
        %v3925 = vld [vmem:[%s8 + $0x160] sm:$0xff]
        %v3926 = vld [vmem:[%s8 + $0x168] sm:$0xf]
        %v3927 = vld [vmem:[%s8 + $0x16c] sm:$0xff]
        %v3928 = vld [vmem:[%s8 + $0x174] sm:$0xff]
        %v3929 = vld [vmem:[%s8 + $0x17c] sm:$0xff]
        %v3930 = vld [vmem:[%s8 + $0x184] sm:$0xf]
        %v3931 = vld [vmem:[%s8 + $0x188] sm:$0xff]
        %v3932 = vld [vmem:[%s8 + $0x190] sm:$0xff]
        %v3933 = vld [vmem:[%s8 + $0x198] sm:$0xff]
        %v3934 = vld [vmem:[%s8 + $0x1a0] sm:$0xf]
        %v3935 = vld [vmem:[%s8 + $0x1a4] sm:$0xff]
        %v3936 = vld [vmem:[%s8 + $0x1ac] sm:$0xff]
        %v3937 = vld [vmem:[%s8 + $0x1b4] sm:$0xff]
        %v3938 = vld [vmem:[%s8 + $0x1bc] sm:$0xf]
        %v3939 = vld [vmem:[%s8 + $0x1c0] sm:$0xff]
        %v3940 = vld [vmem:[%s8 + $0x1c8] sm:$0xff]
        %v3941 = vld [vmem:[%s8 + $0x1d0] sm:$0xff]
        %v3942 = vld [vmem:[%s8 + $0x1d8] sm:$0xf]
        %v3943 = vld [vmem:[%s8 + $0x1dc] sm:$0xff]
        %v3944 = vld [vmem:[%s8 + $0x1e4] sm:$0xff]
        %v3945 = vld [vmem:[%s8 + $0x1ec] sm:$0xff]
        %v3946 = vld [vmem:[%s8 + $0x1f4] sm:$0xf]
        %v3947 = vld [vmem:[%s8 + $0x1f8] sm:$0xff]
        %v3948 = vld [vmem:[%s8 + $0x200] sm:$0xff]
        %v3949 = vld [vmem:[%s8 + $0x208] sm:$0xff]
        %v3950 = vld [vmem:[%s8 + $0x210] sm:$0xf]
        %v3951 = vld [vmem:[%s8 + $0x214] sm:$0xff]
        %v3952 = vld [vmem:[%s8 + $0x21c] sm:$0xff]
        %v3953 = vld [vmem:[%s8 + $0x224] sm:$0xff]
        %v3954 = vld [vmem:[%s8 + $0x22c] sm:$0xf]
        %v3955 = vld [vmem:[%s8 + $0x230] sm:$0xff]
        %v3956 = vld [vmem:[%s8 + $0x238] sm:$0xff]
        %v3957 = vld [vmem:[%s8 + $0x240] sm:$0xff]
        %v3958 = vld [vmem:[%s8 + $0x248] sm:$0xf]
        %v3959 = vld [vmem:[%s8 + $0x24c] sm:$0xff]
        %v3960 = vld [vmem:[%s8 + $0x254] sm:$0xff]
        %v3961 = vld [vmem:[%s8 + $0x25c] sm:$0xff]
        %v3962 = vld [vmem:[%s8 + $0x264] sm:$0xf]
        %v3963 = vld [vmem:[%s8 + $0x268] sm:$0xff]
        %v3964 = vld [vmem:[%s8 + $0x270] sm:$0xff]
        %v3965 = vld [vmem:[%s8 + $0x278] sm:$0xff]
        %v3966 = vld [vmem:[%s8 + $0x280] sm:$0xf]
        %v3967 = vld [vmem:[%s8 + $0x284] sm:$0xff]
        %v3968 = vld [vmem:[%s8 + $0x28c] sm:$0xff]
        %v3969 = vld [vmem:[%s8 + $0x294] sm:$0xff]
        %v3970 = vld [vmem:[%s8 + $0x29c] sm:$0xf]
        %v3971 = vld [vmem:[%s8 + $0x2a0] sm:$0xff]
        %v3972 = vld [vmem:[%s8 + $0x2a8] sm:$0xff]
        %v3973 = vld [vmem:[%s8 + $0x2b0] sm:$0xff]
        %v3974 = vld [vmem:[%s8 + $0x2b8] sm:$0xf]
        %v3975 = vld [vmem:[%s8 + $0x2bc] sm:$0xff]
        %v3976 = vld [vmem:[%s8 + $0x2c4] sm:$0xff]
        %v3977 = vld [vmem:[%s8 + $0x2cc] sm:$0xff]
        %v3978 = vld [vmem:[%s8 + $0x2d4] sm:$0xf]
        %v3979 = vld [vmem:[%s8 + $0x2d8] sm:$0xff]
        %v3980 = vld [vmem:[%s8 + $0x2e0] sm:$0xff]
        %v3981 = vld [vmem:[%s8 + $0x2e8] sm:$0xff]
        %v3982 = vld [vmem:[%s8 + $0x2f0] sm:$0xf]
        %v3983 = vld [vmem:[%s8 + $0x2f4] sm:$0xff]
        %v3984 = vld [vmem:[%s8 + $0x2fc] sm:$0xff]
        %v3985 = vld [vmem:[%s8 + $0x304] sm:$0xff]
        %v3986 = vld [vmem:[%s8 + $0x30c] sm:$0xf]
        %v3987 = vld [vmem:[%s8 + $0x310] sm:$0xff]
        %v3988 = vld [vmem:[%s8 + $0x318] sm:$0xff]
        %v3989 = vld [vmem:[%s8 + $0x320] sm:$0xff]
        %v3990 = vld [vmem:[%s8 + $0x328] sm:$0xf]
        %v3991 = vld [vmem:[%s8 + $0x32c] sm:$0xff]
        %v3992 = vld [vmem:[%s8 + $0x334] sm:$0xff]
        %v3993 = vld [vmem:[%s8 + $0x33c] sm:$0xff]
        %v3994 = vld [vmem:[%s8 + $0x344] sm:$0xf]
        %v3995 = vld [vmem:[%s8 + $0x348] sm:$0xff]
        %v3996 = vld [vmem:[%s8 + $0x350] sm:$0xff]
        %v3997 = vld [vmem:[%s8 + $0x358] sm:$0xff]
        %v3998 = vld [vmem:[%s8 + $0x360] sm:$0xf]
        %v3999 = vld [vmem:[%s8 + $0x364] sm:$0xff]
        %v4000 = vld [vmem:[%s8 + $0x36c] sm:$0xff]
        %v4001 = vld [vmem:[%s8 + $0x374] sm:$0xff]
        %v4002 = vld [vmem:[%s8 + $0x37c] sm:$0xf]
        %v4003 = vld [vmem:[%s8 + $0x380] sm:$0xff]
        %v4004 = vld [vmem:[%s8 + $0x388] sm:$0xff]
        %v4005 = vld [vmem:[%s8 + $0x390] sm:$0xff]
        %v4006 = vld [vmem:[%s8 + $0x398] sm:$0xf]
        %v4007 = vld [vmem:[%s8 + $0x39c] sm:$0xff]
        %v4008 = vld [vmem:[%s8 + $0x3a4] sm:$0xff]
        %v4009 = vld [vmem:[%s8 + $0x3ac] sm:$0xff]
        %v4010 = vld [vmem:[%s8 + $0x3b4] sm:$0xf]
        %v4011 = vld [vmem:[%s8 + $0x3b8] sm:$0xff]
        %v4012 = vld [vmem:[%s8 + $0x3c0] sm:$0xff]
        %v4013 = vld [vmem:[%s8 + $0x3c8] sm:$0xff]
        %v4014 = vld [vmem:[%s8 + $0x3d0] sm:$0xf]
        %v4015 = vld [vmem:[%s8 + $0x3d4] sm:$0xff]
        %v4016 = vld [vmem:[%s8 + $0x3dc] sm:$0xff]
        %v4017 = vld [vmem:[%s8 + $0x3e4] sm:$0xff]
        %v4018 = vld [vmem:[%s8 + $0x3ec] sm:$0xf]
        %v4019 = vld [vmem:[%s8 + $0x3f0] sm:$0xff]
        %v4020 = vld [vmem:[%s8 + $0x3f8] sm:$0xff]
        %v4021 = vld [vmem:[%s8 + $0x400] sm:$0xff]
        %v4022 = vld [vmem:[%s8 + $0x408] sm:$0xf]
        %v4023 = vld [vmem:[%s8 + $0x40c] sm:$0xff]
        %v4024 = vld [vmem:[%s8 + $0x414] sm:$0xff]
        %v4025 = vld [vmem:[%s8 + $0x41c] sm:$0xff]
        %v4026 = vld [vmem:[%s8 + $0x424] sm:$0xf]
        %v4027 = vld [vmem:[%s8 + $0x428] sm:$0xff]
        %v4028 = vld [vmem:[%s8 + $0x430] sm:$0xff]
        %v4029 = vld [vmem:[%s8 + $0x438] sm:$0xff]
        %v4030 = vld [vmem:[%s8 + $0x440] sm:$0xf]
        %v4031 = vld [vmem:[%s8 + $0x444] sm:$0xff]
        %v4032 = vld [vmem:[%s8 + $0x44c] sm:$0xff]
        %v4033 = vld [vmem:[%s8 + $0x454] sm:$0xff]
        %v4034 = vld [vmem:[%s8 + $0x45c] sm:$0xf]
        %v4035 = vld [vmem:[%s8 + $0x460] sm:$0xff]
        %v4036 = vld [vmem:[%s8 + $0x468] sm:$0xff]
        %v4037 = vld [vmem:[%s8 + $0x470] sm:$0xff]
        %v4038 = vld [vmem:[%s8 + $0x478] sm:$0xf]
        %v4039 = vld [vmem:[%s8 + $0x47c] sm:$0xff]
        %v4040 = vld [vmem:[%s8 + $0x484] sm:$0xff]
        %v4041 = vld [vmem:[%s8 + $0x48c] sm:$0xff]
        %v4042 = vld [vmem:[%s8 + $0x494] sm:$0xf]
        %v4043 = vld [vmem:[%s8 + $0x498] sm:$0xff]
        %v4044 = vld [vmem:[%s8 + $0x4a0] sm:$0xff]
        %v4045 = vld [vmem:[%s8 + $0x4a8] sm:$0xff]
        %v4046 = vld [vmem:[%s8 + $0x4b0] sm:$0xf]
        %v4047 = vld [vmem:[%s8 + $0x4b4] sm:$0xff]
        %v4048 = vld [vmem:[%s8 + $0x4bc] sm:$0xff]
        %v4049 = vld [vmem:[%s8 + $0x4c4] sm:$0xff]
        %v4050 = vld [vmem:[%s8 + $0x4cc] sm:$0xf]
        %v4051 = vld [vmem:[%s8 + $0x4d0] sm:$0xff]
        %v4052 = vld [vmem:[%s8 + $0x4d8] sm:$0xff]
        %v4053 = vld [vmem:[%s8 + $0x4e0] sm:$0xff]
        %v4054 = vld [vmem:[%s8 + $0x4e8] sm:$0xf]
        %v4055 = vld [vmem:[%s8 + $0x4ec] sm:$0xff]
        %v4056 = vld [vmem:[%s8 + $0x4f4] sm:$0xff]
        %v4057 = vld [vmem:[%s8 + $0x4fc] sm:$0xff]
        %v4058 = vld [vmem:[%s8 + $0x504] sm:$0xf]
        %v4059 = vld [vmem:[%s8 + $0x508] sm:$0xff]
        %v4060 = vld [vmem:[%s8 + $0x510] sm:$0xff]
        %v4061 = vld [vmem:[%s8 + $0x518] sm:$0xff]
        %v4062 = vld [vmem:[%s8 + $0x520] sm:$0xf]
        %v4063 = vld [vmem:[%s8 + $0x524] sm:$0xff]
        %v4064 = vld [vmem:[%s8 + $0x52c] sm:$0xff]
        %v4065 = vld [vmem:[%s8 + $0x534] sm:$0xff]
        %v4066 = vld [vmem:[%s8 + $0x53c] sm:$0xf]
        %v4067 = vld [vmem:[%s8 + $0x540] sm:$0xff]
        %v4068 = vld [vmem:[%s8 + $0x548] sm:$0xff]
        %v4069 = vld [vmem:[%s8 + $0x550] sm:$0xff]
        %v4070 = vld [vmem:[%s8 + $0x558] sm:$0xf]
        %v4071 = vld [vmem:[%s8 + $0x55c] sm:$0xff]
        %v4072 = vld [vmem:[%s8 + $0x564] sm:$0xff]
        %v4073 = vld [vmem:[%s8 + $0x56c] sm:$0xff]
        %v4074 = vld [vmem:[%s8 + $0x574] sm:$0xf]
        %v4075 = vld [vmem:[%s9] sm:$0xff]
        %v4077 = vlaneseq
        %v4078 = vshrl.u32 %v4077, 7
        %v4079 = vsub.s32 0, %v4078
        %v4080 = vrot.slane %v4075, %v4079
        %v4081 = vlaneseq
        %v4082 = vshrl.u32 %v4081, 7
        %v4083 = vsub.s32 1, %v4082
        %v4084 = vrot.slane %v4075, %v4083
        %v4085 = vlaneseq
        %v4086 = vshrl.u32 %v4085, 7
        %v4087 = vsub.s32 2, %v4086
        %v4088 = vrot.slane %v4075, %v4087
        %v4089 = vlaneseq
        %v4090 = vshrl.u32 %v4089, 7
        %v4091 = vsub.s32 3, %v4090
        %v4092 = vrot.slane %v4075, %v4091
        %v4093 = vlaneseq
        %v4094 = vshrl.u32 %v4093, 7
        %v4095 = vsub.s32 4, %v4094
        %v4096 = vrot.slane %v4075, %v4095
        %v4097 = vlaneseq
        %v4098 = vshrl.u32 %v4097, 7
        %v4099 = vsub.s32 5, %v4098
        %v4100 = vrot.slane %v4075, %v4099
        %v4101 = vlaneseq
        %v4102 = vshrl.u32 %v4101, 7
        %v4103 = vsub.s32 6, %v4102
        %v4104 = vrot.slane %v4075, %v4103
        %v4312 = vunpack.c.l.b16 %v3875
        %v4313 = vunpack.c.h.b16 %v3875
        %v4314 = vunpack.c.l.b16 %v3876
        %v4315 = vunpack.c.h.b16 %v3876
        %v4316 = vunpack.c.l.b16 %v3877
        %v4317 = vunpack.c.h.b16 %v3877
        %v4318 = vunpack.c.l.b16 %v3878
        %v4319 = vunpack.c.l.b16 %v3879
        %v4320 = vunpack.c.h.b16 %v3879
        %v4321 = vunpack.c.l.b16 %v3880
        %v4322 = vunpack.c.h.b16 %v3880
        %v4323 = vunpack.c.l.b16 %v3881
        %v4324 = vunpack.c.h.b16 %v3881
        %v4325 = vunpack.c.l.b16 %v3882
        %v4326 = vunpack.c.l.b16 %v3883
        %v4327 = vunpack.c.h.b16 %v3883
        %v4328 = vunpack.c.l.b16 %v3884
        %v4329 = vunpack.c.h.b16 %v3884
        %v4330 = vunpack.c.l.b16 %v3885
        %v4331 = vunpack.c.h.b16 %v3885
        %v4332 = vunpack.c.l.b16 %v3886
        %v4333 = vunpack.c.l.b16 %v3887
        %v4334 = vunpack.c.h.b16 %v3887
        %v4335 = vunpack.c.l.b16 %v3888
        %v4336 = vunpack.c.h.b16 %v3888
        %v4337 = vunpack.c.l.b16 %v3889
        %v4338 = vunpack.c.h.b16 %v3889
        %v4339 = vunpack.c.l.b16 %v3890
        %v4340 = vunpack.c.l.b16 %v3891
        %v4341 = vunpack.c.h.b16 %v3891
        %v4342 = vunpack.c.l.b16 %v3892
        %v4343 = vunpack.c.h.b16 %v3892
        %v4344 = vunpack.c.l.b16 %v3893
        %v4345 = vunpack.c.h.b16 %v3893
        %v4346 = vunpack.c.l.b16 %v3894
        %v4347 = vunpack.c.l.b16 %v3895
        %v4348 = vunpack.c.h.b16 %v3895
        %v4349 = vunpack.c.l.b16 %v3896
        %v4350 = vunpack.c.h.b16 %v3896
        %v4351 = vunpack.c.l.b16 %v3897
        %v4352 = vunpack.c.h.b16 %v3897
        %v4353 = vunpack.c.l.b16 %v3898
        %v4354 = vunpack.c.l.b16 %v3899
        %v4355 = vunpack.c.h.b16 %v3899
        %v4356 = vunpack.c.l.b16 %v3900
        %v4357 = vunpack.c.h.b16 %v3900
        %v4358 = vunpack.c.l.b16 %v3901
        %v4359 = vunpack.c.h.b16 %v3901
        %v4360 = vunpack.c.l.b16 %v3902
        %v4361 = vunpack.c.l.b16 %v3903
        %v4362 = vunpack.c.h.b16 %v3903
        %v4363 = vunpack.c.l.b16 %v3904
        %v4364 = vunpack.c.h.b16 %v3904
        %v4365 = vunpack.c.l.b16 %v3905
        %v4366 = vunpack.c.h.b16 %v3905
        %v4367 = vunpack.c.l.b16 %v3906
        %v4368 = vunpack.c.l.b16 %v3907
        %v4369 = vunpack.c.h.b16 %v3907
        %v4370 = vunpack.c.l.b16 %v3908
        %v4371 = vunpack.c.h.b16 %v3908
        %v4372 = vunpack.c.l.b16 %v3909
        %v4373 = vunpack.c.h.b16 %v3909
        %v4374 = vunpack.c.l.b16 %v3910
        %v4375 = vunpack.c.l.b16 %v3911
        %v4376 = vunpack.c.h.b16 %v3911
        %v4377 = vunpack.c.l.b16 %v3912
        %v4378 = vunpack.c.h.b16 %v3912
        %v4379 = vunpack.c.l.b16 %v3913
        %v4380 = vunpack.c.h.b16 %v3913
        %v4381 = vunpack.c.l.b16 %v3914
        %v4382 = vunpack.c.l.b16 %v3915
        %v4383 = vunpack.c.h.b16 %v3915
        %v4384 = vunpack.c.l.b16 %v3916
        %v4385 = vunpack.c.h.b16 %v3916
        %v4386 = vunpack.c.l.b16 %v3917
        %v4387 = vunpack.c.h.b16 %v3917
        %v4388 = vunpack.c.l.b16 %v3918
        %v4389 = vunpack.c.l.b16 %v3919
        %v4390 = vunpack.c.h.b16 %v3919
        %v4391 = vunpack.c.l.b16 %v3920
        %v4392 = vunpack.c.h.b16 %v3920
        %v4393 = vunpack.c.l.b16 %v3921
        %v4394 = vunpack.c.h.b16 %v3921
        %v4395 = vunpack.c.l.b16 %v3922
        %v4396 = vunpack.c.l.b16 %v3923
        %v4397 = vunpack.c.h.b16 %v3923
        %v4398 = vunpack.c.l.b16 %v3924
        %v4399 = vunpack.c.h.b16 %v3924
        %v4400 = vunpack.c.l.b16 %v3925
        %v4401 = vunpack.c.h.b16 %v3925
        %v4402 = vunpack.c.l.b16 %v3926
        %v4403 = vunpack.c.l.b16 %v3927
        %v4404 = vunpack.c.h.b16 %v3927
        %v4405 = vunpack.c.l.b16 %v3928
        %v4406 = vunpack.c.h.b16 %v3928
        %v4407 = vunpack.c.l.b16 %v3929
        %v4408 = vunpack.c.h.b16 %v3929
        %v4409 = vunpack.c.l.b16 %v3930
        %v4410 = vunpack.c.l.b16 %v3931
        %v4411 = vunpack.c.h.b16 %v3931
        %v4412 = vunpack.c.l.b16 %v3932
        %v4413 = vunpack.c.h.b16 %v3932
        %v4414 = vunpack.c.l.b16 %v3933
        %v4415 = vunpack.c.h.b16 %v3933
        %v4416 = vunpack.c.l.b16 %v3934
        %v4417 = vunpack.c.l.b16 %v3935
        %v4418 = vunpack.c.h.b16 %v3935
        %v4419 = vunpack.c.l.b16 %v3936
        %v4420 = vunpack.c.h.b16 %v3936
        %v4421 = vunpack.c.l.b16 %v3937
        %v4422 = vunpack.c.h.b16 %v3937
        %v4423 = vunpack.c.l.b16 %v3938
        %v4424 = vunpack.c.l.b16 %v3939
        %v4425 = vunpack.c.h.b16 %v3939
        %v4426 = vunpack.c.l.b16 %v3940
        %v4427 = vunpack.c.h.b16 %v3940
        %v4428 = vunpack.c.l.b16 %v3941
        %v4429 = vunpack.c.h.b16 %v3941
        %v4430 = vunpack.c.l.b16 %v3942
        %v4431 = vunpack.c.l.b16 %v3943
        %v4432 = vunpack.c.h.b16 %v3943
        %v4433 = vunpack.c.l.b16 %v3944
        %v4434 = vunpack.c.h.b16 %v3944
        %v4435 = vunpack.c.l.b16 %v3945
        %v4436 = vunpack.c.h.b16 %v3945
        %v4437 = vunpack.c.l.b16 %v3946
        %v4438 = vunpack.c.l.b16 %v3947
        %v4439 = vunpack.c.h.b16 %v3947
        %v4440 = vunpack.c.l.b16 %v3948
        %v4441 = vunpack.c.h.b16 %v3948
        %v4442 = vunpack.c.l.b16 %v3949
        %v4443 = vunpack.c.h.b16 %v3949
        %v4444 = vunpack.c.l.b16 %v3950
        %v4445 = vunpack.c.l.b16 %v3951
        %v4446 = vunpack.c.h.b16 %v3951
        %v4447 = vunpack.c.l.b16 %v3952
        %v4448 = vunpack.c.h.b16 %v3952
        %v4449 = vunpack.c.l.b16 %v3953
        %v4450 = vunpack.c.h.b16 %v3953
        %v4451 = vunpack.c.l.b16 %v3954
        %v4452 = vunpack.c.l.b16 %v3955
        %v4453 = vunpack.c.h.b16 %v3955
        %v4454 = vunpack.c.l.b16 %v3956
        %v4455 = vunpack.c.h.b16 %v3956
        %v4456 = vunpack.c.l.b16 %v3957
        %v4457 = vunpack.c.h.b16 %v3957
        %v4458 = vunpack.c.l.b16 %v3958
        %v4459 = vunpack.c.l.b16 %v3959
        %v4460 = vunpack.c.h.b16 %v3959
        %v4461 = vunpack.c.l.b16 %v3960
        %v4462 = vunpack.c.h.b16 %v3960
        %v4463 = vunpack.c.l.b16 %v3961
        %v4464 = vunpack.c.h.b16 %v3961
        %v4465 = vunpack.c.l.b16 %v3962
        %v4466 = vunpack.c.l.b16 %v3963
        %v4467 = vunpack.c.h.b16 %v3963
        %v4468 = vunpack.c.l.b16 %v3964
        %v4469 = vunpack.c.h.b16 %v3964
        %v4470 = vunpack.c.l.b16 %v3965
        %v4471 = vunpack.c.h.b16 %v3965
        %v4472 = vunpack.c.l.b16 %v3966
        %v4473 = vunpack.c.l.b16 %v3967
        %v4474 = vunpack.c.h.b16 %v3967
        %v4475 = vunpack.c.l.b16 %v3968
        %v4476 = vunpack.c.h.b16 %v3968
        %v4477 = vunpack.c.l.b16 %v3969
        %v4478 = vunpack.c.h.b16 %v3969
        %v4479 = vunpack.c.l.b16 %v3970
        %v4480 = vunpack.c.l.b16 %v3971
        %v4481 = vunpack.c.h.b16 %v3971
        %v4482 = vunpack.c.l.b16 %v3972
        %v4483 = vunpack.c.h.b16 %v3972
        %v4484 = vunpack.c.l.b16 %v3973
        %v4485 = vunpack.c.h.b16 %v3973
        %v4486 = vunpack.c.l.b16 %v3974
        %v4487 = vunpack.c.l.b16 %v3975
        %v4488 = vunpack.c.h.b16 %v3975
        %v4489 = vunpack.c.l.b16 %v3976
        %v4490 = vunpack.c.h.b16 %v3976
        %v4491 = vunpack.c.l.b16 %v3977
        %v4492 = vunpack.c.h.b16 %v3977
        %v4493 = vunpack.c.l.b16 %v3978
        %v4494 = vunpack.c.l.b16 %v3979
        %v4495 = vunpack.c.h.b16 %v3979
        %v4496 = vunpack.c.l.b16 %v3980
        %v4497 = vunpack.c.h.b16 %v3980
        %v4498 = vunpack.c.l.b16 %v3981
        %v4499 = vunpack.c.h.b16 %v3981
        %v4500 = vunpack.c.l.b16 %v3982
        %v4501 = vunpack.c.l.b16 %v3983
        %v4502 = vunpack.c.h.b16 %v3983
        %v4503 = vunpack.c.l.b16 %v3984
        %v4504 = vunpack.c.h.b16 %v3984
        %v4505 = vunpack.c.l.b16 %v3985
        %v4506 = vunpack.c.h.b16 %v3985
        %v4507 = vunpack.c.l.b16 %v3986
        %v4508 = vunpack.c.l.b16 %v3987
        %v4509 = vunpack.c.h.b16 %v3987
        %v4510 = vunpack.c.l.b16 %v3988
        %v4511 = vunpack.c.h.b16 %v3988
        %v4512 = vunpack.c.l.b16 %v3989
        %v4513 = vunpack.c.h.b16 %v3989
        %v4514 = vunpack.c.l.b16 %v3990
        %v4515 = vunpack.c.l.b16 %v3991
        %v4516 = vunpack.c.h.b16 %v3991
        %v4517 = vunpack.c.l.b16 %v3992
        %v4518 = vunpack.c.h.b16 %v3992
        %v4519 = vunpack.c.l.b16 %v3993
        %v4520 = vunpack.c.h.b16 %v3993
        %v4521 = vunpack.c.l.b16 %v3994
        %v4522 = vunpack.c.l.b16 %v3995
        %v4523 = vunpack.c.h.b16 %v3995
        %v4524 = vunpack.c.l.b16 %v3996
        %v4525 = vunpack.c.h.b16 %v3996
        %v4526 = vunpack.c.l.b16 %v3997
        %v4527 = vunpack.c.h.b16 %v3997
        %v4528 = vunpack.c.l.b16 %v3998
        %v4529 = vunpack.c.l.b16 %v3999
        %v4530 = vunpack.c.h.b16 %v3999
        %v4531 = vunpack.c.l.b16 %v4000
        %v4532 = vunpack.c.h.b16 %v4000
        %v4533 = vunpack.c.l.b16 %v4001
        %v4534 = vunpack.c.h.b16 %v4001
        %v4535 = vunpack.c.l.b16 %v4002
        %v4536 = vunpack.c.l.b16 %v4003
        %v4537 = vunpack.c.h.b16 %v4003
        %v4538 = vunpack.c.l.b16 %v4004
        %v4539 = vunpack.c.h.b16 %v4004
        %v4540 = vunpack.c.l.b16 %v4005
        %v4541 = vunpack.c.h.b16 %v4005
        %v4542 = vunpack.c.l.b16 %v4006
        %v4543 = vunpack.c.l.b16 %v4007
        %v4544 = vunpack.c.h.b16 %v4007
        %v4545 = vunpack.c.l.b16 %v4008
        %v4546 = vunpack.c.h.b16 %v4008
        %v4547 = vunpack.c.l.b16 %v4009
        %v4548 = vunpack.c.h.b16 %v4009
        %v4549 = vunpack.c.l.b16 %v4010
        %v4550 = vunpack.c.l.b16 %v4011
        %v4551 = vunpack.c.h.b16 %v4011
        %v4552 = vunpack.c.l.b16 %v4012
        %v4553 = vunpack.c.h.b16 %v4012
        %v4554 = vunpack.c.l.b16 %v4013
        %v4555 = vunpack.c.h.b16 %v4013
        %v4556 = vunpack.c.l.b16 %v4014
        %v4557 = vunpack.c.l.b16 %v4015
        %v4558 = vunpack.c.h.b16 %v4015
        %v4559 = vunpack.c.l.b16 %v4016
        %v4560 = vunpack.c.h.b16 %v4016
        %v4561 = vunpack.c.l.b16 %v4017
        %v4562 = vunpack.c.h.b16 %v4017
        %v4563 = vunpack.c.l.b16 %v4018
        %v4564 = vunpack.c.l.b16 %v4019
        %v4565 = vunpack.c.h.b16 %v4019
        %v4566 = vunpack.c.l.b16 %v4020
        %v4567 = vunpack.c.h.b16 %v4020
        %v4568 = vunpack.c.l.b16 %v4021
        %v4569 = vunpack.c.h.b16 %v4021
        %v4570 = vunpack.c.l.b16 %v4022
        %v4571 = vunpack.c.l.b16 %v4023
        %v4572 = vunpack.c.h.b16 %v4023
        %v4573 = vunpack.c.l.b16 %v4024
        %v4574 = vunpack.c.h.b16 %v4024
        %v4575 = vunpack.c.l.b16 %v4025
        %v4576 = vunpack.c.h.b16 %v4025
        %v4577 = vunpack.c.l.b16 %v4026
        %v4578 = vunpack.c.l.b16 %v4027
        %v4579 = vunpack.c.h.b16 %v4027
        %v4580 = vunpack.c.l.b16 %v4028
        %v4581 = vunpack.c.h.b16 %v4028
        %v4582 = vunpack.c.l.b16 %v4029
        %v4583 = vunpack.c.h.b16 %v4029
        %v4584 = vunpack.c.l.b16 %v4030
        %v4585 = vunpack.c.l.b16 %v4031
        %v4586 = vunpack.c.h.b16 %v4031
        %v4587 = vunpack.c.l.b16 %v4032
        %v4588 = vunpack.c.h.b16 %v4032
        %v4589 = vunpack.c.l.b16 %v4033
        %v4590 = vunpack.c.h.b16 %v4033
        %v4591 = vunpack.c.l.b16 %v4034
        %v4592 = vunpack.c.l.b16 %v4035
        %v4593 = vunpack.c.h.b16 %v4035
        %v4594 = vunpack.c.l.b16 %v4036
        %v4595 = vunpack.c.h.b16 %v4036
        %v4596 = vunpack.c.l.b16 %v4037
        %v4597 = vunpack.c.h.b16 %v4037
        %v4598 = vunpack.c.l.b16 %v4038
        %v4599 = vunpack.c.l.b16 %v4039
        %v4600 = vunpack.c.h.b16 %v4039
        %v4601 = vunpack.c.l.b16 %v4040
        %v4602 = vunpack.c.h.b16 %v4040
        %v4603 = vunpack.c.l.b16 %v4041
        %v4604 = vunpack.c.h.b16 %v4041
        %v4605 = vunpack.c.l.b16 %v4042
        %v4606 = vunpack.c.l.b16 %v4043
        %v4607 = vunpack.c.h.b16 %v4043
        %v4608 = vunpack.c.l.b16 %v4044
        %v4609 = vunpack.c.h.b16 %v4044
        %v4610 = vunpack.c.l.b16 %v4045
        %v4611 = vunpack.c.h.b16 %v4045
        %v4612 = vunpack.c.l.b16 %v4046
        %v4613 = vunpack.c.l.b16 %v4047
        %v4614 = vunpack.c.h.b16 %v4047
        %v4615 = vunpack.c.l.b16 %v4048
        %v4616 = vunpack.c.h.b16 %v4048
        %v4617 = vunpack.c.l.b16 %v4049
        %v4618 = vunpack.c.h.b16 %v4049
        %v4619 = vunpack.c.l.b16 %v4050
        %v4620 = vunpack.c.l.b16 %v4051
        %v4621 = vunpack.c.h.b16 %v4051
        %v4622 = vunpack.c.l.b16 %v4052
        %v4623 = vunpack.c.h.b16 %v4052
        %v4624 = vunpack.c.l.b16 %v4053
        %v4625 = vunpack.c.h.b16 %v4053
        %v4626 = vunpack.c.l.b16 %v4054
        %v4627 = vunpack.c.l.b16 %v4055
        %v4628 = vunpack.c.h.b16 %v4055
        %v4629 = vunpack.c.l.b16 %v4056
        %v4630 = vunpack.c.h.b16 %v4056
        %v4631 = vunpack.c.l.b16 %v4057
        %v4632 = vunpack.c.h.b16 %v4057
        %v4633 = vunpack.c.l.b16 %v4058
        %v4634 = vunpack.c.l.b16 %v4059
        %v4635 = vunpack.c.h.b16 %v4059
        %v4636 = vunpack.c.l.b16 %v4060
        %v4637 = vunpack.c.h.b16 %v4060
        %v4638 = vunpack.c.l.b16 %v4061
        %v4639 = vunpack.c.h.b16 %v4061
        %v4640 = vunpack.c.l.b16 %v4062
        %v4641 = vunpack.c.l.b16 %v4063
        %v4642 = vunpack.c.h.b16 %v4063
        %v4643 = vunpack.c.l.b16 %v4064
        %v4644 = vunpack.c.h.b16 %v4064
        %v4645 = vunpack.c.l.b16 %v4065
        %v4646 = vunpack.c.h.b16 %v4065
        %v4647 = vunpack.c.l.b16 %v4066
        %v4648 = vunpack.c.l.b16 %v4067
        %v4649 = vunpack.c.h.b16 %v4067
        %v4650 = vunpack.c.l.b16 %v4068
        %v4651 = vunpack.c.h.b16 %v4068
        %v4652 = vunpack.c.l.b16 %v4069
        %v4653 = vunpack.c.h.b16 %v4069
        %v4654 = vunpack.c.l.b16 %v4070
        %v4655 = vunpack.c.l.b16 %v4071
        %v4656 = vunpack.c.h.b16 %v4071
        %v4657 = vunpack.c.l.b16 %v4072
        %v4658 = vunpack.c.h.b16 %v4072
        %v4659 = vunpack.c.l.b16 %v4073
        %v4660 = vunpack.c.h.b16 %v4073
        %v4661 = vunpack.c.l.b16 %v4074
        %v4662 = vpack.c.b16 %v4319, %v4312
        %v4663 = vpack.c.b16 %v4320, %v4313
        %v4664 = vpack.c.b16 %v4321, %v4314
        %v4665 = vpack.c.b16 %v4322, %v4315
        %v4666 = vpack.c.b16 %v4323, %v4316
        %v4667 = vpack.c.b16 %v4324, %v4317
        %v4668 = vpack.c.b16 %v4325, %v4318
        %v4669 = vpack.c.b16 %v4333, %v4326
        %v4670 = vpack.c.b16 %v4334, %v4327
        %v4671 = vpack.c.b16 %v4335, %v4328
        %v4672 = vpack.c.b16 %v4336, %v4329
        %v4673 = vpack.c.b16 %v4337, %v4330
        %v4674 = vpack.c.b16 %v4338, %v4331
        %v4675 = vpack.c.b16 %v4339, %v4332
        %v4676 = vpack.c.b16 %v4347, %v4340
        %v4677 = vpack.c.b16 %v4348, %v4341
        %v4678 = vpack.c.b16 %v4349, %v4342
        %v4679 = vpack.c.b16 %v4350, %v4343
        %v4680 = vpack.c.b16 %v4351, %v4344
        %v4681 = vpack.c.b16 %v4352, %v4345
        %v4682 = vpack.c.b16 %v4353, %v4346
        %v4683 = vpack.c.b16 %v4361, %v4354
        %v4684 = vpack.c.b16 %v4362, %v4355
        %v4685 = vpack.c.b16 %v4363, %v4356
        %v4686 = vpack.c.b16 %v4364, %v4357
        %v4687 = vpack.c.b16 %v4365, %v4358
        %v4688 = vpack.c.b16 %v4366, %v4359
        %v4689 = vpack.c.b16 %v4367, %v4360
        %v4690 = vpack.c.b16 %v4375, %v4368
        %v4691 = vpack.c.b16 %v4376, %v4369
        %v4692 = vpack.c.b16 %v4377, %v4370
        %v4693 = vpack.c.b16 %v4378, %v4371
        %v4694 = vpack.c.b16 %v4379, %v4372
        %v4695 = vpack.c.b16 %v4380, %v4373
        %v4696 = vpack.c.b16 %v4381, %v4374
        %v4697 = vpack.c.b16 %v4389, %v4382
        %v4698 = vpack.c.b16 %v4390, %v4383
        %v4699 = vpack.c.b16 %v4391, %v4384
        %v4700 = vpack.c.b16 %v4392, %v4385
        %v4701 = vpack.c.b16 %v4393, %v4386
        %v4702 = vpack.c.b16 %v4394, %v4387
        %v4703 = vpack.c.b16 %v4395, %v4388
        %v4704 = vpack.c.b16 %v4403, %v4396
        %v4705 = vpack.c.b16 %v4404, %v4397
        %v4706 = vpack.c.b16 %v4405, %v4398
        %v4707 = vpack.c.b16 %v4406, %v4399
        %v4708 = vpack.c.b16 %v4407, %v4400
        %v4709 = vpack.c.b16 %v4408, %v4401
        %v4710 = vpack.c.b16 %v4409, %v4402
        %v4711 = vpack.c.b16 %v4417, %v4410
        %v4712 = vpack.c.b16 %v4418, %v4411
        %v4713 = vpack.c.b16 %v4419, %v4412
        %v4714 = vpack.c.b16 %v4420, %v4413
        %v4715 = vpack.c.b16 %v4421, %v4414
        %v4716 = vpack.c.b16 %v4422, %v4415
        %v4717 = vpack.c.b16 %v4423, %v4416
        %v4718 = vpack.c.b16 %v4431, %v4424
        %v4719 = vpack.c.b16 %v4432, %v4425
        %v4720 = vpack.c.b16 %v4433, %v4426
        %v4721 = vpack.c.b16 %v4434, %v4427
        %v4722 = vpack.c.b16 %v4435, %v4428
        %v4723 = vpack.c.b16 %v4436, %v4429
        %v4724 = vpack.c.b16 %v4437, %v4430
        %v4725 = vpack.c.b16 %v4445, %v4438
        %v4726 = vpack.c.b16 %v4446, %v4439
        %v4727 = vpack.c.b16 %v4447, %v4440
        %v4728 = vpack.c.b16 %v4448, %v4441
        %v4729 = vpack.c.b16 %v4449, %v4442
        %v4730 = vpack.c.b16 %v4450, %v4443
        %v4731 = vpack.c.b16 %v4451, %v4444
        %v4732 = vpack.c.b16 %v4459, %v4452
        %v4733 = vpack.c.b16 %v4460, %v4453
        %v4734 = vpack.c.b16 %v4461, %v4454
        %v4735 = vpack.c.b16 %v4462, %v4455
        %v4736 = vpack.c.b16 %v4463, %v4456
        %v4737 = vpack.c.b16 %v4464, %v4457
        %v4738 = vpack.c.b16 %v4465, %v4458
        %v4739 = vpack.c.b16 %v4473, %v4466
        %v4740 = vpack.c.b16 %v4474, %v4467
        %v4741 = vpack.c.b16 %v4475, %v4468
        %v4742 = vpack.c.b16 %v4476, %v4469
        %v4743 = vpack.c.b16 %v4477, %v4470
        %v4744 = vpack.c.b16 %v4478, %v4471
        %v4745 = vpack.c.b16 %v4479, %v4472
        %v4746 = vpack.c.b16 %v4487, %v4480
        %v4747 = vpack.c.b16 %v4488, %v4481
        %v4748 = vpack.c.b16 %v4489, %v4482
        %v4749 = vpack.c.b16 %v4490, %v4483
        %v4750 = vpack.c.b16 %v4491, %v4484
        %v4751 = vpack.c.b16 %v4492, %v4485
        %v4752 = vpack.c.b16 %v4493, %v4486
        %v4753 = vpack.c.b16 %v4501, %v4494
        %v4754 = vpack.c.b16 %v4502, %v4495
        %v4755 = vpack.c.b16 %v4503, %v4496
        %v4756 = vpack.c.b16 %v4504, %v4497
        %v4757 = vpack.c.b16 %v4505, %v4498
        %v4758 = vpack.c.b16 %v4506, %v4499
        %v4759 = vpack.c.b16 %v4507, %v4500
        %v4760 = vpack.c.b16 %v4515, %v4508
        %v4761 = vpack.c.b16 %v4516, %v4509
        %v4762 = vpack.c.b16 %v4517, %v4510
        %v4763 = vpack.c.b16 %v4518, %v4511
        %v4764 = vpack.c.b16 %v4519, %v4512
        %v4765 = vpack.c.b16 %v4520, %v4513
        %v4766 = vpack.c.b16 %v4521, %v4514
        %v4767 = vpack.c.b16 %v4529, %v4522
        %v4768 = vpack.c.b16 %v4530, %v4523
        %v4769 = vpack.c.b16 %v4531, %v4524
        %v4770 = vpack.c.b16 %v4532, %v4525
        %v4771 = vpack.c.b16 %v4533, %v4526
        %v4772 = vpack.c.b16 %v4534, %v4527
        %v4773 = vpack.c.b16 %v4535, %v4528
        %v4774 = vpack.c.b16 %v4543, %v4536
        %v4775 = vpack.c.b16 %v4544, %v4537
        %v4776 = vpack.c.b16 %v4545, %v4538
        %v4777 = vpack.c.b16 %v4546, %v4539
        %v4778 = vpack.c.b16 %v4547, %v4540
        %v4779 = vpack.c.b16 %v4548, %v4541
        %v4780 = vpack.c.b16 %v4549, %v4542
        %v4781 = vpack.c.b16 %v4557, %v4550
        %v4782 = vpack.c.b16 %v4558, %v4551
        %v4783 = vpack.c.b16 %v4559, %v4552
        %v4784 = vpack.c.b16 %v4560, %v4553
        %v4785 = vpack.c.b16 %v4561, %v4554
        %v4786 = vpack.c.b16 %v4562, %v4555
        %v4787 = vpack.c.b16 %v4563, %v4556
        %v4788 = vpack.c.b16 %v4571, %v4564
        %v4789 = vpack.c.b16 %v4572, %v4565
        %v4790 = vpack.c.b16 %v4573, %v4566
        %v4791 = vpack.c.b16 %v4574, %v4567
        %v4792 = vpack.c.b16 %v4575, %v4568
        %v4793 = vpack.c.b16 %v4576, %v4569
        %v4794 = vpack.c.b16 %v4577, %v4570
        %v4795 = vpack.c.b16 %v4585, %v4578
        %v4796 = vpack.c.b16 %v4586, %v4579
        %v4797 = vpack.c.b16 %v4587, %v4580
        %v4798 = vpack.c.b16 %v4588, %v4581
        %v4799 = vpack.c.b16 %v4589, %v4582
        %v4800 = vpack.c.b16 %v4590, %v4583
        %v4801 = vpack.c.b16 %v4591, %v4584
        %v4802 = vpack.c.b16 %v4599, %v4592
        %v4803 = vpack.c.b16 %v4600, %v4593
        %v4804 = vpack.c.b16 %v4601, %v4594
        %v4805 = vpack.c.b16 %v4602, %v4595
        %v4806 = vpack.c.b16 %v4603, %v4596
        %v4807 = vpack.c.b16 %v4604, %v4597
        %v4808 = vpack.c.b16 %v4605, %v4598
        %v4809 = vpack.c.b16 %v4613, %v4606
        %v4810 = vpack.c.b16 %v4614, %v4607
        %v4811 = vpack.c.b16 %v4615, %v4608
        %v4812 = vpack.c.b16 %v4616, %v4609
        %v4813 = vpack.c.b16 %v4617, %v4610
        %v4814 = vpack.c.b16 %v4618, %v4611
        %v4815 = vpack.c.b16 %v4619, %v4612
        %v4816 = vpack.c.b16 %v4627, %v4620
        %v4817 = vpack.c.b16 %v4628, %v4621
        %v4818 = vpack.c.b16 %v4629, %v4622
        %v4819 = vpack.c.b16 %v4630, %v4623
        %v4820 = vpack.c.b16 %v4631, %v4624
        %v4821 = vpack.c.b16 %v4632, %v4625
        %v4822 = vpack.c.b16 %v4633, %v4626
        %v4823 = vpack.c.b16 %v4641, %v4634
        %v4824 = vpack.c.b16 %v4642, %v4635
        %v4825 = vpack.c.b16 %v4643, %v4636
        %v4826 = vpack.c.b16 %v4644, %v4637
        %v4827 = vpack.c.b16 %v4645, %v4638
        %v4828 = vpack.c.b16 %v4646, %v4639
        %v4829 = vpack.c.b16 %v4647, %v4640
        %v4830 = vpack.c.b16 %v4655, %v4648
        %v4831 = vpack.c.b16 %v4656, %v4649
        %v4832 = vpack.c.b16 %v4657, %v4650
        %v4833 = vpack.c.b16 %v4658, %v4651
        %v4834 = vpack.c.b16 %v4659, %v4652
        %v4835 = vpack.c.b16 %v4660, %v4653
        %v4836 = vpack.c.b16 %v4661, %v4654
        %v5013 = vsel %vm1808, %v3846, 0
        %v5016 = vsel %vm1808, %v3850, 0
        %v5019 = vsel %vm1808, %v3854, 0
        %v5022 = vsel %vm1808, %v3858, 0
        %v5025 = vsel %vm1808, %v3862, 0
        %v5028 = vsel %vm1808, %v3866, 0
        %v5031 = vsel %vm1808, %v3870, 0
        %v5034 = vsel %vm1808, %v3874, 0
        %5036 = vmatprep.subr.bf16.mxu0 %v4712
        %5037 = vmatpush1.bf16.msra.mxu0 %v4711
        %5038 = vmatprep.subr.bf16.mxu0 %v4705
        %5039 = vmatpush1.bf16.msra.mxu0 %v4704
        %5040 = vmatprep.subr.bf16.mxu0 %v4698
        %5041 = vmatpush1.bf16.msra.mxu0 %v4697
        %5042 = vmatprep.subr.bf16.mxu0 %v4691
        %5043 = vmatpush1.bf16.msra.mxu0 %v4690
        %5044 = vmatprep.subr.bf16.mxu0 %v4684
        %5045 = vmatpush1.bf16.msra.mxu0 %v4683
        %5046 = vmatprep.subr.bf16.mxu0 %v4677
        %5047 = vmatpush1.bf16.msra.mxu0 %v4676
        %5048 = vmatprep.subr.bf16.mxu0 %v4670
        %5049 = vmatpush1.bf16.msra.mxu0 %v4669
        %5050 = vmatprep.subr.bf16.mxu0 %v4663
        %5051 = vmatpush1.bf16.msra.mxu0 %v4662
        %5052 = vmatprep.subr.bf16.mxu0 %v4768
        %5053 = vmatpush2.bf16.msra.mxu0 %v4767
        %5054 = vmatprep.subr.bf16.mxu0 %v4761
        %5055 = vmatpush2.bf16.msra.mxu0 %v4760
        %5056 = vmatprep.subr.bf16.mxu0 %v4754
        %5057 = vmatpush2.bf16.msra.mxu0 %v4753
        %5058 = vmatprep.subr.bf16.mxu0 %v4747
        %5059 = vmatpush2.bf16.msra.mxu0 %v4746
        %5060 = vmatprep.subr.bf16.mxu0 %v4740
        %5061 = vmatpush2.bf16.msra.mxu0 %v4739
        %5062 = vmatprep.subr.bf16.mxu0 %v4733
        %5063 = vmatpush2.bf16.msra.mxu0 %v4732
        %5064 = vmatprep.subr.bf16.mxu0 %v4726
        %5065 = vmatpush2.bf16.msra.mxu0 %v4725
        %5066 = vmatprep.subr.bf16.mxu0 %v4719
        %5067 = vmatpush2.bf16.msra.mxu0 %v4718
        %5068 = vmatprep.mubr.bf16.mxu0 %v3844
        %5069 = vmatmul.mubr.bf16.gmra.mxu0 %v3843
        %v5070 = vpop.f32.mrf.mxu0
        %v5071 = vadd.f32 %v4080, %v5070
        %v5072 = vpop.f32.mrf.mxu0
        %v5073 = vadd.f32 %v4084, %v5072
        %v5074 = vpop.f32.mrf.mxu0
        %v5075 = vadd.f32 %v4080, %v5074
        %v5076 = vpop.f32.mrf.mxu0
        %v5077 = vadd.f32 %v4084, %v5076
        %5078 = vmatprep.mubr.bf16.mxu0 %v3848
        %5079 = vmatmul.mubr.bf16.gmra.mxu0 %v3847
        %v5080 = vpop.f32.mrf.mxu0
        %v5081 = vadd.f32 %v4080, %v5080
        %v5082 = vpop.f32.mrf.mxu0
        %v5083 = vadd.f32 %v4084, %v5082
        %v5084 = vpop.f32.mrf.mxu0
        %v5085 = vadd.f32 %v4080, %v5084
        %v5086 = vpop.f32.mrf.mxu0
        %v5087 = vadd.f32 %v4084, %v5086
        %5088 = vmatprep.mubr.bf16.mxu0 %v3852
        %5089 = vmatmul.mubr.bf16.gmra.mxu0 %v3851
        %v5090 = vpop.f32.mrf.mxu0
        %v5091 = vadd.f32 %v4080, %v5090
        %v5092 = vpop.f32.mrf.mxu0
        %v5093 = vadd.f32 %v4084, %v5092
        %v5094 = vpop.f32.mrf.mxu0
        %v5095 = vadd.f32 %v4080, %v5094
        %v5096 = vpop.f32.mrf.mxu0
        %v5097 = vadd.f32 %v4084, %v5096
        %5098 = vmatprep.mubr.bf16.mxu0 %v3856
        %5099 = vmatmul.mubr.bf16.gmra.mxu0 %v3855
        %v5100 = vpop.f32.mrf.mxu0
        %v5101 = vadd.f32 %v4080, %v5100
        %v5102 = vpop.f32.mrf.mxu0
        %v5103 = vadd.f32 %v4084, %v5102
        %v5104 = vpop.f32.mrf.mxu0
        %v5105 = vadd.f32 %v4080, %v5104
        %v5106 = vpop.f32.mrf.mxu0
        %v5107 = vadd.f32 %v4084, %v5106
        %5108 = vmatprep.mubr.bf16.mxu0 %v3860
        %5109 = vmatmul.mubr.bf16.gmra.mxu0 %v3859
        %v5110 = vpop.f32.mrf.mxu0
        %v5111 = vadd.f32 %v4080, %v5110
        %v5112 = vpop.f32.mrf.mxu0
        %v5113 = vadd.f32 %v4084, %v5112
        %v5114 = vpop.f32.mrf.mxu0
        %v5115 = vadd.f32 %v4080, %v5114
        %v5116 = vpop.f32.mrf.mxu0
        %v5117 = vadd.f32 %v4084, %v5116
        %5118 = vmatprep.mubr.bf16.mxu0 %v3864
        %5119 = vmatmul.mubr.bf16.gmra.mxu0 %v3863
        %v5120 = vpop.f32.mrf.mxu0
        %v5121 = vadd.f32 %v4080, %v5120
        %v5122 = vpop.f32.mrf.mxu0
        %v5123 = vadd.f32 %v4084, %v5122
        %v5124 = vpop.f32.mrf.mxu0
        %v5125 = vadd.f32 %v4080, %v5124
        %v5126 = vpop.f32.mrf.mxu0
        %v5127 = vadd.f32 %v4084, %v5126
        %5128 = vmatprep.mubr.bf16.mxu0 %v3868
        %5129 = vmatmul.mubr.bf16.gmra.mxu0 %v3867
        %v5130 = vpop.f32.mrf.mxu0
        %v5131 = vadd.f32 %v4080, %v5130
        %v5132 = vpop.f32.mrf.mxu0
        %v5133 = vadd.f32 %v4084, %v5132
        %v5134 = vpop.f32.mrf.mxu0
        %v5135 = vadd.f32 %v4080, %v5134
        %v5136 = vpop.f32.mrf.mxu0
        %v5137 = vadd.f32 %v4084, %v5136
        %5138 = vmatprep.mubr.bf16.mxu0 %v3872
        %5139 = vmatmul.mubr.bf16.gmra.mxu0 %v3871
        %v5140 = vpop.f32.mrf.mxu0
        %v5141 = vadd.f32 %v4080, %v5140
        %v5142 = vpop.f32.mrf.mxu0
        %v5143 = vadd.f32 %v4084, %v5142
        %v5144 = vpop.f32.mrf.mxu0
        %v5145 = vadd.f32 %v4080, %v5144
        %v5146 = vpop.f32.mrf.mxu0
        %v5147 = vadd.f32 %v4084, %v5146
        %5148 = vdwg.mxu0
        %5149 = vmatprep.subr.bf16.mxu0 %v4824
        %5150 = vmatpush1.bf16.msra.mxu0 %v4823
        %5151 = vmatprep.subr.bf16.mxu0 %v4817
        %5152 = vmatpush1.bf16.msra.mxu0 %v4816
        %5153 = vmatprep.subr.bf16.mxu0 %v4810
        %5154 = vmatpush1.bf16.msra.mxu0 %v4809
        %5155 = vmatprep.subr.bf16.mxu0 %v4803
        %5156 = vmatpush1.bf16.msra.mxu0 %v4802
        %5157 = vmatprep.subr.bf16.mxu0 %v4796
        %5158 = vmatpush1.bf16.msra.mxu0 %v4795
        %5159 = vmatprep.subr.bf16.mxu0 %v4789
        %5160 = vmatpush1.bf16.msra.mxu0 %v4788
        %5161 = vmatprep.subr.bf16.mxu0 %v4782
        %5162 = vmatpush1.bf16.msra.mxu0 %v4781
        %5163 = vmatprep.subr.bf16.mxu0 %v4775
        %5164 = vmatpush1.bf16.msra.mxu0 %v4774
        %5165 = vmatprep.subr.bf16.mxu0 0
        %5166 = vmatpush2.bf16.msra.mxu0 0
        %5167 = vmatprep.subr.bf16.mxu0 0
        %5168 = vmatpush2.bf16.msra.mxu0 0
        %5169 = vmatprep.subr.bf16.mxu0 0
        %5170 = vmatpush2.bf16.msra.mxu0 0
        %5171 = vmatprep.subr.bf16.mxu0 0
        %5172 = vmatpush2.bf16.msra.mxu0 0
        %5173 = vmatprep.subr.bf16.mxu0 0
        %5174 = vmatpush2.bf16.msra.mxu0 0
        %5175 = vmatprep.subr.bf16.mxu0 0
        %5176 = vmatpush2.bf16.msra.mxu0 0
        %5177 = vmatprep.subr.bf16.mxu0 0
        %5178 = vmatpush2.bf16.msra.mxu0 0
        %5179 = vmatprep.subr.bf16.mxu0 %v4831
        %5180 = vmatpush2.bf16.msra.mxu0 %v4830
        %5181 = vmatprep.mubr.bf16.mxu0 %v5013
        %5182 = vmatmul.mubr.bf16.gmra.mxu0 %v3845
        %v5183 = vpop.f32.mrf.mxu0
        %v5184 = vadd.f32 %v5071, %v5183
        %v5185 = vpop.f32.mrf.mxu0
        %v5186 = vadd.f32 %v5073, %v5185
        %v5187 = vpop.f32.mrf.mxu0
        %v5188 = vadd.f32 %v5075, %v5187
        %v5189 = vpop.f32.mrf.mxu0
        %v5190 = vadd.f32 %v5077, %v5189
        %5191 = vmatprep.mubr.bf16.mxu0 %v5016
        %5192 = vmatmul.mubr.bf16.gmra.mxu0 %v3849
        %v5193 = vpop.f32.mrf.mxu0
        %v5194 = vadd.f32 %v5081, %v5193
        %v5195 = vpop.f32.mrf.mxu0
        %v5196 = vadd.f32 %v5083, %v5195
        %v5197 = vpop.f32.mrf.mxu0
        %v5198 = vadd.f32 %v5085, %v5197
        %v5199 = vpop.f32.mrf.mxu0
        %v5200 = vadd.f32 %v5087, %v5199
        %5201 = vmatprep.mubr.bf16.mxu0 %v5019
        %5202 = vmatmul.mubr.bf16.gmra.mxu0 %v3853
        %v5203 = vpop.f32.mrf.mxu0
        %v5204 = vadd.f32 %v5091, %v5203
        %v5205 = vpop.f32.mrf.mxu0
        %v5206 = vadd.f32 %v5093, %v5205
        %v5207 = vpop.f32.mrf.mxu0
        %v5208 = vadd.f32 %v5095, %v5207
        %v5209 = vpop.f32.mrf.mxu0
        %v5210 = vadd.f32 %v5097, %v5209
        %5211 = vmatprep.mubr.bf16.mxu0 %v5022
        %5212 = vmatmul.mubr.bf16.gmra.mxu0 %v3857
        %v5213 = vpop.f32.mrf.mxu0
        %v5214 = vadd.f32 %v5101, %v5213
        %v5215 = vpop.f32.mrf.mxu0
        %v5216 = vadd.f32 %v5103, %v5215
        %v5217 = vpop.f32.mrf.mxu0
        %v5218 = vadd.f32 %v5105, %v5217
        %v5219 = vpop.f32.mrf.mxu0
        %v5220 = vadd.f32 %v5107, %v5219
        %5221 = vmatprep.mubr.bf16.mxu0 %v5025
        %5222 = vmatmul.mubr.bf16.gmra.mxu0 %v3861
        %v5223 = vpop.f32.mrf.mxu0
        %v5224 = vadd.f32 %v5111, %v5223
        %v5225 = vpop.f32.mrf.mxu0
        %v5226 = vadd.f32 %v5113, %v5225
        %v5227 = vpop.f32.mrf.mxu0
        %v5228 = vadd.f32 %v5115, %v5227
        %v5229 = vpop.f32.mrf.mxu0
        %v5230 = vadd.f32 %v5117, %v5229
        %5231 = vmatprep.mubr.bf16.mxu0 %v5028
        %5232 = vmatmul.mubr.bf16.gmra.mxu0 %v3865
        %v5233 = vpop.f32.mrf.mxu0
        %v5234 = vadd.f32 %v5121, %v5233
        %v5235 = vpop.f32.mrf.mxu0
        %v5236 = vadd.f32 %v5123, %v5235
        %v5237 = vpop.f32.mrf.mxu0
        %v5238 = vadd.f32 %v5125, %v5237
        %v5239 = vpop.f32.mrf.mxu0
        %v5240 = vadd.f32 %v5127, %v5239
        %5241 = vmatprep.mubr.bf16.mxu0 %v5031
        %5242 = vmatmul.mubr.bf16.gmra.mxu0 %v3869
        %v5243 = vpop.f32.mrf.mxu0
        %v5244 = vadd.f32 %v5131, %v5243
        %v5245 = vpop.f32.mrf.mxu0
        %v5246 = vadd.f32 %v5133, %v5245
        %v5247 = vpop.f32.mrf.mxu0
        %v5248 = vadd.f32 %v5135, %v5247
        %v5249 = vpop.f32.mrf.mxu0
        %v5250 = vadd.f32 %v5137, %v5249
        %5251 = vmatprep.mubr.bf16.mxu0 %v5034
        %5252 = vmatmul.mubr.bf16.gmra.mxu0 %v3873
        %v5253 = vpop.f32.mrf.mxu0
        %v5254 = vadd.f32 %v5141, %v5253
        %v5255 = vpop.f32.mrf.mxu0
        %v5256 = vadd.f32 %v5143, %v5255
        %v5257 = vpop.f32.mrf.mxu0
        %v5258 = vadd.f32 %v5145, %v5257
        %v5259 = vpop.f32.mrf.mxu0
        %v5260 = vadd.f32 %v5147, %v5259
        %5261 = vdwg.mxu0
        %5262 = vmatprep.subr.bf16.mxu0 %v4714
        %5263 = vmatpush1.bf16.msra.mxu0 %v4713
        %5264 = vmatprep.subr.bf16.mxu0 %v4707
        %5265 = vmatpush1.bf16.msra.mxu0 %v4706
        %5266 = vmatprep.subr.bf16.mxu0 %v4700
        %5267 = vmatpush1.bf16.msra.mxu0 %v4699
        %5268 = vmatprep.subr.bf16.mxu0 %v4693
        %5269 = vmatpush1.bf16.msra.mxu0 %v4692
        %5270 = vmatprep.subr.bf16.mxu0 %v4686
        %5271 = vmatpush1.bf16.msra.mxu0 %v4685
        %5272 = vmatprep.subr.bf16.mxu0 %v4679
        %5273 = vmatpush1.bf16.msra.mxu0 %v4678
        %5274 = vmatprep.subr.bf16.mxu0 %v4672
        %5275 = vmatpush1.bf16.msra.mxu0 %v4671
        %5276 = vmatprep.subr.bf16.mxu0 %v4665
        %5277 = vmatpush1.bf16.msra.mxu0 %v4664
        %5278 = vmatprep.subr.bf16.mxu0 %v4770
        %5279 = vmatpush2.bf16.msra.mxu0 %v4769
        %5280 = vmatprep.subr.bf16.mxu0 %v4763
        %5281 = vmatpush2.bf16.msra.mxu0 %v4762
        %5282 = vmatprep.subr.bf16.mxu0 %v4756
        %5283 = vmatpush2.bf16.msra.mxu0 %v4755
        %5284 = vmatprep.subr.bf16.mxu0 %v4749
        %5285 = vmatpush2.bf16.msra.mxu0 %v4748
        %5286 = vmatprep.subr.bf16.mxu0 %v4742
        %5287 = vmatpush2.bf16.msra.mxu0 %v4741
        %5288 = vmatprep.subr.bf16.mxu0 %v4735
        %5289 = vmatpush2.bf16.msra.mxu0 %v4734
        %5290 = vmatprep.subr.bf16.mxu0 %v4728
        %5291 = vmatpush2.bf16.msra.mxu0 %v4727
        %5292 = vmatprep.subr.bf16.mxu0 %v4721
        %5293 = vmatpush2.bf16.msra.mxu0 %v4720
        %5294 = vmatprep.mubr.bf16.mxu0 %v3844
        %5295 = vmatmul.mubr.bf16.gmra.mxu0 %v3843
        %v5296 = vpop.f32.mrf.mxu0
        %v5297 = vadd.f32 %v4088, %v5296
        %v5298 = vpop.f32.mrf.mxu0
        %v5299 = vadd.f32 %v4092, %v5298
        %v5300 = vpop.f32.mrf.mxu0
        %v5301 = vadd.f32 %v4088, %v5300
        %v5302 = vpop.f32.mrf.mxu0
        %v5303 = vadd.f32 %v4092, %v5302
        %5304 = vmatprep.mubr.bf16.mxu0 %v3848
        %5305 = vmatmul.mubr.bf16.gmra.mxu0 %v3847
        %v5306 = vpop.f32.mrf.mxu0
        %v5307 = vadd.f32 %v4088, %v5306
        %v5308 = vpop.f32.mrf.mxu0
        %v5309 = vadd.f32 %v4092, %v5308
        %v5310 = vpop.f32.mrf.mxu0
        %v5311 = vadd.f32 %v4088, %v5310
        %v5312 = vpop.f32.mrf.mxu0
        %v5313 = vadd.f32 %v4092, %v5312
        %5314 = vmatprep.mubr.bf16.mxu0 %v3852
        %5315 = vmatmul.mubr.bf16.gmra.mxu0 %v3851
        %v5316 = vpop.f32.mrf.mxu0
        %v5317 = vadd.f32 %v4088, %v5316
        %v5318 = vpop.f32.mrf.mxu0
        %v5319 = vadd.f32 %v4092, %v5318
        %v5320 = vpop.f32.mrf.mxu0
        %v5321 = vadd.f32 %v4088, %v5320
        %v5322 = vpop.f32.mrf.mxu0
        %v5323 = vadd.f32 %v4092, %v5322
        %5324 = vmatprep.mubr.bf16.mxu0 %v3856
        %5325 = vmatmul.mubr.bf16.gmra.mxu0 %v3855
        %v5326 = vpop.f32.mrf.mxu0
        %v5327 = vadd.f32 %v4088, %v5326
        %v5328 = vpop.f32.mrf.mxu0
        %v5329 = vadd.f32 %v4092, %v5328
        %v5330 = vpop.f32.mrf.mxu0
        %v5331 = vadd.f32 %v4088, %v5330
        %v5332 = vpop.f32.mrf.mxu0
        %v5333 = vadd.f32 %v4092, %v5332
        %5334 = vmatprep.mubr.bf16.mxu0 %v3860
        %5335 = vmatmul.mubr.bf16.gmra.mxu0 %v3859
        %v5336 = vpop.f32.mrf.mxu0
        %v5337 = vadd.f32 %v4088, %v5336
        %v5338 = vpop.f32.mrf.mxu0
        %v5339 = vadd.f32 %v4092, %v5338
        %v5340 = vpop.f32.mrf.mxu0
        %v5341 = vadd.f32 %v4088, %v5340
        %v5342 = vpop.f32.mrf.mxu0
        %v5343 = vadd.f32 %v4092, %v5342
        %5344 = vmatprep.mubr.bf16.mxu0 %v3864
        %5345 = vmatmul.mubr.bf16.gmra.mxu0 %v3863
        %v5346 = vpop.f32.mrf.mxu0
        %v5347 = vadd.f32 %v4088, %v5346
        %v5348 = vpop.f32.mrf.mxu0
        %v5349 = vadd.f32 %v4092, %v5348
        %v5350 = vpop.f32.mrf.mxu0
        %v5351 = vadd.f32 %v4088, %v5350
        %v5352 = vpop.f32.mrf.mxu0
        %v5353 = vadd.f32 %v4092, %v5352
        %5354 = vmatprep.mubr.bf16.mxu0 %v3868
        %5355 = vmatmul.mubr.bf16.gmra.mxu0 %v3867
        %v5356 = vpop.f32.mrf.mxu0
        %v5357 = vadd.f32 %v4088, %v5356
        %v5358 = vpop.f32.mrf.mxu0
        %v5359 = vadd.f32 %v4092, %v5358
        %v5360 = vpop.f32.mrf.mxu0
        %v5361 = vadd.f32 %v4088, %v5360
        %v5362 = vpop.f32.mrf.mxu0
        %v5363 = vadd.f32 %v4092, %v5362
        %5364 = vmatprep.mubr.bf16.mxu0 %v3872
        %5365 = vmatmul.mubr.bf16.gmra.mxu0 %v3871
        %v5366 = vpop.f32.mrf.mxu0
        %v5367 = vadd.f32 %v4088, %v5366
        %v5368 = vpop.f32.mrf.mxu0
        %v5369 = vadd.f32 %v4092, %v5368
        %v5370 = vpop.f32.mrf.mxu0
        %v5371 = vadd.f32 %v4088, %v5370
        %v5372 = vpop.f32.mrf.mxu0
        %v5373 = vadd.f32 %v4092, %v5372
        %5374 = vdwg.mxu0
        %5375 = vmatprep.subr.bf16.mxu0 %v4826
        %5376 = vmatpush1.bf16.msra.mxu0 %v4825
        %5377 = vmatprep.subr.bf16.mxu0 %v4819
        %5378 = vmatpush1.bf16.msra.mxu0 %v4818
        %5379 = vmatprep.subr.bf16.mxu0 %v4812
        %5380 = vmatpush1.bf16.msra.mxu0 %v4811
        %5381 = vmatprep.subr.bf16.mxu0 %v4805
        %5382 = vmatpush1.bf16.msra.mxu0 %v4804
        %5383 = vmatprep.subr.bf16.mxu0 %v4798
        %5384 = vmatpush1.bf16.msra.mxu0 %v4797
        %5385 = vmatprep.subr.bf16.mxu0 %v4791
        %5386 = vmatpush1.bf16.msra.mxu0 %v4790
        %5387 = vmatprep.subr.bf16.mxu0 %v4784
        %5388 = vmatpush1.bf16.msra.mxu0 %v4783
        %5389 = vmatprep.subr.bf16.mxu0 %v4777
        %5390 = vmatpush1.bf16.msra.mxu0 %v4776
        %5391 = vmatprep.subr.bf16.mxu0 0
        %5392 = vmatpush2.bf16.msra.mxu0 0
        %5393 = vmatprep.subr.bf16.mxu0 0
        %5394 = vmatpush2.bf16.msra.mxu0 0
        %5395 = vmatprep.subr.bf16.mxu0 0
        %5396 = vmatpush2.bf16.msra.mxu0 0
        %5397 = vmatprep.subr.bf16.mxu0 0
        %5398 = vmatpush2.bf16.msra.mxu0 0
        %5399 = vmatprep.subr.bf16.mxu0 0
        %5400 = vmatpush2.bf16.msra.mxu0 0
        %5401 = vmatprep.subr.bf16.mxu0 0
        %5402 = vmatpush2.bf16.msra.mxu0 0
        %5403 = vmatprep.subr.bf16.mxu0 0
        %5404 = vmatpush2.bf16.msra.mxu0 0
        %5405 = vmatprep.subr.bf16.mxu0 %v4833
        %5406 = vmatpush2.bf16.msra.mxu0 %v4832
        %5407 = vmatprep.mubr.bf16.mxu0 %v5013
        %5408 = vmatmul.mubr.bf16.gmra.mxu0 %v3845
        %v5409 = vpop.f32.mrf.mxu0
        %v5410 = vadd.f32 %v5297, %v5409
        %v5411 = vpop.f32.mrf.mxu0
        %v5412 = vadd.f32 %v5299, %v5411
        %v5413 = vpop.f32.mrf.mxu0
        %v5414 = vadd.f32 %v5301, %v5413
        %v5415 = vpop.f32.mrf.mxu0
        %v5416 = vadd.f32 %v5303, %v5415
        %5417 = vmatprep.mubr.bf16.mxu0 %v5016
        %5418 = vmatmul.mubr.bf16.gmra.mxu0 %v3849
        %v5419 = vpop.f32.mrf.mxu0
        %v5420 = vadd.f32 %v5307, %v5419
        %v5421 = vpop.f32.mrf.mxu0
        %v5422 = vadd.f32 %v5309, %v5421
        %v5423 = vpop.f32.mrf.mxu0
        %v5424 = vadd.f32 %v5311, %v5423
        %v5425 = vpop.f32.mrf.mxu0
        %v5426 = vadd.f32 %v5313, %v5425
        %5427 = vmatprep.mubr.bf16.mxu0 %v5019
        %5428 = vmatmul.mubr.bf16.gmra.mxu0 %v3853
        %v5429 = vpop.f32.mrf.mxu0
        %v5430 = vadd.f32 %v5317, %v5429
        %v5431 = vpop.f32.mrf.mxu0
        %v5432 = vadd.f32 %v5319, %v5431
        %v5433 = vpop.f32.mrf.mxu0
        %v5434 = vadd.f32 %v5321, %v5433
        %v5435 = vpop.f32.mrf.mxu0
        %v5436 = vadd.f32 %v5323, %v5435
        %5437 = vmatprep.mubr.bf16.mxu0 %v5022
        %5438 = vmatmul.mubr.bf16.gmra.mxu0 %v3857
        %v5439 = vpop.f32.mrf.mxu0
        %v5440 = vadd.f32 %v5327, %v5439
        %v5441 = vpop.f32.mrf.mxu0
        %v5442 = vadd.f32 %v5329, %v5441
        %v5443 = vpop.f32.mrf.mxu0
        %v5444 = vadd.f32 %v5331, %v5443
        %v5445 = vpop.f32.mrf.mxu0
        %v5446 = vadd.f32 %v5333, %v5445
        %5447 = vmatprep.mubr.bf16.mxu0 %v5025
        %5448 = vmatmul.mubr.bf16.gmra.mxu0 %v3861
        %v5449 = vpop.f32.mrf.mxu0
        %v5450 = vadd.f32 %v5337, %v5449
        %v5451 = vpop.f32.mrf.mxu0
        %v5452 = vadd.f32 %v5339, %v5451
        %v5453 = vpop.f32.mrf.mxu0
        %v5454 = vadd.f32 %v5341, %v5453
        %v5455 = vpop.f32.mrf.mxu0
        %v5456 = vadd.f32 %v5343, %v5455
        %5457 = vmatprep.mubr.bf16.mxu0 %v5028
        %5458 = vmatmul.mubr.bf16.gmra.mxu0 %v3865
        %v5459 = vpop.f32.mrf.mxu0
        %v5460 = vadd.f32 %v5347, %v5459
        %v5461 = vpop.f32.mrf.mxu0
        %v5462 = vadd.f32 %v5349, %v5461
        %v5463 = vpop.f32.mrf.mxu0
        %v5464 = vadd.f32 %v5351, %v5463
        %v5465 = vpop.f32.mrf.mxu0
        %v5466 = vadd.f32 %v5353, %v5465
        %5467 = vmatprep.mubr.bf16.mxu0 %v5031
        %5468 = vmatmul.mubr.bf16.gmra.mxu0 %v3869
        %v5469 = vpop.f32.mrf.mxu0
        %v5470 = vadd.f32 %v5357, %v5469
        %v5471 = vpop.f32.mrf.mxu0
        %v5472 = vadd.f32 %v5359, %v5471
        %v5473 = vpop.f32.mrf.mxu0
        %v5474 = vadd.f32 %v5361, %v5473
        %v5475 = vpop.f32.mrf.mxu0
        %v5476 = vadd.f32 %v5363, %v5475
        %5477 = vmatprep.mubr.bf16.mxu0 %v5034
        %5478 = vmatmul.mubr.bf16.gmra.mxu0 %v3873
        %v5479 = vpop.f32.mrf.mxu0
        %v5480 = vadd.f32 %v5367, %v5479
        %v5481 = vpop.f32.mrf.mxu0
        %v5482 = vadd.f32 %v5369, %v5481
        %v5483 = vpop.f32.mrf.mxu0
        %v5484 = vadd.f32 %v5371, %v5483
        %v5485 = vpop.f32.mrf.mxu0
        %v5486 = vadd.f32 %v5373, %v5485
        %5487 = vdwg.mxu0
        %5488 = vmatprep.subr.bf16.mxu0 %v4716
        %5489 = vmatpush1.bf16.msra.mxu0 %v4715
        %5490 = vmatprep.subr.bf16.mxu0 %v4709
        %5491 = vmatpush1.bf16.msra.mxu0 %v4708
        %5492 = vmatprep.subr.bf16.mxu0 %v4702
        %5493 = vmatpush1.bf16.msra.mxu0 %v4701
        %5494 = vmatprep.subr.bf16.mxu0 %v4695
        %5495 = vmatpush1.bf16.msra.mxu0 %v4694
        %5496 = vmatprep.subr.bf16.mxu0 %v4688
        %5497 = vmatpush1.bf16.msra.mxu0 %v4687
        %5498 = vmatprep.subr.bf16.mxu0 %v4681
        %5499 = vmatpush1.bf16.msra.mxu0 %v4680
        %5500 = vmatprep.subr.bf16.mxu0 %v4674
        %5501 = vmatpush1.bf16.msra.mxu0 %v4673
        %5502 = vmatprep.subr.bf16.mxu0 %v4667
        %5503 = vmatpush1.bf16.msra.mxu0 %v4666
        %5504 = vmatprep.subr.bf16.mxu0 %v4772
        %5505 = vmatpush2.bf16.msra.mxu0 %v4771
        %5506 = vmatprep.subr.bf16.mxu0 %v4765
        %5507 = vmatpush2.bf16.msra.mxu0 %v4764
        %5508 = vmatprep.subr.bf16.mxu0 %v4758
        %5509 = vmatpush2.bf16.msra.mxu0 %v4757
        %5510 = vmatprep.subr.bf16.mxu0 %v4751
        %5511 = vmatpush2.bf16.msra.mxu0 %v4750
        %5512 = vmatprep.subr.bf16.mxu0 %v4744
        %5513 = vmatpush2.bf16.msra.mxu0 %v4743
        %5514 = vmatprep.subr.bf16.mxu0 %v4737
        %5515 = vmatpush2.bf16.msra.mxu0 %v4736
        %5516 = vmatprep.subr.bf16.mxu0 %v4730
        %5517 = vmatpush2.bf16.msra.mxu0 %v4729
        %5518 = vmatprep.subr.bf16.mxu0 %v4723
        %5519 = vmatpush2.bf16.msra.mxu0 %v4722
        %5520 = vmatprep.mubr.bf16.mxu0 %v3844
        %5521 = vmatmul.mubr.bf16.gmra.mxu0 %v3843
        %v5522 = vpop.f32.mrf.mxu0
        %v5523 = vadd.f32 %v4096, %v5522
        %v5524 = vpop.f32.mrf.mxu0
        %v5525 = vadd.f32 %v4100, %v5524
        %v5526 = vpop.f32.mrf.mxu0
        %v5527 = vadd.f32 %v4096, %v5526
        %v5528 = vpop.f32.mrf.mxu0
        %v5529 = vadd.f32 %v4100, %v5528
        %5530 = vmatprep.mubr.bf16.mxu0 %v3848
        %5531 = vmatmul.mubr.bf16.gmra.mxu0 %v3847
        %v5532 = vpop.f32.mrf.mxu0
        %v5533 = vadd.f32 %v4096, %v5532
        %v5534 = vpop.f32.mrf.mxu0
        %v5535 = vadd.f32 %v4100, %v5534
        %v5536 = vpop.f32.mrf.mxu0
        %v5537 = vadd.f32 %v4096, %v5536
        %v5538 = vpop.f32.mrf.mxu0
        %v5539 = vadd.f32 %v4100, %v5538
        %5540 = vmatprep.mubr.bf16.mxu0 %v3852
        %5541 = vmatmul.mubr.bf16.gmra.mxu0 %v3851
        %v5542 = vpop.f32.mrf.mxu0
        %v5543 = vadd.f32 %v4096, %v5542
        %v5544 = vpop.f32.mrf.mxu0
        %v5545 = vadd.f32 %v4100, %v5544
        %v5546 = vpop.f32.mrf.mxu0
        %v5547 = vadd.f32 %v4096, %v5546
        %v5548 = vpop.f32.mrf.mxu0
        %v5549 = vadd.f32 %v4100, %v5548
        %5550 = vmatprep.mubr.bf16.mxu0 %v3856
        %5551 = vmatmul.mubr.bf16.gmra.mxu0 %v3855
        %v5552 = vpop.f32.mrf.mxu0
        %v5553 = vadd.f32 %v4096, %v5552
        %v5554 = vpop.f32.mrf.mxu0
        %v5555 = vadd.f32 %v4100, %v5554
        %v5556 = vpop.f32.mrf.mxu0
        %v5557 = vadd.f32 %v4096, %v5556
        %v5558 = vpop.f32.mrf.mxu0
        %v5559 = vadd.f32 %v4100, %v5558
        %5560 = vmatprep.mubr.bf16.mxu0 %v3860
        %5561 = vmatmul.mubr.bf16.gmra.mxu0 %v3859
        %v5562 = vpop.f32.mrf.mxu0
        %v5563 = vadd.f32 %v4096, %v5562
        %v5564 = vpop.f32.mrf.mxu0
        %v5565 = vadd.f32 %v4100, %v5564
        %v5566 = vpop.f32.mrf.mxu0
        %v5567 = vadd.f32 %v4096, %v5566
        %v5568 = vpop.f32.mrf.mxu0
        %v5569 = vadd.f32 %v4100, %v5568
        %5570 = vmatprep.mubr.bf16.mxu0 %v3864
        %5571 = vmatmul.mubr.bf16.gmra.mxu0 %v3863
        %v5572 = vpop.f32.mrf.mxu0
        %v5573 = vadd.f32 %v4096, %v5572
        %v5574 = vpop.f32.mrf.mxu0
        %v5575 = vadd.f32 %v4100, %v5574
        %v5576 = vpop.f32.mrf.mxu0
        %v5577 = vadd.f32 %v4096, %v5576
        %v5578 = vpop.f32.mrf.mxu0
        %v5579 = vadd.f32 %v4100, %v5578
        %5580 = vmatprep.mubr.bf16.mxu0 %v3868
        %5581 = vmatmul.mubr.bf16.gmra.mxu0 %v3867
        %v5582 = vpop.f32.mrf.mxu0
        %v5583 = vadd.f32 %v4096, %v5582
        %v5584 = vpop.f32.mrf.mxu0
        %v5585 = vadd.f32 %v4100, %v5584
        %v5586 = vpop.f32.mrf.mxu0
        %v5587 = vadd.f32 %v4096, %v5586
        %v5588 = vpop.f32.mrf.mxu0
        %v5589 = vadd.f32 %v4100, %v5588
        %5590 = vmatprep.mubr.bf16.mxu0 %v3872
        %5591 = vmatmul.mubr.bf16.gmra.mxu0 %v3871
        %v5592 = vpop.f32.mrf.mxu0
        %v5593 = vadd.f32 %v4096, %v5592
        %v5594 = vpop.f32.mrf.mxu0
        %v5595 = vadd.f32 %v4100, %v5594
        %v5596 = vpop.f32.mrf.mxu0
        %v5597 = vadd.f32 %v4096, %v5596
        %v5598 = vpop.f32.mrf.mxu0
        %v5599 = vadd.f32 %v4100, %v5598
        %5600 = vdwg.mxu0
        %5601 = vmatprep.subr.bf16.mxu0 %v4828
        %5602 = vmatpush1.bf16.msra.mxu0 %v4827
        %5603 = vmatprep.subr.bf16.mxu0 %v4821
        %5604 = vmatpush1.bf16.msra.mxu0 %v4820
        %5605 = vmatprep.subr.bf16.mxu0 %v4814
        %5606 = vmatpush1.bf16.msra.mxu0 %v4813
        %5607 = vmatprep.subr.bf16.mxu0 %v4807
        %5608 = vmatpush1.bf16.msra.mxu0 %v4806
        %5609 = vmatprep.subr.bf16.mxu0 %v4800
        %5610 = vmatpush1.bf16.msra.mxu0 %v4799
        %5611 = vmatprep.subr.bf16.mxu0 %v4793
        %5612 = vmatpush1.bf16.msra.mxu0 %v4792
        %5613 = vmatprep.subr.bf16.mxu0 %v4786
        %5614 = vmatpush1.bf16.msra.mxu0 %v4785
        %5615 = vmatprep.subr.bf16.mxu0 %v4779
        %5616 = vmatpush1.bf16.msra.mxu0 %v4778
        %5617 = vmatprep.subr.bf16.mxu0 0
        %5618 = vmatpush2.bf16.msra.mxu0 0
        %5619 = vmatprep.subr.bf16.mxu0 0
        %5620 = vmatpush2.bf16.msra.mxu0 0
        %5621 = vmatprep.subr.bf16.mxu0 0
        %5622 = vmatpush2.bf16.msra.mxu0 0
        %5623 = vmatprep.subr.bf16.mxu0 0
        %5624 = vmatpush2.bf16.msra.mxu0 0
        %5625 = vmatprep.subr.bf16.mxu0 0
        %5626 = vmatpush2.bf16.msra.mxu0 0
        %5627 = vmatprep.subr.bf16.mxu0 0
        %5628 = vmatpush2.bf16.msra.mxu0 0
        %5629 = vmatprep.subr.bf16.mxu0 0
        %5630 = vmatpush2.bf16.msra.mxu0 0
        %5631 = vmatprep.subr.bf16.mxu0 %v4835
        %5632 = vmatpush2.bf16.msra.mxu0 %v4834
        %5633 = vmatprep.mubr.bf16.mxu0 %v5013
        %5634 = vmatmul.mubr.bf16.gmra.mxu0 %v3845
        %v5635 = vpop.f32.mrf.mxu0
        %v5636 = vadd.f32 %v5523, %v5635
        %v5637 = vpop.f32.mrf.mxu0
        %v5638 = vadd.f32 %v5525, %v5637
        %v5639 = vpop.f32.mrf.mxu0
        %v5640 = vadd.f32 %v5527, %v5639
        %v5641 = vpop.f32.mrf.mxu0
        %v5642 = vadd.f32 %v5529, %v5641
        %5643 = vmatprep.mubr.bf16.mxu0 %v5016
        %5644 = vmatmul.mubr.bf16.gmra.mxu0 %v3849
        %v5645 = vpop.f32.mrf.mxu0
        %v5646 = vadd.f32 %v5533, %v5645
        %v5647 = vpop.f32.mrf.mxu0
        %v5648 = vadd.f32 %v5535, %v5647
        %v5649 = vpop.f32.mrf.mxu0
        %v5650 = vadd.f32 %v5537, %v5649
        %v5651 = vpop.f32.mrf.mxu0
        %v5652 = vadd.f32 %v5539, %v5651
        %5653 = vmatprep.mubr.bf16.mxu0 %v5019
        %5654 = vmatmul.mubr.bf16.gmra.mxu0 %v3853
        %v5655 = vpop.f32.mrf.mxu0
        %v5656 = vadd.f32 %v5543, %v5655
        %v5657 = vpop.f32.mrf.mxu0
        %v5658 = vadd.f32 %v5545, %v5657
        %v5659 = vpop.f32.mrf.mxu0
        %v5660 = vadd.f32 %v5547, %v5659
        %v5661 = vpop.f32.mrf.mxu0
        %v5662 = vadd.f32 %v5549, %v5661
        %5663 = vmatprep.mubr.bf16.mxu0 %v5022
        %5664 = vmatmul.mubr.bf16.gmra.mxu0 %v3857
        %v5665 = vpop.f32.mrf.mxu0
        %v5666 = vadd.f32 %v5553, %v5665
        %v5667 = vpop.f32.mrf.mxu0
        %v5668 = vadd.f32 %v5555, %v5667
        %v5669 = vpop.f32.mrf.mxu0
        %v5670 = vadd.f32 %v5557, %v5669
        %v5671 = vpop.f32.mrf.mxu0
        %v5672 = vadd.f32 %v5559, %v5671
        %5673 = vmatprep.mubr.bf16.mxu0 %v5025
        %5674 = vmatmul.mubr.bf16.gmra.mxu0 %v3861
        %v5675 = vpop.f32.mrf.mxu0
        %v5676 = vadd.f32 %v5563, %v5675
        %v5677 = vpop.f32.mrf.mxu0
        %v5678 = vadd.f32 %v5565, %v5677
        %v5679 = vpop.f32.mrf.mxu0
        %v5680 = vadd.f32 %v5567, %v5679
        %v5681 = vpop.f32.mrf.mxu0
        %v5682 = vadd.f32 %v5569, %v5681
        %5683 = vmatprep.mubr.bf16.mxu0 %v5028
        %5684 = vmatmul.mubr.bf16.gmra.mxu0 %v3865
        %v5685 = vpop.f32.mrf.mxu0
        %v5686 = vadd.f32 %v5573, %v5685
        %v5687 = vpop.f32.mrf.mxu0
        %v5688 = vadd.f32 %v5575, %v5687
        %v5689 = vpop.f32.mrf.mxu0
        %v5690 = vadd.f32 %v5577, %v5689
        %v5691 = vpop.f32.mrf.mxu0
        %v5692 = vadd.f32 %v5579, %v5691
        %5693 = vmatprep.mubr.bf16.mxu0 %v5031
        %5694 = vmatmul.mubr.bf16.gmra.mxu0 %v3869
        %v5695 = vpop.f32.mrf.mxu0
        %v5696 = vadd.f32 %v5583, %v5695
        %v5697 = vpop.f32.mrf.mxu0
        %v5698 = vadd.f32 %v5585, %v5697
        %v5699 = vpop.f32.mrf.mxu0
        %v5700 = vadd.f32 %v5587, %v5699
        %v5701 = vpop.f32.mrf.mxu0
        %v5702 = vadd.f32 %v5589, %v5701
        %5703 = vmatprep.mubr.bf16.mxu0 %v5034
        %5704 = vmatmul.mubr.bf16.gmra.mxu0 %v3873
        %v5705 = vpop.f32.mrf.mxu0
        %v5706 = vadd.f32 %v5593, %v5705
        %v5707 = vpop.f32.mrf.mxu0
        %v5708 = vadd.f32 %v5595, %v5707
        %v5709 = vpop.f32.mrf.mxu0
        %v5710 = vadd.f32 %v5597, %v5709
        %v5711 = vpop.f32.mrf.mxu0
        %v5712 = vadd.f32 %v5599, %v5711
        %5713 = vdwg.mxu0
        %5714 = vmatprep.subr.bf16.mxu0 0
        %5715 = vmatpush1.bf16.msra.mxu0 %v4717
        %5716 = vmatprep.subr.bf16.mxu0 0
        %5717 = vmatpush1.bf16.msra.mxu0 %v4710
        %5718 = vmatprep.subr.bf16.mxu0 0
        %5719 = vmatpush1.bf16.msra.mxu0 %v4703
        %5720 = vmatprep.subr.bf16.mxu0 0
        %5721 = vmatpush1.bf16.msra.mxu0 %v4696
        %5722 = vmatprep.subr.bf16.mxu0 0
        %5723 = vmatpush1.bf16.msra.mxu0 %v4689
        %5724 = vmatprep.subr.bf16.mxu0 0
        %5725 = vmatpush1.bf16.msra.mxu0 %v4682
        %5726 = vmatprep.subr.bf16.mxu0 0
        %5727 = vmatpush1.bf16.msra.mxu0 %v4675
        %5728 = vmatprep.subr.bf16.mxu0 0
        %5729 = vmatpush1.bf16.msra.mxu0 %v4668
        %5730 = vmatprep.subr.bf16.mxu0 0
        %5731 = vmatpush2.bf16.msra.mxu0 %v4773
        %5732 = vmatprep.subr.bf16.mxu0 0
        %5733 = vmatpush2.bf16.msra.mxu0 %v4766
        %5734 = vmatprep.subr.bf16.mxu0 0
        %5735 = vmatpush2.bf16.msra.mxu0 %v4759
        %5736 = vmatprep.subr.bf16.mxu0 0
        %5737 = vmatpush2.bf16.msra.mxu0 %v4752
        %5738 = vmatprep.subr.bf16.mxu0 0
        %5739 = vmatpush2.bf16.msra.mxu0 %v4745
        %5740 = vmatprep.subr.bf16.mxu0 0
        %5741 = vmatpush2.bf16.msra.mxu0 %v4738
        %5742 = vmatprep.subr.bf16.mxu0 0
        %5743 = vmatpush2.bf16.msra.mxu0 %v4731
        %5744 = vmatprep.subr.bf16.mxu0 0
        %5745 = vmatpush2.bf16.msra.mxu0 %v4724
        %5746 = vmatprep.mubr.bf16.mxu0 %v3844
        %5747 = vmatmul.mubr.bf16.gmra.mxu0 %v3843
        %v5748 = vpop.f32.mrf.mxu0
        %v5749 = vadd.f32 %v4104, %v5748
        %v5750 = vpop.f32.mrf.mxu0
        %v5751 = vpop.f32.mrf.mxu0
        %v5752 = vadd.f32 %v4104, %v5751
        %v5753 = vpop.f32.mrf.mxu0
        %5754 = vmatprep.mubr.bf16.mxu0 %v3848
        %5755 = vmatmul.mubr.bf16.gmra.mxu0 %v3847
        %v5756 = vpop.f32.mrf.mxu0
        %v5757 = vadd.f32 %v4104, %v5756
        %v5758 = vpop.f32.mrf.mxu0
        %v5759 = vpop.f32.mrf.mxu0
        %v5760 = vadd.f32 %v4104, %v5759
        %v5761 = vpop.f32.mrf.mxu0
        %5762 = vmatprep.mubr.bf16.mxu0 %v3852
        %5763 = vmatmul.mubr.bf16.gmra.mxu0 %v3851
        %v5764 = vpop.f32.mrf.mxu0
        %v5765 = vadd.f32 %v4104, %v5764
        %v5766 = vpop.f32.mrf.mxu0
        %v5767 = vpop.f32.mrf.mxu0
        %v5768 = vadd.f32 %v4104, %v5767
        %v5769 = vpop.f32.mrf.mxu0
        %5770 = vmatprep.mubr.bf16.mxu0 %v3856
        %5771 = vmatmul.mubr.bf16.gmra.mxu0 %v3855
        %v5772 = vpop.f32.mrf.mxu0
        %v5773 = vadd.f32 %v4104, %v5772
        %v5774 = vpop.f32.mrf.mxu0
        %v5775 = vpop.f32.mrf.mxu0
        %v5776 = vadd.f32 %v4104, %v5775
        %v5777 = vpop.f32.mrf.mxu0
        %5778 = vmatprep.mubr.bf16.mxu0 %v3860
        %5779 = vmatmul.mubr.bf16.gmra.mxu0 %v3859
        %v5780 = vpop.f32.mrf.mxu0
        %v5781 = vadd.f32 %v4104, %v5780
        %v5782 = vpop.f32.mrf.mxu0
        %v5783 = vpop.f32.mrf.mxu0
        %v5784 = vadd.f32 %v4104, %v5783
        %v5785 = vpop.f32.mrf.mxu0
        %5786 = vmatprep.mubr.bf16.mxu0 %v3864
        %5787 = vmatmul.mubr.bf16.gmra.mxu0 %v3863
        %v5788 = vpop.f32.mrf.mxu0
        %v5789 = vadd.f32 %v4104, %v5788
        %v5790 = vpop.f32.mrf.mxu0
        %v5791 = vpop.f32.mrf.mxu0
        %v5792 = vadd.f32 %v4104, %v5791
        %v5793 = vpop.f32.mrf.mxu0
        %5794 = vmatprep.mubr.bf16.mxu0 %v3868
        %5795 = vmatmul.mubr.bf16.gmra.mxu0 %v3867
        %v5796 = vpop.f32.mrf.mxu0
        %v5797 = vadd.f32 %v4104, %v5796
        %v5798 = vpop.f32.mrf.mxu0
        %v5799 = vpop.f32.mrf.mxu0
        %v5800 = vadd.f32 %v4104, %v5799
        %v5801 = vpop.f32.mrf.mxu0
        %5802 = vmatprep.mubr.bf16.mxu0 %v3872
        %5803 = vmatmul.mubr.bf16.gmra.mxu0 %v3871
        %v5804 = vpop.f32.mrf.mxu0
        %v5805 = vadd.f32 %v4104, %v5804
        %v5806 = vpop.f32.mrf.mxu0
        %v5807 = vpop.f32.mrf.mxu0
        %v5808 = vadd.f32 %v4104, %v5807
        %v5809 = vpop.f32.mrf.mxu0
        %5810 = vdwg.mxu0
        %5811 = vmatprep.subr.bf16.mxu0 0
        %5812 = vmatpush1.bf16.msra.mxu0 %v4829
        %5813 = vmatprep.subr.bf16.mxu0 0
        %5814 = vmatpush1.bf16.msra.mxu0 %v4822
        %5815 = vmatprep.subr.bf16.mxu0 0
        %5816 = vmatpush1.bf16.msra.mxu0 %v4815
        %5817 = vmatprep.subr.bf16.mxu0 0
        %5818 = vmatpush1.bf16.msra.mxu0 %v4808
        %5819 = vmatprep.subr.bf16.mxu0 0
        %5820 = vmatpush1.bf16.msra.mxu0 %v4801
        %5821 = vmatprep.subr.bf16.mxu0 0
        %5822 = vmatpush1.bf16.msra.mxu0 %v4794
        %5823 = vmatprep.subr.bf16.mxu0 0
        %5824 = vmatpush1.bf16.msra.mxu0 %v4787
        %5825 = vmatprep.subr.bf16.mxu0 0
        %5826 = vmatpush1.bf16.msra.mxu0 %v4780
        %5827 = vmatprep.subr.bf16.mxu0 0
        %5828 = vmatpush2.bf16.msra.mxu0 0
        %5829 = vmatprep.subr.bf16.mxu0 0
        %5830 = vmatpush2.bf16.msra.mxu0 0
        %5831 = vmatprep.subr.bf16.mxu0 0
        %5832 = vmatpush2.bf16.msra.mxu0 0
        %5833 = vmatprep.subr.bf16.mxu0 0
        %5834 = vmatpush2.bf16.msra.mxu0 0
        %5835 = vmatprep.subr.bf16.mxu0 0
        %5836 = vmatpush2.bf16.msra.mxu0 0
        %5837 = vmatprep.subr.bf16.mxu0 0
        %5838 = vmatpush2.bf16.msra.mxu0 0
        %5839 = vmatprep.subr.bf16.mxu0 0
        %5840 = vmatpush2.bf16.msra.mxu0 0
        %5841 = vmatprep.subr.bf16.mxu0 0
        %5842 = vmatpush2.bf16.msra.mxu0 %v4836
        %5843 = vmatprep.mubr.bf16.mxu0 %v5013
        %5844 = vmatmul.mubr.bf16.gmra.mxu0 %v3845
        %v5845 = vpop.f32.mrf.mxu0
        %v5846 = vadd.f32 %v5749, %v5845
        %v5847 = vpop.f32.mrf.mxu0
        %v5848 = vpop.f32.mrf.mxu0
        %v5849 = vadd.f32 %v5752, %v5848
        %v5850 = vpop.f32.mrf.mxu0
        %5851 = vmatprep.mubr.bf16.mxu0 %v5016
        %5852 = vmatmul.mubr.bf16.gmra.mxu0 %v3849
        %v5853 = vpop.f32.mrf.mxu0
        %v5854 = vadd.f32 %v5757, %v5853
        %v5855 = vpop.f32.mrf.mxu0
        %v5856 = vpop.f32.mrf.mxu0
        %v5857 = vadd.f32 %v5760, %v5856
        %v5858 = vpop.f32.mrf.mxu0
        %5859 = vmatprep.mubr.bf16.mxu0 %v5019
        %5860 = vmatmul.mubr.bf16.gmra.mxu0 %v3853
        %v5861 = vpop.f32.mrf.mxu0
        %v5862 = vadd.f32 %v5765, %v5861
        %v5863 = vpop.f32.mrf.mxu0
        %v5864 = vpop.f32.mrf.mxu0
        %v5865 = vadd.f32 %v5768, %v5864
        %v5866 = vpop.f32.mrf.mxu0
        %5867 = vmatprep.mubr.bf16.mxu0 %v5022
        %5868 = vmatmul.mubr.bf16.gmra.mxu0 %v3857
        %v5869 = vpop.f32.mrf.mxu0
        %v5870 = vadd.f32 %v5773, %v5869
        %v5871 = vpop.f32.mrf.mxu0
        %v5872 = vpop.f32.mrf.mxu0
        %v5873 = vadd.f32 %v5776, %v5872
        %v5874 = vpop.f32.mrf.mxu0
        %5875 = vmatprep.mubr.bf16.mxu0 %v5025
        %5876 = vmatmul.mubr.bf16.gmra.mxu0 %v3861
        %v5877 = vpop.f32.mrf.mxu0
        %v5878 = vadd.f32 %v5781, %v5877
        %v5879 = vpop.f32.mrf.mxu0
        %v5880 = vpop.f32.mrf.mxu0
        %v5881 = vadd.f32 %v5784, %v5880
        %v5882 = vpop.f32.mrf.mxu0
        %5883 = vmatprep.mubr.bf16.mxu0 %v5028
        %5884 = vmatmul.mubr.bf16.gmra.mxu0 %v3865
        %v5885 = vpop.f32.mrf.mxu0
        %v5886 = vadd.f32 %v5789, %v5885
        %v5887 = vpop.f32.mrf.mxu0
        %v5888 = vpop.f32.mrf.mxu0
        %v5889 = vadd.f32 %v5792, %v5888
        %v5890 = vpop.f32.mrf.mxu0
        %5891 = vmatprep.mubr.bf16.mxu0 %v5031
        %5892 = vmatmul.mubr.bf16.gmra.mxu0 %v3869
        %v5893 = vpop.f32.mrf.mxu0
        %v5894 = vadd.f32 %v5797, %v5893
        %v5895 = vpop.f32.mrf.mxu0
        %v5896 = vpop.f32.mrf.mxu0
        %v5897 = vadd.f32 %v5800, %v5896
        %v5898 = vpop.f32.mrf.mxu0
        %5899 = vmatprep.mubr.bf16.mxu0 %v5034
        %5900 = vmatmul.mubr.bf16.gmra.mxu0 %v3873
        %v5901 = vpop.f32.mrf.mxu0
        %v5902 = vadd.f32 %v5805, %v5901
        %v5903 = vpop.f32.mrf.mxu0
        %v5904 = vpop.f32.mrf.mxu0
        %v5905 = vadd.f32 %v5808, %v5904
        %v5906 = vpop.f32.mrf.mxu0
        %5907 = vdwg.mxu0
        %v5908 = vsub.f32 0.0, %v5184
        %v5909 = vsub.f32 0.0, %v5186
        %v5910 = vsub.f32 0.0, %v5410
        %v5911 = vsub.f32 0.0, %v5412
        %v5912 = vsub.f32 0.0, %v5636
        %v5913 = vsub.f32 0.0, %v5638
        %v5914 = vsub.f32 0.0, %v5846
        %v5915 = vsub.f32 0.0, %v5188
        %v5916 = vsub.f32 0.0, %v5190
        %v5917 = vsub.f32 0.0, %v5414
        %v5918 = vsub.f32 0.0, %v5416
        %v5919 = vsub.f32 0.0, %v5640
        %v5920 = vsub.f32 0.0, %v5642
        %v5921 = vsub.f32 0.0, %v5849
        %v5922 = vsub.f32 0.0, %v5194
        %v5923 = vsub.f32 0.0, %v5196
        %v5924 = vsub.f32 0.0, %v5420
        %v5925 = vsub.f32 0.0, %v5422
        %v5926 = vsub.f32 0.0, %v5646
        %v5927 = vsub.f32 0.0, %v5648
        %v5928 = vsub.f32 0.0, %v5854
        %v5929 = vsub.f32 0.0, %v5198
        %v5930 = vsub.f32 0.0, %v5200
        %v5931 = vsub.f32 0.0, %v5424
        %v5932 = vsub.f32 0.0, %v5426
        %v5933 = vsub.f32 0.0, %v5650
        %v5934 = vsub.f32 0.0, %v5652
        %v5935 = vsub.f32 0.0, %v5857
        %v5936 = vsub.f32 0.0, %v5204
        %v5937 = vsub.f32 0.0, %v5206
        %v5938 = vsub.f32 0.0, %v5430
        %v5939 = vsub.f32 0.0, %v5432
        %v5940 = vsub.f32 0.0, %v5656
        %v5941 = vsub.f32 0.0, %v5658
        %v5942 = vsub.f32 0.0, %v5862
        %v5943 = vsub.f32 0.0, %v5208
        %v5944 = vsub.f32 0.0, %v5210
        %v5945 = vsub.f32 0.0, %v5434
        %v5946 = vsub.f32 0.0, %v5436
        %v5947 = vsub.f32 0.0, %v5660
        %v5948 = vsub.f32 0.0, %v5662
        %v5949 = vsub.f32 0.0, %v5865
        %v5950 = vsub.f32 0.0, %v5214
        %v5951 = vsub.f32 0.0, %v5216
        %v5952 = vsub.f32 0.0, %v5440
        %v5953 = vsub.f32 0.0, %v5442
        %v5954 = vsub.f32 0.0, %v5666
        %v5955 = vsub.f32 0.0, %v5668
        %v5956 = vsub.f32 0.0, %v5870
        %v5957 = vsub.f32 0.0, %v5218
        %v5958 = vsub.f32 0.0, %v5220
        %v5959 = vsub.f32 0.0, %v5444
        %v5960 = vsub.f32 0.0, %v5446
        %v5961 = vsub.f32 0.0, %v5670
        %v5962 = vsub.f32 0.0, %v5672
        %v5963 = vsub.f32 0.0, %v5873
        %v5964 = vsub.f32 0.0, %v5224
        %v5965 = vsub.f32 0.0, %v5226
        %v5966 = vsub.f32 0.0, %v5450
        %v5967 = vsub.f32 0.0, %v5452
        %v5968 = vsub.f32 0.0, %v5676
        %v5969 = vsub.f32 0.0, %v5678
        %v5970 = vsub.f32 0.0, %v5878
        %v5971 = vsub.f32 0.0, %v5228
        %v5972 = vsub.f32 0.0, %v5230
        %v5973 = vsub.f32 0.0, %v5454
        %v5974 = vsub.f32 0.0, %v5456
        %v5975 = vsub.f32 0.0, %v5680
        %v5976 = vsub.f32 0.0, %v5682
        %v5977 = vsub.f32 0.0, %v5881
        %v5978 = vsub.f32 0.0, %v5234
        %v5979 = vsub.f32 0.0, %v5236
        %v5980 = vsub.f32 0.0, %v5460
        %v5981 = vsub.f32 0.0, %v5462
        %v5982 = vsub.f32 0.0, %v5686
        %v5983 = vsub.f32 0.0, %v5688
        %v5984 = vsub.f32 0.0, %v5886
        %v5985 = vsub.f32 0.0, %v5238
        %v5986 = vsub.f32 0.0, %v5240
        %v5987 = vsub.f32 0.0, %v5464
        %v5988 = vsub.f32 0.0, %v5466
        %v5989 = vsub.f32 0.0, %v5690
        %v5990 = vsub.f32 0.0, %v5692
        %v5991 = vsub.f32 0.0, %v5889
        %v5992 = vsub.f32 0.0, %v5244
        %v5993 = vsub.f32 0.0, %v5246
        %v5994 = vsub.f32 0.0, %v5470
        %v5995 = vsub.f32 0.0, %v5472
        %v5996 = vsub.f32 0.0, %v5696
        %v5997 = vsub.f32 0.0, %v5698
        %v5998 = vsub.f32 0.0, %v5894
        %v5999 = vsub.f32 0.0, %v5248
        %v6000 = vsub.f32 0.0, %v5250
        %v6001 = vsub.f32 0.0, %v5474
        %v6002 = vsub.f32 0.0, %v5476
        %v6003 = vsub.f32 0.0, %v5700
        %v6004 = vsub.f32 0.0, %v5702
        %v6005 = vsub.f32 0.0, %v5897
        %v6006 = vsub.f32 0.0, %v5254
        %v6007 = vsub.f32 0.0, %v5256
        %v6008 = vsub.f32 0.0, %v5480
        %v6009 = vsub.f32 0.0, %v5482
        %v6010 = vsub.f32 0.0, %v5706
        %v6011 = vsub.f32 0.0, %v5708
        %v6012 = vsub.f32 0.0, %v5902
        %v6013 = vsub.f32 0.0, %v5258
        %v6014 = vsub.f32 0.0, %v5260
        %v6015 = vsub.f32 0.0, %v5484
        %v6016 = vsub.f32 0.0, %v5486
        %v6017 = vsub.f32 0.0, %v5710
        %v6018 = vsub.f32 0.0, %v5712
        %v6019 = vsub.f32 0.0, %v5905
        %v6020 = vmul.f32 %v5908, 1.442695
        %v6021 = vpow.pop %v6020
        %v6022 = vmul.f32 %v5909, 1.442695
        %v6023 = vpow.pop %v6022
        %v6024 = vmul.f32 %v5910, 1.442695
        %v6025 = vpow.pop %v6024
        %v6026 = vmul.f32 %v5911, 1.442695
        %v6027 = vpow.pop %v6026
        %v6028 = vmul.f32 %v5912, 1.442695
        %v6029 = vpow.pop %v6028
        %v6030 = vmul.f32 %v5913, 1.442695
        %v6031 = vpow.pop %v6030
        %v6032 = vmul.f32 %v5914, 1.442695
        %v6033 = vpow.pop %v6032
        %v6034 = vmul.f32 %v5915, 1.442695
        %v6035 = vpow.pop %v6034
        %v6036 = vmul.f32 %v5916, 1.442695
        %v6037 = vpow.pop %v6036
        %v6038 = vmul.f32 %v5917, 1.442695
        %v6039 = vpow.pop %v6038
        %v6040 = vmul.f32 %v5918, 1.442695
        %v6041 = vpow.pop %v6040
        %v6042 = vmul.f32 %v5919, 1.442695
        %v6043 = vpow.pop %v6042
        %v6044 = vmul.f32 %v5920, 1.442695
        %v6045 = vpow.pop %v6044
        %v6046 = vmul.f32 %v5921, 1.442695
        %v6047 = vpow.pop %v6046
        %v6048 = vmul.f32 %v5922, 1.442695
        %v6049 = vpow.pop %v6048
        %v6050 = vmul.f32 %v5923, 1.442695
        %v6051 = vpow.pop %v6050
        %v6052 = vmul.f32 %v5924, 1.442695
        %v6053 = vpow.pop %v6052
        %v6054 = vmul.f32 %v5925, 1.442695
        %v6055 = vpow.pop %v6054
        %v6056 = vmul.f32 %v5926, 1.442695
        %v6057 = vpow.pop %v6056
        %v6058 = vmul.f32 %v5927, 1.442695
        %v6059 = vpow.pop %v6058
        %v6060 = vmul.f32 %v5928, 1.442695
        %v6061 = vpow.pop %v6060
        %v6062 = vmul.f32 %v5929, 1.442695
        %v6063 = vpow.pop %v6062
        %v6064 = vmul.f32 %v5930, 1.442695
        %v6065 = vpow.pop %v6064
        %v6066 = vmul.f32 %v5931, 1.442695
        %v6067 = vpow.pop %v6066
        %v6068 = vmul.f32 %v5932, 1.442695
        %v6069 = vpow.pop %v6068
        %v6070 = vmul.f32 %v5933, 1.442695
        %v6071 = vpow.pop %v6070
        %v6072 = vmul.f32 %v5934, 1.442695
        %v6073 = vpow.pop %v6072
        %v6074 = vmul.f32 %v5935, 1.442695
        %v6075 = vpow.pop %v6074
        %v6076 = vmul.f32 %v5936, 1.442695
        %v6077 = vpow.pop %v6076
        %v6078 = vmul.f32 %v5937, 1.442695
        %v6079 = vpow.pop %v6078
        %v6080 = vmul.f32 %v5938, 1.442695
        %v6081 = vpow.pop %v6080
        %v6082 = vmul.f32 %v5939, 1.442695
        %v6083 = vpow.pop %v6082
        %v6084 = vmul.f32 %v5940, 1.442695
        %v6085 = vpow.pop %v6084
        %v6086 = vmul.f32 %v5941, 1.442695
        %v6087 = vpow.pop %v6086
        %v6088 = vmul.f32 %v5942, 1.442695
        %v6089 = vpow.pop %v6088
        %v6090 = vmul.f32 %v5943, 1.442695
        %v6091 = vpow.pop %v6090
        %v6092 = vmul.f32 %v5944, 1.442695
        %v6093 = vpow.pop %v6092
        %v6094 = vmul.f32 %v5945, 1.442695
        %v6095 = vpow.pop %v6094
        %v6096 = vmul.f32 %v5946, 1.442695
        %v6097 = vpow.pop %v6096
        %v6098 = vmul.f32 %v5947, 1.442695
        %v6099 = vpow.pop %v6098
        %v6100 = vmul.f32 %v5948, 1.442695
        %v6101 = vpow.pop %v6100
        %v6102 = vmul.f32 %v5949, 1.442695
        %v6103 = vpow.pop %v6102
        %v6104 = vmul.f32 %v5950, 1.442695
        %v6105 = vpow.pop %v6104
        %v6106 = vmul.f32 %v5951, 1.442695
        %v6107 = vpow.pop %v6106
        %v6108 = vmul.f32 %v5952, 1.442695
        %v6109 = vpow.pop %v6108
        %v6110 = vmul.f32 %v5953, 1.442695
        %v6111 = vpow.pop %v6110
        %v6112 = vmul.f32 %v5954, 1.442695
        %v6113 = vpow.pop %v6112
        %v6114 = vmul.f32 %v5955, 1.442695
        %v6115 = vpow.pop %v6114
        %v6116 = vmul.f32 %v5956, 1.442695
        %v6117 = vpow.pop %v6116
        %v6118 = vmul.f32 %v5957, 1.442695
        %v6119 = vpow.pop %v6118
        %v6120 = vmul.f32 %v5958, 1.442695
        %v6121 = vpow.pop %v6120
        %v6122 = vmul.f32 %v5959, 1.442695
        %v6123 = vpow.pop %v6122
        %v6124 = vmul.f32 %v5960, 1.442695
        %v6125 = vpow.pop %v6124
        %v6126 = vmul.f32 %v5961, 1.442695
        %v6127 = vpow.pop %v6126
        %v6128 = vmul.f32 %v5962, 1.442695
        %v6129 = vpow.pop %v6128
        %v6130 = vmul.f32 %v5963, 1.442695
        %v6131 = vpow.pop %v6130
        %v6132 = vmul.f32 %v5964, 1.442695
        %v6133 = vpow.pop %v6132
        %v6134 = vmul.f32 %v5965, 1.442695
        %v6135 = vpow.pop %v6134
        %v6136 = vmul.f32 %v5966, 1.442695
        %v6137 = vpow.pop %v6136
        %v6138 = vmul.f32 %v5967, 1.442695
        %v6139 = vpow.pop %v6138
        %v6140 = vmul.f32 %v5968, 1.442695
        %v6141 = vpow.pop %v6140
        %v6142 = vmul.f32 %v5969, 1.442695
        %v6143 = vpow.pop %v6142
        %v6144 = vmul.f32 %v5970, 1.442695
        %v6145 = vpow.pop %v6144
        %v6146 = vmul.f32 %v5971, 1.442695
        %v6147 = vpow.pop %v6146
        %v6148 = vmul.f32 %v5972, 1.442695
        %v6149 = vpow.pop %v6148
        %v6150 = vmul.f32 %v5973, 1.442695
        %v6151 = vpow.pop %v6150
        %v6152 = vmul.f32 %v5974, 1.442695
        %v6153 = vpow.pop %v6152
        %v6154 = vmul.f32 %v5975, 1.442695
        %v6155 = vpow.pop %v6154
        %v6156 = vmul.f32 %v5976, 1.442695
        %v6157 = vpow.pop %v6156
        %v6158 = vmul.f32 %v5977, 1.442695
        %v6159 = vpow.pop %v6158
        %v6160 = vmul.f32 %v5978, 1.442695
        %v6161 = vpow.pop %v6160
        %v6162 = vmul.f32 %v5979, 1.442695
        %v6163 = vpow.pop %v6162
        %v6164 = vmul.f32 %v5980, 1.442695
        %v6165 = vpow.pop %v6164
        %v6166 = vmul.f32 %v5981, 1.442695
        %v6167 = vpow.pop %v6166
        %v6168 = vmul.f32 %v5982, 1.442695
        %v6169 = vpow.pop %v6168
        %v6170 = vmul.f32 %v5983, 1.442695
        %v6171 = vpow.pop %v6170
        %v6172 = vmul.f32 %v5984, 1.442695
        %v6173 = vpow.pop %v6172
        %v6174 = vmul.f32 %v5985, 1.442695
        %v6175 = vpow.pop %v6174
        %v6176 = vmul.f32 %v5986, 1.442695
        %v6177 = vpow.pop %v6176
        %v6178 = vmul.f32 %v5987, 1.442695
        %v6179 = vpow.pop %v6178
        %v6180 = vmul.f32 %v5988, 1.442695
        %v6181 = vpow.pop %v6180
        %v6182 = vmul.f32 %v5989, 1.442695
        %v6183 = vpow.pop %v6182
        %v6184 = vmul.f32 %v5990, 1.442695
        %v6185 = vpow.pop %v6184
        %v6186 = vmul.f32 %v5991, 1.442695
        %v6187 = vpow.pop %v6186
        %v6188 = vmul.f32 %v5992, 1.442695
        %v6189 = vpow.pop %v6188
        %v6190 = vmul.f32 %v5993, 1.442695
        %v6191 = vpow.pop %v6190
        %v6192 = vmul.f32 %v5994, 1.442695
        %v6193 = vpow.pop %v6192
        %v6194 = vmul.f32 %v5995, 1.442695
        %v6195 = vpow.pop %v6194
        %v6196 = vmul.f32 %v5996, 1.442695
        %v6197 = vpow.pop %v6196
        %v6198 = vmul.f32 %v5997, 1.442695
        %v6199 = vpow.pop %v6198
        %v6200 = vmul.f32 %v5998, 1.442695
        %v6201 = vpow.pop %v6200
        %v6202 = vmul.f32 %v5999, 1.442695
        %v6203 = vpow.pop %v6202
        %v6204 = vmul.f32 %v6000, 1.442695
        %v6205 = vpow.pop %v6204
        %v6206 = vmul.f32 %v6001, 1.442695
        %v6207 = vpow.pop %v6206
        %v6208 = vmul.f32 %v6002, 1.442695
        %v6209 = vpow.pop %v6208
        %v6210 = vmul.f32 %v6003, 1.442695
        %v6211 = vpow.pop %v6210
        %v6212 = vmul.f32 %v6004, 1.442695
        %v6213 = vpow.pop %v6212
        %v6214 = vmul.f32 %v6005, 1.442695
        %v6215 = vpow.pop %v6214
        %v6216 = vmul.f32 %v6006, 1.442695
        %v6217 = vpow.pop %v6216
        %v6218 = vmul.f32 %v6007, 1.442695
        %v6219 = vpow.pop %v6218
        %v6220 = vmul.f32 %v6008, 1.442695
        %v6221 = vpow.pop %v6220
        %v6222 = vmul.f32 %v6009, 1.442695
        %v6223 = vpow.pop %v6222
        %v6224 = vmul.f32 %v6010, 1.442695
        %v6225 = vpow.pop %v6224
        %v6226 = vmul.f32 %v6011, 1.442695
        %v6227 = vpow.pop %v6226
        %v6228 = vmul.f32 %v6012, 1.442695
        %v6229 = vpow.pop %v6228
        %v6230 = vmul.f32 %v6013, 1.442695
        %v6231 = vpow.pop %v6230
        %v6232 = vmul.f32 %v6014, 1.442695
        %v6233 = vpow.pop %v6232
        %v6234 = vmul.f32 %v6015, 1.442695
        %v6235 = vpow.pop %v6234
        %v6236 = vmul.f32 %v6016, 1.442695
        %v6237 = vpow.pop %v6236
        %v6238 = vmul.f32 %v6017, 1.442695
        %v6239 = vpow.pop %v6238
        %v6240 = vmul.f32 %v6018, 1.442695
        %v6241 = vpow.pop %v6240
        %v6242 = vmul.f32 %v6019, 1.442695
        %v6243 = vpow.pop %v6242
        %v6244 = vadd.f32 %v6021, 1.0
        %v6245 = vadd.f32 %v6023, 1.0
        %v6246 = vadd.f32 %v6025, 1.0
        %v6247 = vadd.f32 %v6027, 1.0
        %v6248 = vadd.f32 %v6029, 1.0
        %v6249 = vadd.f32 %v6031, 1.0
        %v6250 = vadd.f32 %v6033, 1.0
        %v6251 = vadd.f32 %v6035, 1.0
        %v6252 = vadd.f32 %v6037, 1.0
        %v6253 = vadd.f32 %v6039, 1.0
        %v6254 = vadd.f32 %v6041, 1.0
        %v6255 = vadd.f32 %v6043, 1.0
        %v6256 = vadd.f32 %v6045, 1.0
        %v6257 = vadd.f32 %v6047, 1.0
        %v6258 = vadd.f32 %v6049, 1.0
        %v6259 = vadd.f32 %v6051, 1.0
        %v6260 = vadd.f32 %v6053, 1.0
        %v6261 = vadd.f32 %v6055, 1.0
        %v6262 = vadd.f32 %v6057, 1.0
        %v6263 = vadd.f32 %v6059, 1.0
        %v6264 = vadd.f32 %v6061, 1.0
        %v6265 = vadd.f32 %v6063, 1.0
        %v6266 = vadd.f32 %v6065, 1.0
        %v6267 = vadd.f32 %v6067, 1.0
        %v6268 = vadd.f32 %v6069, 1.0
        %v6269 = vadd.f32 %v6071, 1.0
        %v6270 = vadd.f32 %v6073, 1.0
        %v6271 = vadd.f32 %v6075, 1.0
        %v6272 = vadd.f32 %v6077, 1.0
        %v6273 = vadd.f32 %v6079, 1.0
        %v6274 = vadd.f32 %v6081, 1.0
        %v6275 = vadd.f32 %v6083, 1.0
        %v6276 = vadd.f32 %v6085, 1.0
        %v6277 = vadd.f32 %v6087, 1.0
        %v6278 = vadd.f32 %v6089, 1.0
        %v6279 = vadd.f32 %v6091, 1.0
        %v6280 = vadd.f32 %v6093, 1.0
        %v6281 = vadd.f32 %v6095, 1.0
        %v6282 = vadd.f32 %v6097, 1.0
        %v6283 = vadd.f32 %v6099, 1.0
        %v6284 = vadd.f32 %v6101, 1.0
        %v6285 = vadd.f32 %v6103, 1.0
        %v6286 = vadd.f32 %v6105, 1.0
        %v6287 = vadd.f32 %v6107, 1.0
        %v6288 = vadd.f32 %v6109, 1.0
        %v6289 = vadd.f32 %v6111, 1.0
        %v6290 = vadd.f32 %v6113, 1.0
        %v6291 = vadd.f32 %v6115, 1.0
        %v6292 = vadd.f32 %v6117, 1.0
        %v6293 = vadd.f32 %v6119, 1.0
        %v6294 = vadd.f32 %v6121, 1.0
        %v6295 = vadd.f32 %v6123, 1.0
        %v6296 = vadd.f32 %v6125, 1.0
        %v6297 = vadd.f32 %v6127, 1.0
        %v6298 = vadd.f32 %v6129, 1.0
        %v6299 = vadd.f32 %v6131, 1.0
        %v6300 = vadd.f32 %v6133, 1.0
        %v6301 = vadd.f32 %v6135, 1.0
        %v6302 = vadd.f32 %v6137, 1.0
        %v6303 = vadd.f32 %v6139, 1.0
        %v6304 = vadd.f32 %v6141, 1.0
        %v6305 = vadd.f32 %v6143, 1.0
        %v6306 = vadd.f32 %v6145, 1.0
        %v6307 = vadd.f32 %v6147, 1.0
        %v6308 = vadd.f32 %v6149, 1.0
        %v6309 = vadd.f32 %v6151, 1.0
        %v6310 = vadd.f32 %v6153, 1.0
        %v6311 = vadd.f32 %v6155, 1.0
        %v6312 = vadd.f32 %v6157, 1.0
        %v6313 = vadd.f32 %v6159, 1.0
        %v6314 = vadd.f32 %v6161, 1.0
        %v6315 = vadd.f32 %v6163, 1.0
        %v6316 = vadd.f32 %v6165, 1.0
        %v6317 = vadd.f32 %v6167, 1.0
        %v6318 = vadd.f32 %v6169, 1.0
        %v6319 = vadd.f32 %v6171, 1.0
        %v6320 = vadd.f32 %v6173, 1.0
        %v6321 = vadd.f32 %v6175, 1.0
        %v6322 = vadd.f32 %v6177, 1.0
        %v6323 = vadd.f32 %v6179, 1.0
        %v6324 = vadd.f32 %v6181, 1.0
        %v6325 = vadd.f32 %v6183, 1.0
        %v6326 = vadd.f32 %v6185, 1.0
        %v6327 = vadd.f32 %v6187, 1.0
        %v6328 = vadd.f32 %v6189, 1.0
        %v6329 = vadd.f32 %v6191, 1.0
        %v6330 = vadd.f32 %v6193, 1.0
        %v6331 = vadd.f32 %v6195, 1.0
        %v6332 = vadd.f32 %v6197, 1.0
        %v6333 = vadd.f32 %v6199, 1.0
        %v6334 = vadd.f32 %v6201, 1.0
        %v6335 = vadd.f32 %v6203, 1.0
        %v6336 = vadd.f32 %v6205, 1.0
        %v6337 = vadd.f32 %v6207, 1.0
        %v6338 = vadd.f32 %v6209, 1.0
        %v6339 = vadd.f32 %v6211, 1.0
        %v6340 = vadd.f32 %v6213, 1.0
        %v6341 = vadd.f32 %v6215, 1.0
        %v6342 = vadd.f32 %v6217, 1.0
        %v6343 = vadd.f32 %v6219, 1.0
        %v6344 = vadd.f32 %v6221, 1.0
        %v6345 = vadd.f32 %v6223, 1.0
        %v6346 = vadd.f32 %v6225, 1.0
        %v6347 = vadd.f32 %v6227, 1.0
        %v6348 = vadd.f32 %v6229, 1.0
        %v6349 = vadd.f32 %v6231, 1.0
        %v6350 = vadd.f32 %v6233, 1.0
        %v6351 = vadd.f32 %v6235, 1.0
        %v6352 = vadd.f32 %v6237, 1.0
        %v6353 = vadd.f32 %v6239, 1.0
        %v6354 = vadd.f32 %v6241, 1.0
        %v6355 = vadd.f32 %v6243, 1.0
        %v6356 = vrcp.pop %v6244
        %v6357 = vrcp.pop %v6245
        %v6358 = vrcp.pop %v6246
        %v6359 = vrcp.pop %v6247
        %v6360 = vrcp.pop %v6248
        %v6361 = vrcp.pop %v6249
        %v6362 = vrcp.pop %v6250
        %v6363 = vrcp.pop %v6251
        %v6364 = vrcp.pop %v6252
        %v6365 = vrcp.pop %v6253
        %v6366 = vrcp.pop %v6254
        %v6367 = vrcp.pop %v6255
        %v6368 = vrcp.pop %v6256
        %v6369 = vrcp.pop %v6257
        %v6370 = vrcp.pop %v6258
        %v6371 = vrcp.pop %v6259
        %v6372 = vrcp.pop %v6260
        %v6373 = vrcp.pop %v6261
        %v6374 = vrcp.pop %v6262
        %v6375 = vrcp.pop %v6263
        %v6376 = vrcp.pop %v6264
        %v6377 = vrcp.pop %v6265
        %v6378 = vrcp.pop %v6266
        %v6379 = vrcp.pop %v6267
        %v6380 = vrcp.pop %v6268
        %v6381 = vrcp.pop %v6269
        %v6382 = vrcp.pop %v6270
        %v6383 = vrcp.pop %v6271
        %v6384 = vrcp.pop %v6272
        %v6385 = vrcp.pop %v6273
        %v6386 = vrcp.pop %v6274
        %v6387 = vrcp.pop %v6275
        %v6388 = vrcp.pop %v6276
        %v6389 = vrcp.pop %v6277
        %v6390 = vrcp.pop %v6278
        %v6391 = vrcp.pop %v6279
        %v6392 = vrcp.pop %v6280
        %v6393 = vrcp.pop %v6281
        %v6394 = vrcp.pop %v6282
        %v6395 = vrcp.pop %v6283
        %v6396 = vrcp.pop %v6284
        %v6397 = vrcp.pop %v6285
        %v6398 = vrcp.pop %v6286
        %v6399 = vrcp.pop %v6287
        %v6400 = vrcp.pop %v6288
        %v6401 = vrcp.pop %v6289
        %v6402 = vrcp.pop %v6290
        %v6403 = vrcp.pop %v6291
        %v6404 = vrcp.pop %v6292
        %v6405 = vrcp.pop %v6293
        %v6406 = vrcp.pop %v6294
        %v6407 = vrcp.pop %v6295
        %v6408 = vrcp.pop %v6296
        %v6409 = vrcp.pop %v6297
        %v6410 = vrcp.pop %v6298
        %v6411 = vrcp.pop %v6299
        %v6412 = vrcp.pop %v6300
        %v6413 = vrcp.pop %v6301
        %v6414 = vrcp.pop %v6302
        %v6415 = vrcp.pop %v6303
        %v6416 = vrcp.pop %v6304
        %v6417 = vrcp.pop %v6305
        %v6418 = vrcp.pop %v6306
        %v6419 = vrcp.pop %v6307
        %v6420 = vrcp.pop %v6308
        %v6421 = vrcp.pop %v6309
        %v6422 = vrcp.pop %v6310
        %v6423 = vrcp.pop %v6311
        %v6424 = vrcp.pop %v6312
        %v6425 = vrcp.pop %v6313
        %v6426 = vrcp.pop %v6314
        %v6427 = vrcp.pop %v6315
        %v6428 = vrcp.pop %v6316
        %v6429 = vrcp.pop %v6317
        %v6430 = vrcp.pop %v6318
        %v6431 = vrcp.pop %v6319
        %v6432 = vrcp.pop %v6320
        %v6433 = vrcp.pop %v6321
        %v6434 = vrcp.pop %v6322
        %v6435 = vrcp.pop %v6323
        %v6436 = vrcp.pop %v6324
        %v6437 = vrcp.pop %v6325
        %v6438 = vrcp.pop %v6326
        %v6439 = vrcp.pop %v6327
        %v6440 = vrcp.pop %v6328
        %v6441 = vrcp.pop %v6329
        %v6442 = vrcp.pop %v6330
        %v6443 = vrcp.pop %v6331
        %v6444 = vrcp.pop %v6332
        %v6445 = vrcp.pop %v6333
        %v6446 = vrcp.pop %v6334
        %v6447 = vrcp.pop %v6335
        %v6448 = vrcp.pop %v6336
        %v6449 = vrcp.pop %v6337
        %v6450 = vrcp.pop %v6338
        %v6451 = vrcp.pop %v6339
        %v6452 = vrcp.pop %v6340
        %v6453 = vrcp.pop %v6341
        %v6454 = vrcp.pop %v6342
        %v6455 = vrcp.pop %v6343
        %v6456 = vrcp.pop %v6344
        %v6457 = vrcp.pop %v6345
        %v6458 = vrcp.pop %v6346
        %v6459 = vrcp.pop %v6347
        %v6460 = vrcp.pop %v6348
        %v6461 = vrcp.pop %v6349
        %v6462 = vrcp.pop %v6350
        %v6463 = vrcp.pop %v6351
        %v6464 = vrcp.pop %v6352
        %v6465 = vrcp.pop %v6353
        %v6466 = vrcp.pop %v6354
        %v6467 = vrcp.pop %v6355
        %6468 = vst [vmem:[%s402] sm:$0xff] %v6356
        %6469 = vst [vmem:[%s402 + $0x8] sm:$0xff] %v6357
        %6470 = vst [vmem:[%s402 + $0x10] sm:$0xff] %v6358
        %6471 = vst [vmem:[%s402 + $0x18] sm:$0xff] %v6359
        %6472 = vst [vmem:[%s402 + $0x20] sm:$0xff] %v6360
        %6473 = vst [vmem:[%s402 + $0x28] sm:$0xff] %v6361
        %6474 = vst [vmem:[%s402 + $0x30] sm:$0xff] %v6362
        %6475 = vst [vmem:[%s402 + $0x38] sm:$0xff] %v6363
        %6476 = vst [vmem:[%s402 + $0x40] sm:$0xff] %v6364
        %6477 = vst [vmem:[%s402 + $0x48] sm:$0xff] %v6365
        %6478 = vst [vmem:[%s402 + $0x50] sm:$0xff] %v6366
        %6479 = vst [vmem:[%s402 + $0x58] sm:$0xff] %v6367
        %6480 = vst [vmem:[%s402 + $0x60] sm:$0xff] %v6368
        %6481 = vst [vmem:[%s402 + $0x68] sm:$0xff] %v6369
        %6482 = vst [vmem:[%s402 + $0x70] sm:$0xff] %v6370
        %6483 = vst [vmem:[%s402 + $0x78] sm:$0xff] %v6371
        %6484 = vst [vmem:[%s402 + $0x80] sm:$0xff] %v6372
        %6485 = vst [vmem:[%s402 + $0x88] sm:$0xff] %v6373
        %6486 = vst [vmem:[%s402 + $0x90] sm:$0xff] %v6374
        %6487 = vst [vmem:[%s402 + $0x98] sm:$0xff] %v6375
        %6488 = vst [vmem:[%s402 + $0xa0] sm:$0xff] %v6376
        %6489 = vst [vmem:[%s402 + $0xa8] sm:$0xff] %v6377
        %6490 = vst [vmem:[%s402 + $0xb0] sm:$0xff] %v6378
        %6491 = vst [vmem:[%s402 + $0xb8] sm:$0xff] %v6379
        %6492 = vst [vmem:[%s402 + $0xc0] sm:$0xff] %v6380
        %6493 = vst [vmem:[%s402 + $0xc8] sm:$0xff] %v6381
        %6494 = vst [vmem:[%s402 + $0xd0] sm:$0xff] %v6382
        %6495 = vst [vmem:[%s402 + $0xd8] sm:$0xff] %v6383
        %6496 = vst [vmem:[%s402 + $0xe0] sm:$0xff] %v6384
        %6497 = vst [vmem:[%s402 + $0xe8] sm:$0xff] %v6385
        %6498 = vst [vmem:[%s402 + $0xf0] sm:$0xff] %v6386
        %6499 = vst [vmem:[%s402 + $0xf8] sm:$0xff] %v6387
        %6500 = vst [vmem:[%s402 + $0x100] sm:$0xff] %v6388
        %6501 = vst [vmem:[%s402 + $0x108] sm:$0xff] %v6389
        %6502 = vst [vmem:[%s402 + $0x110] sm:$0xff] %v6390
        %6503 = vst [vmem:[%s402 + $0x118] sm:$0xff] %v6391
        %6504 = vst [vmem:[%s402 + $0x120] sm:$0xff] %v6392
        %6505 = vst [vmem:[%s402 + $0x128] sm:$0xff] %v6393
        %6506 = vst [vmem:[%s402 + $0x130] sm:$0xff] %v6394
        %6507 = vst [vmem:[%s402 + $0x138] sm:$0xff] %v6395
        %6508 = vst [vmem:[%s402 + $0x140] sm:$0xff] %v6396
        %6509 = vst [vmem:[%s402 + $0x148] sm:$0xff] %v6397
        %6510 = vst [vmem:[%s402 + $0x150] sm:$0xff] %v6398
        %6511 = vst [vmem:[%s402 + $0x158] sm:$0xff] %v6399
        %6512 = vst [vmem:[%s402 + $0x160] sm:$0xff] %v6400
        %6513 = vst [vmem:[%s402 + $0x168] sm:$0xff] %v6401
        %6514 = vst [vmem:[%s402 + $0x170] sm:$0xff] %v6402
        %6515 = vst [vmem:[%s402 + $0x178] sm:$0xff] %v6403
        %6516 = vst [vmem:[%s402 + $0x180] sm:$0xff] %v6404
        %6517 = vst [vmem:[%s402 + $0x188] sm:$0xff] %v6405
        %6518 = vst [vmem:[%s402 + $0x190] sm:$0xff] %v6406
        %6519 = vst [vmem:[%s402 + $0x198] sm:$0xff] %v6407
        %6520 = vst [vmem:[%s402 + $0x1a0] sm:$0xff] %v6408
        %6521 = vst [vmem:[%s402 + $0x1a8] sm:$0xff] %v6409
        %6522 = vst [vmem:[%s402 + $0x1b0] sm:$0xff] %v6410
        %6523 = vst [vmem:[%s402 + $0x1b8] sm:$0xff] %v6411
        %6524 = vst [vmem:[%s402 + $0x1c0] sm:$0xff] %v6412
        %6525 = vst [vmem:[%s402 + $0x1c8] sm:$0xff] %v6413
        %6526 = vst [vmem:[%s402 + $0x1d0] sm:$0xff] %v6414
        %6527 = vst [vmem:[%s402 + $0x1d8] sm:$0xff] %v6415
        %6528 = vst [vmem:[%s402 + $0x1e0] sm:$0xff] %v6416
        %6529 = vst [vmem:[%s402 + $0x1e8] sm:$0xff] %v6417
        %6530 = vst [vmem:[%s402 + $0x1f0] sm:$0xff] %v6418
        %6531 = vst [vmem:[%s402 + $0x1f8] sm:$0xff] %v6419
        %6532 = vst [vmem:[%s402 + $0x200] sm:$0xff] %v6420
        %6533 = vst [vmem:[%s402 + $0x208] sm:$0xff] %v6421
        %6534 = vst [vmem:[%s402 + $0x210] sm:$0xff] %v6422
        %6535 = vst [vmem:[%s402 + $0x218] sm:$0xff] %v6423
        %6536 = vst [vmem:[%s402 + $0x220] sm:$0xff] %v6424
        %6537 = vst [vmem:[%s402 + $0x228] sm:$0xff] %v6425
        %6538 = vst [vmem:[%s402 + $0x230] sm:$0xff] %v6426
        %6539 = vst [vmem:[%s402 + $0x238] sm:$0xff] %v6427
        %6540 = vst [vmem:[%s402 + $0x240] sm:$0xff] %v6428
        %6541 = vst [vmem:[%s402 + $0x248] sm:$0xff] %v6429
        %6542 = vst [vmem:[%s402 + $0x250] sm:$0xff] %v6430
        %6543 = vst [vmem:[%s402 + $0x258] sm:$0xff] %v6431
        %6544 = vst [vmem:[%s402 + $0x260] sm:$0xff] %v6432
        %6545 = vst [vmem:[%s402 + $0x268] sm:$0xff] %v6433
        %6546 = vst [vmem:[%s402 + $0x270] sm:$0xff] %v6434
        %6547 = vst [vmem:[%s402 + $0x278] sm:$0xff] %v6435
        %6548 = vst [vmem:[%s402 + $0x280] sm:$0xff] %v6436
        %6549 = vst [vmem:[%s402 + $0x288] sm:$0xff] %v6437
        %6550 = vst [vmem:[%s402 + $0x290] sm:$0xff] %v6438
        %6551 = vst [vmem:[%s402 + $0x298] sm:$0xff] %v6439
        %6552 = vst [vmem:[%s402 + $0x2a0] sm:$0xff] %v6440
        %6553 = vst [vmem:[%s402 + $0x2a8] sm:$0xff] %v6441
        %6554 = vst [vmem:[%s402 + $0x2b0] sm:$0xff] %v6442
        %6555 = vst [vmem:[%s402 + $0x2b8] sm:$0xff] %v6443
        %6556 = vst [vmem:[%s402 + $0x2c0] sm:$0xff] %v6444
        %6557 = vst [vmem:[%s402 + $0x2c8] sm:$0xff] %v6445
        %6558 = vst [vmem:[%s402 + $0x2d0] sm:$0xff] %v6446
        %6559 = vst [vmem:[%s402 + $0x2d8] sm:$0xff] %v6447
        %6560 = vst [vmem:[%s402 + $0x2e0] sm:$0xff] %v6448
        %6561 = vst [vmem:[%s402 + $0x2e8] sm:$0xff] %v6449
        %6562 = vst [vmem:[%s402 + $0x2f0] sm:$0xff] %v6450
        %6563 = vst [vmem:[%s402 + $0x2f8] sm:$0xff] %v6451
        %6564 = vst [vmem:[%s402 + $0x300] sm:$0xff] %v6452
        %6565 = vst [vmem:[%s402 + $0x308] sm:$0xff] %v6453
        %6566 = vst [vmem:[%s402 + $0x310] sm:$0xff] %v6454
        %6567 = vst [vmem:[%s402 + $0x318] sm:$0xff] %v6455
        %6568 = vst [vmem:[%s402 + $0x320] sm:$0xff] %v6456
        %6569 = vst [vmem:[%s402 + $0x328] sm:$0xff] %v6457
        %6570 = vst [vmem:[%s402 + $0x330] sm:$0xff] %v6458
        %6571 = vst [vmem:[%s402 + $0x338] sm:$0xff] %v6459
        %6572 = vst [vmem:[%s402 + $0x340] sm:$0xff] %v6460
        %6573 = vst [vmem:[%s402 + $0x348] sm:$0xff] %v6461
        %6574 = vst [vmem:[%s402 + $0x350] sm:$0xff] %v6462
        %6575 = vst [vmem:[%s402 + $0x358] sm:$0xff] %v6463
        %6576 = vst [vmem:[%s402 + $0x360] sm:$0xff] %v6464
        %6577 = vst [vmem:[%s402 + $0x368] sm:$0xff] %v6465
        %6578 = vst [vmem:[%s402 + $0x370] sm:$0xff] %v6466
        %6579 = vst [vmem:[%s402 + $0x378] sm:$0xff] %v6467
        %6580 = vst [vmem:[%s409] sm:$0xff] %v3196
        %6581 = vst [vmem:[%s409 + $0x8] sm:$0xff] %v3199
        %6582 = vst [vmem:[%s409 + $0x10] sm:$0xff] %v3204
        %6583 = vst [vmem:[%s409 + $0x18] sm:$0xff] %v3207
        %6584 = vst [vmem:[%s409 + $0x20] sm:$0xff] %v3212
        %6585 = vst [vmem:[%s409 + $0x28] sm:$0xff] %v3215
        %6586 = vst [vmem:[%s409 + $0x30] sm:$0xff] %v3220
        %6587 = vst [vmem:[%s409 + $0x38] sm:$0xff] %v3223
        %6588 = vst [vmem:[%s409 + $0x40] sm:$0xff] %v3228
        %6589 = vst [vmem:[%s409 + $0x48] sm:$0xff] %v3231
        %6590 = vst [vmem:[%s409 + $0x50] sm:$0xff] %v3236
        %6591 = vst [vmem:[%s409 + $0x58] sm:$0xff] %v3239
        %6592 = vst [vmem:[%s409 + $0x60] sm:$0xff] %v3244
        %6593 = vst [vmem:[%s409 + $0x68] sm:$0xff] %v3247
        %6594 = vst [vmem:[%s409 + $0x70] sm:$0xff] %v3252
        %6595 = vst [vmem:[%s409 + $0x78] sm:$0xff] %v3255
        %s6596 = sand.u32 %s257, 1
        %s6597 = scalar_lea.sflag [#allocation3], %s6596
        %s6598 = sand.u32 %s257, 1
        %s6599 = smul.addr %s6598, 896
        %s6600 = scalar_lea.vmem [#allocation2], %s6599
        %s6601 = sand.u32 %s283, 1
        %s6602 = scalar_lea.sflag [#allocation5], %s6601
        %s6603 = sand.u32 %s283, 1
        %s6604 = smul.addr %s6603, 128
        %s6605 = scalar_lea.vmem [#allocation4], %s6604
        // Predicated region
        $region61: #{tpu_custom_call.1} parent=59 // pred_check
          %p6606 = pneg %p267
        $region62: #{tpu_custom_call.1} parent=59 // pred_check_branch
          %6608 = sbr.rel (%p6606) target = $region64
        $region63: #{tpu_custom_call.1} parent=59 // pred_region
          %s6609 = smul.u32 16, %s29
          %s6611 = ssub.s32 14336, 14336
          %6612 = vsyncadd %s6597, %s6611
          %s6613 = smul.addr %s6609, 7
          %s6614 = smul.addr %s6613, 128
          %s6615 = scalar_lea.hbm %s10, %s6614
          %s6616 = sshll.u32 %s6600, 4
          %s6617 = int_to_ptr.vmem [resolvable:$true] %s6616
          %6622 = dma.vmem_to_hbm [thread:$0]  %s6617, 14336, %s6615, %s6597, 896, 896, 56
        $region64: #{tpu_custom_call.1} parent=59 // pred_fallthru
          _
        // Predicated region
        $region65: #{tpu_custom_call.1} parent=59 // pred_check
          %p6623 = pneg %p293
        $region66: #{tpu_custom_call.1} parent=59 // pred_check_branch
          %6625 = sbr.rel (%p6623) target = $region68
        $region67: #{tpu_custom_call.1} parent=59 // pred_region
          %s6626 = smul.u32 16, %s29
          %s6628 = ssub.s32 2048, 2048
          %6629 = vsyncadd %s6602, %s6628
          %s6630 = smul.addr %s6626, 128
          %s6631 = scalar_lea.hbm %s11, %s6630
          %s6632 = sshll.u32 %s6605, 4
          %s6633 = int_to_ptr.vmem [resolvable:$true] %s6632
          %6638 = dma.vmem_to_hbm [thread:$0]  %s6633, 2048, %s6631, %s6602, 128, 128, 8
        $region68: #{tpu_custom_call.1} parent=59 // pred_fallthru
          _
      $region60: #{tpu_custom_call.1} parent=5 // pred_fallthru
        _
      %p6639 = scmp.le.s32.totalorder 2, %s24
      // Predicated region
      $region69: #{tpu_custom_call.1} parent=5 // pred_check
        %p6640 = pneg %p6639
      $region70: #{tpu_custom_call.1} parent=5 // pred_check_branch
        %6642 = sbr.rel (%p6640) target = $region72
      $region71: #{tpu_custom_call.1} parent=5 // pred_region
        %s6643 = ssub.s32 %s24, 2
        // Predicated region
        $region73: #{tpu_custom_call.1} parent=71 // pred_check
          %p6644 = pneg %p273
        $region74: #{tpu_custom_call.1} parent=71 // pred_check_branch
          %6646 = sbr.rel (%p6644) target = $region76
        $region75: #{tpu_custom_call.1} parent=71 // pred_region
          %s6647 = sand.u32 %s258, 1
          %s6648 = scalar_lea.sflag [#allocation3], %s6647
          %s6649 = sand.u32 %s258, 1
          %s6650 = smul.addr %s6649, 896
          %s6651 = scalar_lea.vmem [#allocation2], %s6650
          %6652 = dma.done %s6648, 14336
        $region76: #{tpu_custom_call.1} parent=71 // pred_fallthru
          _
        // Predicated region
        $region77: #{tpu_custom_call.1} parent=71 // pred_check
          %p6653 = pneg %p299
        $region78: #{tpu_custom_call.1} parent=71 // pred_check_branch
          %6655 = sbr.rel (%p6653) target = $region80
        $region79: #{tpu_custom_call.1} parent=71 // pred_region
          %s6656 = sand.u32 %s284, 1
          %s6657 = scalar_lea.sflag [#allocation5], %s6656
          %s6658 = sand.u32 %s284, 1
          %s6659 = smul.addr %s6658, 128
          %s6660 = scalar_lea.vmem [#allocation4], %s6659
          %6661 = dma.done %s6657, 2048
        $region80: #{tpu_custom_call.1} parent=71 // pred_fallthru
          _
      $region72: #{tpu_custom_call.1} parent=5 // pred_fallthru
        _
    $region6: #{tpu_custom_call.1} parent=1 // loop_footer
      %s28 = sadd.s32 1, %s24
    $region7: #{tpu_custom_call.1} parent=1 // loop_footer_branch
      %23 = sbr.rel target = $region3
    $region8: #{tpu_custom_call.1} parent=1 // loop_exit
      _
    %6662 = vsyncpa [#allocation3], 1
    %s6663 = scalar_lea.sflag [#allocation3], 1
    %6664 = vsyncpa %s6663, 1
    %6665 = vsyncpa [#allocation5], 1
    %s6666 = scalar_lea.sflag [#allocation5], 1
    %6667 = vsyncpa %s6666, 1

</llo_original>
